<compile_context>
chip_gen: v7x
topology: tpu7x:2x2x1
jax: 0.10.0
libtpu: 0.0.40
codegen_flags: <defaults>
</compile_context>

<pallas_src>
import functools
import math

import jax
import jax.numpy as jnp
import numpy as np
from jax.experimental import pallas as pl

EPS = 1e-5


# ----------------------------------------------------------------------------
# In-kernel helpers
# ----------------------------------------------------------------------------
def _layer_norm(x, gamma, beta):
    # One-pass moments: var = E[x^2] - mu^2 (saves a full VPU pass per LN call).
    mu = jnp.mean(x, axis=-1, keepdims=True)
    var = jnp.mean(x * x, axis=-1, keepdims=True) - mu * mu
    return (x - mu) * jax.lax.rsqrt(var + EPS) * gamma + beta


# ----------------------------------------------------------------------------
# Single fused kernel: fc_in + L encoder layers + final LN + fc_out
# ----------------------------------------------------------------------------
def _fused_transformer_kernel(
    src_ref,                      # (B*S, input_dim)
    w_in_ref, b_in_ref,           # (input_dim, D), (1, D)
    wqkv_ref, bqkv_ref,           # (L, D, 3D), (L, 1, 3D)
    wo_ref, bo_ref,               # (L, D, D), (L, 1, D)
    g1_ref, be1_ref,              # (L, 1, D), (L, 1, D)
    w1_ref, bf1_ref,              # (L, D, F), (L, 1, F)
    w2_ref, bf2_ref,              # (L, F, D), (L, 1, D)
    g2_ref, be2_ref,              # (L, 1, D), (L, 1, D)
    g_enc_ref, be_enc_ref,        # (1, D), (1, D)
    w_out_ref, b_out_ref,         # (D, 1), (1, 1)
    o_ref,                        # (B, 1)
    *, num_layers, nhead, batch, seq,
):
    B, S, H = batch, seq, nhead

    # fc_in on the flattened (B*S, input_dim) slab (lane-dense matmul).
    x = (jnp.dot(src_ref[...], w_in_ref[...], preferred_element_type=jnp.float32)
         + b_in_ref[...])                                               # (B*S, D)
    D = x.shape[-1]
    Dh = D // H
    scale = 1.0 / math.sqrt(Dh)

    for l in range(num_layers):                 # static layer loop; weights VMEM-resident
        # ---- multi-head self-attention --------------------------------------
        # One lane-dense QKV projection for the whole slab: (B*S, D) @ (D, 3D).
        qkv = (jnp.dot(x, wqkv_ref[l], preferred_element_type=jnp.float32)
               + bqkv_ref[l])                                           # (B*S, 3D)
        qkv = qkv.reshape(B, S, 3 * D)                                  # split batch (sublane-aligned)

        ctx_heads = []
        for h in range(H):                      # static head loop; lane sub-slices only
            q = qkv[:, :, h * Dh:(h + 1) * Dh]                          # (B, S, Dh)
            k = qkv[:, :, D + h * Dh:D + (h + 1) * Dh]                  # (B, S, Dh)
            v = qkv[:, :, 2 * D + h * Dh:2 * D + (h + 1) * Dh]          # (B, S, Dh)
            s = jnp.einsum('bqe,bke->bqk', q, k,
                           preferred_element_type=jnp.float32) * scale  # (B, S, S)
            s = s - jnp.max(s, axis=-1, keepdims=True)
            p = jnp.exp(s)
            p = p * pl.reciprocal(jnp.sum(p, axis=-1, keepdims=True), approx=True)
            ctx_heads.append(jnp.einsum('bqk,bke->bqe', p, v,
                                        preferred_element_type=jnp.float32))  # (B, S, Dh)

        # Merge heads along the lane axis, then one lane-dense out-projection.
        ctx = jnp.concatenate(ctx_heads, axis=-1).reshape(B * S, D)     # (B*S, D)
        attn = (jnp.dot(ctx, wo_ref[l], preferred_element_type=jnp.float32)
                + bo_ref[l])                                            # (B*S, D)

        # post-norm residual 1
        x = _layer_norm(x + attn, g1_ref[l], be1_ref[l])

        # ---- feed-forward (ReLU) ---------------------------------------------
        ff = jnp.dot(x, w1_ref[l], preferred_element_type=jnp.float32) + bf1_ref[l]
        ff = jnp.maximum(ff, 0.0)
        ff = jnp.dot(ff, w2_ref[l], preferred_element_type=jnp.float32) + bf2_ref[l]

        # post-norm residual 2
        x = _layer_norm(x + ff, g2_ref[l], be2_ref[l])

    # Last token of each sequence (static sublane pick; replaces the one-hot matmul),
    # final encoder LayerNorm, and fc_out -- all still inside the fused kernel.
    x_last = x.reshape(B, S, D)[:, S - 1, :]                            # (B, D)
    y = _layer_norm(x_last, g_enc_ref[...], be_enc_ref[...])
    o_ref[...] = (jnp.dot(y, w_out_ref[...], preferred_element_type=jnp.float32)
                  + b_out_ref[...])


# ----------------------------------------------------------------------------
# Wrapper: one-time weight stacking (outside jit) + single pallas_call
# ----------------------------------------------------------------------------
def prepare_params(params):
    """Stack per-layer weights along a leading L axis. Call ONCE, outside the jitted path."""
    def stack(name):
        return jnp.stack([lp[name] for lp in params["layers"]], axis=0)

    return {
        "w_in_t": params["w_in_t"], "b_in": params["b_in"],
        "wqkv": stack("wqkv_t"),     # (L, D, 3D)  original lane-dense in_proj layout
        "bqkv": stack("bqkv"),       # (L, 1, 3D)  lane-dense, no seq pre-broadcast
        "wo": stack("wo_t"),         # (L, D, D)
        "bo": stack("bo"),           # (L, 1, D)
        "g1": stack("g1"), "be1": stack("be1"),
        "w1": stack("w1_t"), "bf1": stack("bf1"),
        "w2": stack("w2_t"), "bf2": stack("bf2"),
        "g2": stack("g2"), "be2": stack("be2"),
        "g_enc": params["g_enc"], "be_enc": params["be_enc"],
        "w_out_t": params["w_out_t"], "b_out": params["b_out"],
    }


def transformer_forward(src, prep, nhead):
    B, S, input_dim = src.shape
    L = prep["wqkv"].shape[0]
    src2d = src.reshape(B * S, input_dim)

    kernel = functools.partial(
        _fused_transformer_kernel,
        num_layers=L, nhead=nhead, batch=B, seq=S)

    # Single program, no grid: every operand is a full-array VMEM block; all
    # activations remain VMEM-resident across layers (total footprint << 1 MiB).
    return pl.pallas_call(
        kernel,
        out_shape=jax.ShapeDtypeStruct((B, 1), jnp.float32),
    )(src2d, prep["w_in_t"], prep["b_in"],
      prep["wqkv"], prep["bqkv"], prep["wo"], prep["bo"],
      prep["g1"], prep["be1"], prep["w1"], prep["bf1"],
      prep["w2"], prep["bf2"], prep["g2"], prep["be2"],
      prep["g_enc"], prep["be_enc"], prep["w_out_t"], prep["b_out"])


# ----------------------------------------------------------------------------
# Pure-JAX reference (same math, canonical weight layout) for correctness check
# ----------------------------------------------------------------------------
def reference_forward(src, params, nhead):
    def ln(x, g, b):
        mu = jnp.mean(x, axis=-1, keepdims=True)
        var = jnp.mean((x - mu) ** 2, axis=-1, keepdims=True)
        return (x - mu) / jnp.sqrt(var + EPS) * g + b

    x = src @ params["w_in_t"] + params["b_in"]
    D = x.shape[-1]
    Dh = D // nhead
    for lp in params["layers"]:
        qkv = x @ lp["wqkv_t"] + lp["bqkv"]
        q, k, v = qkv[..., :D], qkv[..., D:2 * D], qkv[..., 2 * D:]
        outs = []
        for h in range(nhead):
            sl = slice(h * Dh, (h + 1) * Dh)
            s = jnp.einsum("bsd,btd->bst", q[..., sl], k[..., sl]) / math.sqrt(Dh)
            p = jax.nn.softmax(s, axis=-1)
            outs.append(jnp.einsum("bst,btd->bsd", p, v[..., sl]))
        attn = jnp.concatenate(outs, axis=-1) @ lp["wo_t"] + lp["bo"]
        x = ln(x + attn, lp["g1"], lp["be1"])
        ff = jnp.maximum(x @ lp["w1_t"] + lp["bf1"], 0.0) @ lp["w2_t"] + lp["bf2"]
        x = ln(x + ff, lp["g2"], lp["be2"])
    x = ln(x, params["g_enc"], params["be_enc"])
    return x[:, -1, :] @ params["w_out_t"] + params["b_out"]


# ----------------------------------------------------------------------------
# Deterministic parameter construction
# ----------------------------------------------------------------------------
def init_params(key, input_dim, d_model, nhead, num_layers, dim_ff):
    scale = 0.05

    def nrm(k, shape):
        return jax.random.normal(k, shape, dtype=jnp.float32) * scale

    keys = jax.random.split(key, 4 + num_layers)
    params = {
        # fc_in: PyTorch W is (d_model, input_dim); store transposed for x @ W^T
        "w_in_t": nrm(keys[0], (input_dim, d_model)),
        "b_in": nrm(keys[1], (1, d_model)),
        "g_enc": jnp.ones((1, d_model), jnp.float32),
        "be_enc": jnp.zeros((1, d_model), jnp.float32),
        "w_out_t": nrm(keys[2], (d_model, 1)),
        "b_out": nrm(keys[3], (1, 1)),
        "layers": [],
    }
    for li in range(num_layers):
        lk = jax.random.split(keys[4 + li], 8)
        params["layers"].append({
            "wqkv_t": nrm(lk[0], (d_model, 3 * d_model)),   # in_proj_weight^T
            "bqkv": nrm(lk[1], (1, 3 * d_model)),
            "wo_t": nrm(lk[2], (d_model, d_model)),          # out_proj.weight^T
            "bo": nrm(lk[3], (1, d_model)),
            "g1": jnp.ones((1, d_model), jnp.float32),
            "be1": jnp.zeros((1, d_model), jnp.float32),
            "w1_t": nrm(lk[4], (d_model, dim_ff)),            # linear1.weight^T
            "bf1": nrm(lk[5], (1, dim_ff)),
            "w2_t": nrm(lk[6], (dim_ff, d_model)),            # linear2.weight^T
            "bf2": nrm(lk[7], (1, d_model)),
            "g2": jnp.ones((1, d_model), jnp.float32),
            "be2": jnp.zeros((1, d_model), jnp.float32),
        })
    return params


if __name__ == "__main__":
    # Small shapes consistent with the module:
    # Transformer(input_dim=16, d_model=32, nhead=4,
    #             num_encoder_layers=2, num_decoder_layers=2, dim_feedforward=64)
    B, S = 2, 8
    input_dim, d_model, nhead = 16, 32, 4
    num_encoder_layers, dim_feedforward = 2, 64

    root = jax.random.PRNGKey(0)
    k_src, k_par = jax.random.split(root)
    src = jax.random.normal(k_src, (B, S, input_dim), dtype=jnp.float32)
    params = init_params(k_par, input_dim, d_model, nhead,
                         num_encoder_layers, dim_feedforward)

    # Weight re-layout done ONCE, outside the jitted per-call path.
    prep = prepare_params(params)

    fwd = jax.jit(functools.partial(transformer_forward, nhead=nhead))
    out = jax.block_until_ready(fwd(src, prep))

    ref = jax.block_until_ready(reference_forward(src, params, nhead))
    assert out.shape == (B, 1)
    np.testing.assert_allclose(np.asarray(out), np.asarray(ref), rtol=1e-3, atol=1e-3)

    print("KERNEL_OK")
</pallas_src>

<mosaic_0001>
module attributes {stable_mosaic.version = 11 : i64} {
  func.func @_fused_transformer_kernel(%arg0: memref<16x16xf32, #tpu.memory_space<vmem>>, %arg1: memref<16x32xf32, #tpu.memory_space<vmem>>, %arg2: memref<1x32xf32, #tpu.memory_space<vmem>>, %arg3: memref<2x32x96xf32, #tpu.memory_space<vmem>>, %arg4: memref<2x1x96xf32, #tpu.memory_space<vmem>>, %arg5: memref<2x32x32xf32, #tpu.memory_space<vmem>>, %arg6: memref<2x1x32xf32, #tpu.memory_space<vmem>>, %arg7: memref<2x1x32xf32, #tpu.memory_space<vmem>>, %arg8: memref<2x1x32xf32, #tpu.memory_space<vmem>>, %arg9: memref<2x32x64xf32, #tpu.memory_space<vmem>>, %arg10: memref<2x1x64xf32, #tpu.memory_space<vmem>>, %arg11: memref<2x64x32xf32, #tpu.memory_space<vmem>>, %arg12: memref<2x1x32xf32, #tpu.memory_space<vmem>>, %arg13: memref<2x1x32xf32, #tpu.memory_space<vmem>>, %arg14: memref<2x1x32xf32, #tpu.memory_space<vmem>>, %arg15: memref<1x32xf32, #tpu.memory_space<vmem>>, %arg16: memref<1x32xf32, #tpu.memory_space<vmem>>, %arg17: memref<32x1xf32, #tpu.memory_space<vmem>>, %arg18: memref<1x1xf32, #tpu.memory_space<vmem>>, %arg19: memref<2x1xf32, #tpu.memory_space<vmem>>) attributes {dimension_semantics = [], scalar_prefetch = 0 : i64, scratch_operands = 0 : i64, tpu.core_type = #tpu.core_type<tc>} {
    %c0 = arith.constant 0 : index
    %c0_0 = arith.constant 0 : index
    %0 = vector.load %arg0[%c0, %c0_0] : memref<16x16xf32, #tpu.memory_space<vmem>>, vector<16x16xf32>
    %c0_1 = arith.constant 0 : index
    %c0_2 = arith.constant 0 : index
    %1 = vector.load %arg1[%c0_1, %c0_2] : memref<16x32xf32, #tpu.memory_space<vmem>>, vector<16x32xf32>
    %cst = arith.constant dense<0.000000e+00> : vector<16x32xf32>
    %2 = tpu.matmul %0, %1, %cst {dimension_numbers = #tpu.dot_dimension_numbers<[1], [0], [0], [1], [0, 0, 1, 1], [], []>} : vector<16x16xf32>, vector<16x32xf32>, vector<16x32xf32> -> vector<16x32xf32>
    %c0_3 = arith.constant 0 : index
    %c0_4 = arith.constant 0 : index
    %3 = vector.load %arg2[%c0_3, %c0_4] : memref<1x32xf32, #tpu.memory_space<vmem>>, vector<1x32xf32>
    %4 = vector.broadcast %3 : vector<1x32xf32> to vector<16x32xf32>
    %5 = arith.addf %2, %4 : vector<16x32xf32>
    %c0_5 = arith.constant 0 : index
    %c0_6 = arith.constant 0 : index
    %c0_7 = arith.constant 0 : index
    %6 = vector.load %arg3[%c0_5, %c0_6, %c0_7] : memref<2x32x96xf32, #tpu.memory_space<vmem>>, vector<1x32x96xf32>
    %7 = vector.shape_cast %6 : vector<1x32x96xf32> to vector<32x96xf32>
    %cst_8 = arith.constant dense<0.000000e+00> : vector<16x96xf32>
    %8 = tpu.matmul %5, %7, %cst_8 {dimension_numbers = #tpu.dot_dimension_numbers<[1], [0], [0], [1], [0, 0, 1, 1], [], []>} : vector<16x32xf32>, vector<32x96xf32>, vector<16x96xf32> -> vector<16x96xf32>
    %c0_9 = arith.constant 0 : index
    %c0_10 = arith.constant 0 : index
    %c0_11 = arith.constant 0 : index
    %9 = vector.load %arg4[%c0_9, %c0_10, %c0_11] : memref<2x1x96xf32, #tpu.memory_space<vmem>>, vector<1x1x96xf32>
    %10 = vector.shape_cast %9 : vector<1x1x96xf32> to vector<1x96xf32>
    %11 = vector.broadcast %10 : vector<1x96xf32> to vector<16x96xf32>
    %12 = arith.addf %8, %11 : vector<16x96xf32>
    %13 = vector.shape_cast %12 : vector<16x96xf32> to vector<2x8x96xf32>
    %14 = vector.extract_strided_slice %13 {offsets = [0, 0, 0], sizes = [2, 8, 8], strides = [1, 1, 1]} : vector<2x8x96xf32> to vector<2x8x8xf32>
    %15 = vector.extract_strided_slice %13 {offsets = [0, 0, 32], sizes = [2, 8, 8], strides = [1, 1, 1]} : vector<2x8x96xf32> to vector<2x8x8xf32>
    %16 = vector.extract_strided_slice %13 {offsets = [0, 0, 64], sizes = [2, 8, 8], strides = [1, 1, 1]} : vector<2x8x96xf32> to vector<2x8x8xf32>
    "tpu.trace_start"() <{level = 10 : i32, message = "bqe,bke->bqk"}> : () -> ()
    %cst_12 = arith.constant dense<0.000000e+00> : vector<2x8x8xf32>
    %17 = tpu.matmul %14, %15, %cst_12 {dimension_numbers = #tpu.dot_dimension_numbers<[2], [2], [1], [1], [0, 0, 0, 1, 1, 1], [0], [0]>} : vector<2x8x8xf32>, vector<2x8x8xf32>, vector<2x8x8xf32> -> vector<2x8x8xf32>
    "tpu.trace_stop"() : () -> ()
    %cst_13 = arith.constant 0.353553385 : f32
    %18 = vector.broadcast %cst_13 : f32 to vector<2x8x8xf32>
    %19 = arith.mulf %17, %18 : vector<2x8x8xf32>
    %cst_14 = arith.constant dense<0xFF800000> : vector<2x8xf32>
    %20 = vector.multi_reduction <maximumf>, %19, %cst_14 [2] : vector<2x8x8xf32> to vector<2x8xf32>
    %21 = vector.shape_cast %20 : vector<2x8xf32> to vector<2x8x1xf32>
    %22 = vector.broadcast %21 : vector<2x8x1xf32> to vector<2x8x8xf32>
    %23 = arith.subf %19, %22 : vector<2x8x8xf32>
    %24 = math.exp %23 : vector<2x8x8xf32>
    %cst_15 = arith.constant dense<0.000000e+00> : vector<2x8xf32>
    %25 = vector.multi_reduction <add>, %24, %cst_15 [2] : vector<2x8x8xf32> to vector<2x8xf32>
    %26 = vector.shape_cast %25 : vector<2x8xf32> to vector<2x8x1xf32>
    %27 = tpu.reciprocal %26 {approx = true} : vector<2x8x1xf32> -> vector<2x8x1xf32>
    %28 = vector.broadcast %27 : vector<2x8x1xf32> to vector<2x8x8xf32>
    %29 = arith.mulf %24, %28 : vector<2x8x8xf32>
    "tpu.trace_start"() <{level = 10 : i32, message = "bqk,bke->bqe"}> : () -> ()
    %cst_16 = arith.constant dense<0.000000e+00> : vector<2x8x8xf32>
    %30 = tpu.matmul %29, %16, %cst_16 {dimension_numbers = #tpu.dot_dimension_numbers<[2], [1], [1], [2], [0, 0, 0, 1, 1, 2], [0], [0]>} : vector<2x8x8xf32>, vector<2x8x8xf32>, vector<2x8x8xf32> -> vector<2x8x8xf32>
    "tpu.trace_stop"() : () -> ()
    %31 = vector.extract_strided_slice %13 {offsets = [0, 0, 8], sizes = [2, 8, 8], strides = [1, 1, 1]} : vector<2x8x96xf32> to vector<2x8x8xf32>
    %32 = vector.extract_strided_slice %13 {offsets = [0, 0, 40], sizes = [2, 8, 8], strides = [1, 1, 1]} : vector<2x8x96xf32> to vector<2x8x8xf32>
    %33 = vector.extract_strided_slice %13 {offsets = [0, 0, 72], sizes = [2, 8, 8], strides = [1, 1, 1]} : vector<2x8x96xf32> to vector<2x8x8xf32>
    "tpu.trace_start"() <{level = 10 : i32, message = "bqe,bke->bqk"}> : () -> ()
    %cst_17 = arith.constant dense<0.000000e+00> : vector<2x8x8xf32>
    %34 = tpu.matmul %31, %32, %cst_17 {dimension_numbers = #tpu.dot_dimension_numbers<[2], [2], [1], [1], [0, 0, 0, 1, 1, 1], [0], [0]>} : vector<2x8x8xf32>, vector<2x8x8xf32>, vector<2x8x8xf32> -> vector<2x8x8xf32>
    "tpu.trace_stop"() : () -> ()
    %cst_18 = arith.constant 0.353553385 : f32
    %35 = vector.broadcast %cst_18 : f32 to vector<2x8x8xf32>
    %36 = arith.mulf %34, %35 : vector<2x8x8xf32>
    %cst_19 = arith.constant dense<0xFF800000> : vector<2x8xf32>
    %37 = vector.multi_reduction <maximumf>, %36, %cst_19 [2] : vector<2x8x8xf32> to vector<2x8xf32>
    %38 = vector.shape_cast %37 : vector<2x8xf32> to vector<2x8x1xf32>
    %39 = vector.broadcast %38 : vector<2x8x1xf32> to vector<2x8x8xf32>
    %40 = arith.subf %36, %39 : vector<2x8x8xf32>
    %41 = math.exp %40 : vector<2x8x8xf32>
    %cst_20 = arith.constant dense<0.000000e+00> : vector<2x8xf32>
    %42 = vector.multi_reduction <add>, %41, %cst_20 [2] : vector<2x8x8xf32> to vector<2x8xf32>
    %43 = vector.shape_cast %42 : vector<2x8xf32> to vector<2x8x1xf32>
    %44 = tpu.reciprocal %43 {approx = true} : vector<2x8x1xf32> -> vector<2x8x1xf32>
    %45 = vector.broadcast %44 : vector<2x8x1xf32> to vector<2x8x8xf32>
    %46 = arith.mulf %41, %45 : vector<2x8x8xf32>
    "tpu.trace_start"() <{level = 10 : i32, message = "bqk,bke->bqe"}> : () -> ()
    %cst_21 = arith.constant dense<0.000000e+00> : vector<2x8x8xf32>
    %47 = tpu.matmul %46, %33, %cst_21 {dimension_numbers = #tpu.dot_dimension_numbers<[2], [1], [1], [2], [0, 0, 0, 1, 1, 2], [0], [0]>} : vector<2x8x8xf32>, vector<2x8x8xf32>, vector<2x8x8xf32> -> vector<2x8x8xf32>
    "tpu.trace_stop"() : () -> ()
    %48 = vector.extract_strided_slice %13 {offsets = [0, 0, 16], sizes = [2, 8, 8], strides = [1, 1, 1]} : vector<2x8x96xf32> to vector<2x8x8xf32>
    %49 = vector.extract_strided_slice %13 {offsets = [0, 0, 48], sizes = [2, 8, 8], strides = [1, 1, 1]} : vector<2x8x96xf32> to vector<2x8x8xf32>
    %50 = vector.extract_strided_slice %13 {offsets = [0, 0, 80], sizes = [2, 8, 8], strides = [1, 1, 1]} : vector<2x8x96xf32> to vector<2x8x8xf32>
    "tpu.trace_start"() <{level = 10 : i32, message = "bqe,bke->bqk"}> : () -> ()
    %cst_22 = arith.constant dense<0.000000e+00> : vector<2x8x8xf32>
    %51 = tpu.matmul %48, %49, %cst_22 {dimension_numbers = #tpu.dot_dimension_numbers<[2], [2], [1], [1], [0, 0, 0, 1, 1, 1], [0], [0]>} : vector<2x8x8xf32>, vector<2x8x8xf32>, vector<2x8x8xf32> -> vector<2x8x8xf32>
    "tpu.trace_stop"() : () -> ()
    %cst_23 = arith.constant 0.353553385 : f32
    %52 = vector.broadcast %cst_23 : f32 to vector<2x8x8xf32>
    %53 = arith.mulf %51, %52 : vector<2x8x8xf32>
    %cst_24 = arith.constant dense<0xFF800000> : vector<2x8xf32>
    %54 = vector.multi_reduction <maximumf>, %53, %cst_24 [2] : vector<2x8x8xf32> to vector<2x8xf32>
    %55 = vector.shape_cast %54 : vector<2x8xf32> to vector<2x8x1xf32>
    %56 = vector.broadcast %55 : vector<2x8x1xf32> to vector<2x8x8xf32>
    %57 = arith.subf %53, %56 : vector<2x8x8xf32>
    %58 = math.exp %57 : vector<2x8x8xf32>
    %cst_25 = arith.constant dense<0.000000e+00> : vector<2x8xf32>
    %59 = vector.multi_reduction <add>, %58, %cst_25 [2] : vector<2x8x8xf32> to vector<2x8xf32>
    %60 = vector.shape_cast %59 : vector<2x8xf32> to vector<2x8x1xf32>
    %61 = tpu.reciprocal %60 {approx = true} : vector<2x8x1xf32> -> vector<2x8x1xf32>
    %62 = vector.broadcast %61 : vector<2x8x1xf32> to vector<2x8x8xf32>
    %63 = arith.mulf %58, %62 : vector<2x8x8xf32>
    "tpu.trace_start"() <{level = 10 : i32, message = "bqk,bke->bqe"}> : () -> ()
    %cst_26 = arith.constant dense<0.000000e+00> : vector<2x8x8xf32>
    %64 = tpu.matmul %63, %50, %cst_26 {dimension_numbers = #tpu.dot_dimension_numbers<[2], [1], [1], [2], [0, 0, 0, 1, 1, 2], [0], [0]>} : vector<2x8x8xf32>, vector<2x8x8xf32>, vector<2x8x8xf32> -> vector<2x8x8xf32>
    "tpu.trace_stop"() : () -> ()
    %65 = vector.extract_strided_slice %13 {offsets = [0, 0, 24], sizes = [2, 8, 8], strides = [1, 1, 1]} : vector<2x8x96xf32> to vector<2x8x8xf32>
    %66 = vector.extract_strided_slice %13 {offsets = [0, 0, 56], sizes = [2, 8, 8], strides = [1, 1, 1]} : vector<2x8x96xf32> to vector<2x8x8xf32>
    %67 = vector.extract_strided_slice %13 {offsets = [0, 0, 88], sizes = [2, 8, 8], strides = [1, 1, 1]} : vector<2x8x96xf32> to vector<2x8x8xf32>
    "tpu.trace_start"() <{level = 10 : i32, message = "bqe,bke->bqk"}> : () -> ()
    %cst_27 = arith.constant dense<0.000000e+00> : vector<2x8x8xf32>
    %68 = tpu.matmul %65, %66, %cst_27 {dimension_numbers = #tpu.dot_dimension_numbers<[2], [2], [1], [1], [0, 0, 0, 1, 1, 1], [0], [0]>} : vector<2x8x8xf32>, vector<2x8x8xf32>, vector<2x8x8xf32> -> vector<2x8x8xf32>
    "tpu.trace_stop"() : () -> ()
    %cst_28 = arith.constant 0.353553385 : f32
    %69 = vector.broadcast %cst_28 : f32 to vector<2x8x8xf32>
    %70 = arith.mulf %68, %69 : vector<2x8x8xf32>
    %cst_29 = arith.constant dense<0xFF800000> : vector<2x8xf32>
    %71 = vector.multi_reduction <maximumf>, %70, %cst_29 [2] : vector<2x8x8xf32> to vector<2x8xf32>
    %72 = vector.shape_cast %71 : vector<2x8xf32> to vector<2x8x1xf32>
    %73 = vector.broadcast %72 : vector<2x8x1xf32> to vector<2x8x8xf32>
    %74 = arith.subf %70, %73 : vector<2x8x8xf32>
    %75 = math.exp %74 : vector<2x8x8xf32>
    %cst_30 = arith.constant dense<0.000000e+00> : vector<2x8xf32>
    %76 = vector.multi_reduction <add>, %75, %cst_30 [2] : vector<2x8x8xf32> to vector<2x8xf32>
    %77 = vector.shape_cast %76 : vector<2x8xf32> to vector<2x8x1xf32>
    %78 = tpu.reciprocal %77 {approx = true} : vector<2x8x1xf32> -> vector<2x8x1xf32>
    %79 = vector.broadcast %78 : vector<2x8x1xf32> to vector<2x8x8xf32>
    %80 = arith.mulf %75, %79 : vector<2x8x8xf32>
    "tpu.trace_start"() <{level = 10 : i32, message = "bqk,bke->bqe"}> : () -> ()
    %cst_31 = arith.constant dense<0.000000e+00> : vector<2x8x8xf32>
    %81 = tpu.matmul %80, %67, %cst_31 {dimension_numbers = #tpu.dot_dimension_numbers<[2], [1], [1], [2], [0, 0, 0, 1, 1, 2], [0], [0]>} : vector<2x8x8xf32>, vector<2x8x8xf32>, vector<2x8x8xf32> -> vector<2x8x8xf32>
    "tpu.trace_stop"() : () -> ()
    %82 = tpu.concatenate %30, %47, %64, %81 in 2 : vector<2x8x8xf32>, vector<2x8x8xf32>, vector<2x8x8xf32>, vector<2x8x8xf32> -> vector<2x8x32xf32>
    %83 = vector.shape_cast %82 : vector<2x8x32xf32> to vector<16x32xf32>
    %c0_32 = arith.constant 0 : index
    %c0_33 = arith.constant 0 : index
    %c0_34 = arith.constant 0 : index
    %84 = vector.load %arg5[%c0_32, %c0_33, %c0_34] : memref<2x32x32xf32, #tpu.memory_space<vmem>>, vector<1x32x32xf32>
    %85 = vector.shape_cast %84 : vector<1x32x32xf32> to vector<32x32xf32>
    %cst_35 = arith.constant dense<0.000000e+00> : vector<16x32xf32>
    %86 = tpu.matmul %83, %85, %cst_35 {dimension_numbers = #tpu.dot_dimension_numbers<[1], [0], [0], [1], [0, 0, 1, 1], [], []>} : vector<16x32xf32>, vector<32x32xf32>, vector<16x32xf32> -> vector<16x32xf32>
    %c0_36 = arith.constant 0 : index
    %c0_37 = arith.constant 0 : index
    %c0_38 = arith.constant 0 : index
    %87 = vector.load %arg6[%c0_36, %c0_37, %c0_38] : memref<2x1x32xf32, #tpu.memory_space<vmem>>, vector<1x1x32xf32>
    %88 = vector.shape_cast %87 : vector<1x1x32xf32> to vector<1x32xf32>
    %89 = vector.broadcast %88 : vector<1x32xf32> to vector<16x32xf32>
    %90 = arith.addf %86, %89 : vector<16x32xf32>
    %91 = arith.addf %5, %90 : vector<16x32xf32>
    %c0_39 = arith.constant 0 : index
    %c0_40 = arith.constant 0 : index
    %c0_41 = arith.constant 0 : index
    %92 = vector.load %arg7[%c0_39, %c0_40, %c0_41] : memref<2x1x32xf32, #tpu.memory_space<vmem>>, vector<1x1x32xf32>
    %93 = vector.shape_cast %92 : vector<1x1x32xf32> to vector<1x32xf32>
    %c0_42 = arith.constant 0 : index
    %c0_43 = arith.constant 0 : index
    %c0_44 = arith.constant 0 : index
    %94 = vector.load %arg8[%c0_42, %c0_43, %c0_44] : memref<2x1x32xf32, #tpu.memory_space<vmem>>, vector<1x1x32xf32>
    %95 = vector.shape_cast %94 : vector<1x1x32xf32> to vector<1x32xf32>
    %cst_45 = arith.constant dense<0.000000e+00> : vector<16xf32>
    %96 = vector.multi_reduction <add>, %91, %cst_45 [1] : vector<16x32xf32> to vector<16xf32>
    %97 = vector.shape_cast %96 : vector<16xf32> to vector<16x1xf32>
    %cst_46 = arith.constant 3.200000e+01 : f32
    %98 = vector.broadcast %cst_46 : f32 to vector<16x1xf32>
    %99 = arith.divf %97, %98 : vector<16x1xf32>
    %100 = arith.mulf %91, %91 : vector<16x32xf32>
    %cst_47 = arith.constant dense<0.000000e+00> : vector<16xf32>
    %101 = vector.multi_reduction <add>, %100, %cst_47 [1] : vector<16x32xf32> to vector<16xf32>
    %102 = vector.shape_cast %101 : vector<16xf32> to vector<16x1xf32>
    %cst_48 = arith.constant 3.200000e+01 : f32
    %103 = vector.broadcast %cst_48 : f32 to vector<16x1xf32>
    %104 = arith.divf %102, %103 : vector<16x1xf32>
    %105 = arith.mulf %99, %99 : vector<16x1xf32>
    %106 = arith.subf %104, %105 : vector<16x1xf32>
    %107 = vector.broadcast %99 : vector<16x1xf32> to vector<16x32xf32>
    %108 = arith.subf %91, %107 : vector<16x32xf32>
    %cst_49 = arith.constant 9.99999974E-6 : f32
    %109 = vector.broadcast %cst_49 : f32 to vector<16x1xf32>
    %110 = arith.addf %106, %109 : vector<16x1xf32>
    %111 = math.rsqrt %110 : vector<16x1xf32>
    %112 = vector.broadcast %111 : vector<16x1xf32> to vector<16x32xf32>
    %113 = arith.mulf %108, %112 : vector<16x32xf32>
    %114 = vector.broadcast %93 : vector<1x32xf32> to vector<16x32xf32>
    %115 = arith.mulf %113, %114 : vector<16x32xf32>
    %116 = vector.broadcast %95 : vector<1x32xf32> to vector<16x32xf32>
    %117 = arith.addf %115, %116 : vector<16x32xf32>
    %c0_50 = arith.constant 0 : index
    %c0_51 = arith.constant 0 : index
    %c0_52 = arith.constant 0 : index
    %118 = vector.load %arg9[%c0_50, %c0_51, %c0_52] : memref<2x32x64xf32, #tpu.memory_space<vmem>>, vector<1x32x64xf32>
    %119 = vector.shape_cast %118 : vector<1x32x64xf32> to vector<32x64xf32>
    %cst_53 = arith.constant dense<0.000000e+00> : vector<16x64xf32>
    %120 = tpu.matmul %117, %119, %cst_53 {dimension_numbers = #tpu.dot_dimension_numbers<[1], [0], [0], [1], [0, 0, 1, 1], [], []>} : vector<16x32xf32>, vector<32x64xf32>, vector<16x64xf32> -> vector<16x64xf32>
    %c0_54 = arith.constant 0 : index
    %c0_55 = arith.constant 0 : index
    %c0_56 = arith.constant 0 : index
    %121 = vector.load %arg10[%c0_54, %c0_55, %c0_56] : memref<2x1x64xf32, #tpu.memory_space<vmem>>, vector<1x1x64xf32>
    %122 = vector.shape_cast %121 : vector<1x1x64xf32> to vector<1x64xf32>
    %123 = vector.broadcast %122 : vector<1x64xf32> to vector<16x64xf32>
    %124 = arith.addf %120, %123 : vector<16x64xf32>
    %cst_57 = arith.constant 0.000000e+00 : f32
    %125 = vector.broadcast %cst_57 : f32 to vector<16x64xf32>
    %126 = arith.maximumf %124, %125 : vector<16x64xf32>
    %c0_58 = arith.constant 0 : index
    %c0_59 = arith.constant 0 : index
    %c0_60 = arith.constant 0 : index
    %127 = vector.load %arg11[%c0_58, %c0_59, %c0_60] : memref<2x64x32xf32, #tpu.memory_space<vmem>>, vector<1x64x32xf32>
    %128 = vector.shape_cast %127 : vector<1x64x32xf32> to vector<64x32xf32>
    %cst_61 = arith.constant dense<0.000000e+00> : vector<16x32xf32>
    %129 = tpu.matmul %126, %128, %cst_61 {dimension_numbers = #tpu.dot_dimension_numbers<[1], [0], [0], [1], [0, 0, 1, 1], [], []>} : vector<16x64xf32>, vector<64x32xf32>, vector<16x32xf32> -> vector<16x32xf32>
    %c0_62 = arith.constant 0 : index
    %c0_63 = arith.constant 0 : index
    %c0_64 = arith.constant 0 : index
    %130 = vector.load %arg12[%c0_62, %c0_63, %c0_64] : memref<2x1x32xf32, #tpu.memory_space<vmem>>, vector<1x1x32xf32>
    %131 = vector.shape_cast %130 : vector<1x1x32xf32> to vector<1x32xf32>
    %132 = vector.broadcast %131 : vector<1x32xf32> to vector<16x32xf32>
    %133 = arith.addf %129, %132 : vector<16x32xf32>
    %134 = arith.addf %117, %133 : vector<16x32xf32>
    %c0_65 = arith.constant 0 : index
    %c0_66 = arith.constant 0 : index
    %c0_67 = arith.constant 0 : index
    %135 = vector.load %arg13[%c0_65, %c0_66, %c0_67] : memref<2x1x32xf32, #tpu.memory_space<vmem>>, vector<1x1x32xf32>
    %136 = vector.shape_cast %135 : vector<1x1x32xf32> to vector<1x32xf32>
    %c0_68 = arith.constant 0 : index
    %c0_69 = arith.constant 0 : index
    %c0_70 = arith.constant 0 : index
    %137 = vector.load %arg14[%c0_68, %c0_69, %c0_70] : memref<2x1x32xf32, #tpu.memory_space<vmem>>, vector<1x1x32xf32>
    %138 = vector.shape_cast %137 : vector<1x1x32xf32> to vector<1x32xf32>
    %cst_71 = arith.constant dense<0.000000e+00> : vector<16xf32>
    %139 = vector.multi_reduction <add>, %134, %cst_71 [1] : vector<16x32xf32> to vector<16xf32>
    %140 = vector.shape_cast %139 : vector<16xf32> to vector<16x1xf32>
    %cst_72 = arith.constant 3.200000e+01 : f32
    %141 = vector.broadcast %cst_72 : f32 to vector<16x1xf32>
    %142 = arith.divf %140, %141 : vector<16x1xf32>
    %143 = arith.mulf %134, %134 : vector<16x32xf32>
    %cst_73 = arith.constant dense<0.000000e+00> : vector<16xf32>
    %144 = vector.multi_reduction <add>, %143, %cst_73 [1] : vector<16x32xf32> to vector<16xf32>
    %145 = vector.shape_cast %144 : vector<16xf32> to vector<16x1xf32>
    %cst_74 = arith.constant 3.200000e+01 : f32
    %146 = vector.broadcast %cst_74 : f32 to vector<16x1xf32>
    %147 = arith.divf %145, %146 : vector<16x1xf32>
    %148 = arith.mulf %142, %142 : vector<16x1xf32>
    %149 = arith.subf %147, %148 : vector<16x1xf32>
    %150 = vector.broadcast %142 : vector<16x1xf32> to vector<16x32xf32>
    %151 = arith.subf %134, %150 : vector<16x32xf32>
    %cst_75 = arith.constant 9.99999974E-6 : f32
    %152 = vector.broadcast %cst_75 : f32 to vector<16x1xf32>
    %153 = arith.addf %149, %152 : vector<16x1xf32>
    %154 = math.rsqrt %153 : vector<16x1xf32>
    %155 = vector.broadcast %154 : vector<16x1xf32> to vector<16x32xf32>
    %156 = arith.mulf %151, %155 : vector<16x32xf32>
    %157 = vector.broadcast %136 : vector<1x32xf32> to vector<16x32xf32>
    %158 = arith.mulf %156, %157 : vector<16x32xf32>
    %159 = vector.broadcast %138 : vector<1x32xf32> to vector<16x32xf32>
    %160 = arith.addf %158, %159 : vector<16x32xf32>
    %c1 = arith.constant 1 : index
    %c0_76 = arith.constant 0 : index
    %c0_77 = arith.constant 0 : index
    %161 = vector.load %arg3[%c1, %c0_76, %c0_77] : memref<2x32x96xf32, #tpu.memory_space<vmem>>, vector<1x32x96xf32>
    %162 = vector.shape_cast %161 : vector<1x32x96xf32> to vector<32x96xf32>
    %cst_78 = arith.constant dense<0.000000e+00> : vector<16x96xf32>
    %163 = tpu.matmul %160, %162, %cst_78 {dimension_numbers = #tpu.dot_dimension_numbers<[1], [0], [0], [1], [0, 0, 1, 1], [], []>} : vector<16x32xf32>, vector<32x96xf32>, vector<16x96xf32> -> vector<16x96xf32>
    %c1_79 = arith.constant 1 : index
    %c0_80 = arith.constant 0 : index
    %c0_81 = arith.constant 0 : index
    %164 = vector.load %arg4[%c1_79, %c0_80, %c0_81] : memref<2x1x96xf32, #tpu.memory_space<vmem>>, vector<1x1x96xf32>
    %165 = vector.shape_cast %164 : vector<1x1x96xf32> to vector<1x96xf32>
    %166 = vector.broadcast %165 : vector<1x96xf32> to vector<16x96xf32>
    %167 = arith.addf %163, %166 : vector<16x96xf32>
    %168 = vector.shape_cast %167 : vector<16x96xf32> to vector<2x8x96xf32>
    %169 = vector.extract_strided_slice %168 {offsets = [0, 0, 0], sizes = [2, 8, 8], strides = [1, 1, 1]} : vector<2x8x96xf32> to vector<2x8x8xf32>
    %170 = vector.extract_strided_slice %168 {offsets = [0, 0, 32], sizes = [2, 8, 8], strides = [1, 1, 1]} : vector<2x8x96xf32> to vector<2x8x8xf32>
    %171 = vector.extract_strided_slice %168 {offsets = [0, 0, 64], sizes = [2, 8, 8], strides = [1, 1, 1]} : vector<2x8x96xf32> to vector<2x8x8xf32>
    "tpu.trace_start"() <{level = 10 : i32, message = "bqe,bke->bqk"}> : () -> ()
    %cst_82 = arith.constant dense<0.000000e+00> : vector<2x8x8xf32>
    %172 = tpu.matmul %169, %170, %cst_82 {dimension_numbers = #tpu.dot_dimension_numbers<[2], [2], [1], [1], [0, 0, 0, 1, 1, 1], [0], [0]>} : vector<2x8x8xf32>, vector<2x8x8xf32>, vector<2x8x8xf32> -> vector<2x8x8xf32>
    "tpu.trace_stop"() : () -> ()
    %cst_83 = arith.constant 0.353553385 : f32
    %173 = vector.broadcast %cst_83 : f32 to vector<2x8x8xf32>
    %174 = arith.mulf %172, %173 : vector<2x8x8xf32>
    %cst_84 = arith.constant dense<0xFF800000> : vector<2x8xf32>
    %175 = vector.multi_reduction <maximumf>, %174, %cst_84 [2] : vector<2x8x8xf32> to vector<2x8xf32>
    %176 = vector.shape_cast %175 : vector<2x8xf32> to vector<2x8x1xf32>
    %177 = vector.broadcast %176 : vector<2x8x1xf32> to vector<2x8x8xf32>
    %178 = arith.subf %174, %177 : vector<2x8x8xf32>
    %179 = math.exp %178 : vector<2x8x8xf32>
    %cst_85 = arith.constant dense<0.000000e+00> : vector<2x8xf32>
    %180 = vector.multi_reduction <add>, %179, %cst_85 [2] : vector<2x8x8xf32> to vector<2x8xf32>
    %181 = vector.shape_cast %180 : vector<2x8xf32> to vector<2x8x1xf32>
    %182 = tpu.reciprocal %181 {approx = true} : vector<2x8x1xf32> -> vector<2x8x1xf32>
    %183 = vector.broadcast %182 : vector<2x8x1xf32> to vector<2x8x8xf32>
    %184 = arith.mulf %179, %183 : vector<2x8x8xf32>
    "tpu.trace_start"() <{level = 10 : i32, message = "bqk,bke->bqe"}> : () -> ()
    %cst_86 = arith.constant dense<0.000000e+00> : vector<2x8x8xf32>
    %185 = tpu.matmul %184, %171, %cst_86 {dimension_numbers = #tpu.dot_dimension_numbers<[2], [1], [1], [2], [0, 0, 0, 1, 1, 2], [0], [0]>} : vector<2x8x8xf32>, vector<2x8x8xf32>, vector<2x8x8xf32> -> vector<2x8x8xf32>
    "tpu.trace_stop"() : () -> ()
    %186 = vector.extract_strided_slice %168 {offsets = [0, 0, 8], sizes = [2, 8, 8], strides = [1, 1, 1]} : vector<2x8x96xf32> to vector<2x8x8xf32>
    %187 = vector.extract_strided_slice %168 {offsets = [0, 0, 40], sizes = [2, 8, 8], strides = [1, 1, 1]} : vector<2x8x96xf32> to vector<2x8x8xf32>
    %188 = vector.extract_strided_slice %168 {offsets = [0, 0, 72], sizes = [2, 8, 8], strides = [1, 1, 1]} : vector<2x8x96xf32> to vector<2x8x8xf32>
    "tpu.trace_start"() <{level = 10 : i32, message = "bqe,bke->bqk"}> : () -> ()
    %cst_87 = arith.constant dense<0.000000e+00> : vector<2x8x8xf32>
    %189 = tpu.matmul %186, %187, %cst_87 {dimension_numbers = #tpu.dot_dimension_numbers<[2], [2], [1], [1], [0, 0, 0, 1, 1, 1], [0], [0]>} : vector<2x8x8xf32>, vector<2x8x8xf32>, vector<2x8x8xf32> -> vector<2x8x8xf32>
    "tpu.trace_stop"() : () -> ()
    %cst_88 = arith.constant 0.353553385 : f32
    %190 = vector.broadcast %cst_88 : f32 to vector<2x8x8xf32>
    %191 = arith.mulf %189, %190 : vector<2x8x8xf32>
    %cst_89 = arith.constant dense<0xFF800000> : vector<2x8xf32>
    %192 = vector.multi_reduction <maximumf>, %191, %cst_89 [2] : vector<2x8x8xf32> to vector<2x8xf32>
    %193 = vector.shape_cast %192 : vector<2x8xf32> to vector<2x8x1xf32>
    %194 = vector.broadcast %193 : vector<2x8x1xf32> to vector<2x8x8xf32>
    %195 = arith.subf %191, %194 : vector<2x8x8xf32>
    %196 = math.exp %195 : vector<2x8x8xf32>
    %cst_90 = arith.constant dense<0.000000e+00> : vector<2x8xf32>
    %197 = vector.multi_reduction <add>, %196, %cst_90 [2] : vector<2x8x8xf32> to vector<2x8xf32>
    %198 = vector.shape_cast %197 : vector<2x8xf32> to vector<2x8x1xf32>
    %199 = tpu.reciprocal %198 {approx = true} : vector<2x8x1xf32> -> vector<2x8x1xf32>
    %200 = vector.broadcast %199 : vector<2x8x1xf32> to vector<2x8x8xf32>
    %201 = arith.mulf %196, %200 : vector<2x8x8xf32>
    "tpu.trace_start"() <{level = 10 : i32, message = "bqk,bke->bqe"}> : () -> ()
    %cst_91 = arith.constant dense<0.000000e+00> : vector<2x8x8xf32>
    %202 = tpu.matmul %201, %188, %cst_91 {dimension_numbers = #tpu.dot_dimension_numbers<[2], [1], [1], [2], [0, 0, 0, 1, 1, 2], [0], [0]>} : vector<2x8x8xf32>, vector<2x8x8xf32>, vector<2x8x8xf32> -> vector<2x8x8xf32>
    "tpu.trace_stop"() : () -> ()
    %203 = vector.extract_strided_slice %168 {offsets = [0, 0, 16], sizes = [2, 8, 8], strides = [1, 1, 1]} : vector<2x8x96xf32> to vector<2x8x8xf32>
    %204 = vector.extract_strided_slice %168 {offsets = [0, 0, 48], sizes = [2, 8, 8], strides = [1, 1, 1]} : vector<2x8x96xf32> to vector<2x8x8xf32>
    %205 = vector.extract_strided_slice %168 {offsets = [0, 0, 80], sizes = [2, 8, 8], strides = [1, 1, 1]} : vector<2x8x96xf32> to vector<2x8x8xf32>
    "tpu.trace_start"() <{level = 10 : i32, message = "bqe,bke->bqk"}> : () -> ()
    %cst_92 = arith.constant dense<0.000000e+00> : vector<2x8x8xf32>
    %206 = tpu.matmul %203, %204, %cst_92 {dimension_numbers = #tpu.dot_dimension_numbers<[2], [2], [1], [1], [0, 0, 0, 1, 1, 1], [0], [0]>} : vector<2x8x8xf32>, vector<2x8x8xf32>, vector<2x8x8xf32> -> vector<2x8x8xf32>
    "tpu.trace_stop"() : () -> ()
    %cst_93 = arith.constant 0.353553385 : f32
    %207 = vector.broadcast %cst_93 : f32 to vector<2x8x8xf32>
    %208 = arith.mulf %206, %207 : vector<2x8x8xf32>
    %cst_94 = arith.constant dense<0xFF800000> : vector<2x8xf32>
    %209 = vector.multi_reduction <maximumf>, %208, %cst_94 [2] : vector<2x8x8xf32> to vector<2x8xf32>
    %210 = vector.shape_cast %209 : vector<2x8xf32> to vector<2x8x1xf32>
    %211 = vector.broadcast %210 : vector<2x8x1xf32> to vector<2x8x8xf32>
    %212 = arith.subf %208, %211 : vector<2x8x8xf32>
    %213 = math.exp %212 : vector<2x8x8xf32>
    %cst_95 = arith.constant dense<0.000000e+00> : vector<2x8xf32>
    %214 = vector.multi_reduction <add>, %213, %cst_95 [2] : vector<2x8x8xf32> to vector<2x8xf32>
    %215 = vector.shape_cast %214 : vector<2x8xf32> to vector<2x8x1xf32>
    %216 = tpu.reciprocal %215 {approx = true} : vector<2x8x1xf32> -> vector<2x8x1xf32>
    %217 = vector.broadcast %216 : vector<2x8x1xf32> to vector<2x8x8xf32>
    %218 = arith.mulf %213, %217 : vector<2x8x8xf32>
    "tpu.trace_start"() <{level = 10 : i32, message = "bqk,bke->bqe"}> : () -> ()
    %cst_96 = arith.constant dense<0.000000e+00> : vector<2x8x8xf32>
    %219 = tpu.matmul %218, %205, %cst_96 {dimension_numbers = #tpu.dot_dimension_numbers<[2], [1], [1], [2], [0, 0, 0, 1, 1, 2], [0], [0]>} : vector<2x8x8xf32>, vector<2x8x8xf32>, vector<2x8x8xf32> -> vector<2x8x8xf32>
    "tpu.trace_stop"() : () -> ()
    %220 = vector.extract_strided_slice %168 {offsets = [0, 0, 24], sizes = [2, 8, 8], strides = [1, 1, 1]} : vector<2x8x96xf32> to vector<2x8x8xf32>
    %221 = vector.extract_strided_slice %168 {offsets = [0, 0, 56], sizes = [2, 8, 8], strides = [1, 1, 1]} : vector<2x8x96xf32> to vector<2x8x8xf32>
    %222 = vector.extract_strided_slice %168 {offsets = [0, 0, 88], sizes = [2, 8, 8], strides = [1, 1, 1]} : vector<2x8x96xf32> to vector<2x8x8xf32>
    "tpu.trace_start"() <{level = 10 : i32, message = "bqe,bke->bqk"}> : () -> ()
    %cst_97 = arith.constant dense<0.000000e+00> : vector<2x8x8xf32>
    %223 = tpu.matmul %220, %221, %cst_97 {dimension_numbers = #tpu.dot_dimension_numbers<[2], [2], [1], [1], [0, 0, 0, 1, 1, 1], [0], [0]>} : vector<2x8x8xf32>, vector<2x8x8xf32>, vector<2x8x8xf32> -> vector<2x8x8xf32>
    "tpu.trace_stop"() : () -> ()
    %cst_98 = arith.constant 0.353553385 : f32
    %224 = vector.broadcast %cst_98 : f32 to vector<2x8x8xf32>
    %225 = arith.mulf %223, %224 : vector<2x8x8xf32>
    %cst_99 = arith.constant dense<0xFF800000> : vector<2x8xf32>
    %226 = vector.multi_reduction <maximumf>, %225, %cst_99 [2] : vector<2x8x8xf32> to vector<2x8xf32>
    %227 = vector.shape_cast %226 : vector<2x8xf32> to vector<2x8x1xf32>
    %228 = vector.broadcast %227 : vector<2x8x1xf32> to vector<2x8x8xf32>
    %229 = arith.subf %225, %228 : vector<2x8x8xf32>
    %230 = math.exp %229 : vector<2x8x8xf32>
    %cst_100 = arith.constant dense<0.000000e+00> : vector<2x8xf32>
    %231 = vector.multi_reduction <add>, %230, %cst_100 [2] : vector<2x8x8xf32> to vector<2x8xf32>
    %232 = vector.shape_cast %231 : vector<2x8xf32> to vector<2x8x1xf32>
    %233 = tpu.reciprocal %232 {approx = true} : vector<2x8x1xf32> -> vector<2x8x1xf32>
    %234 = vector.broadcast %233 : vector<2x8x1xf32> to vector<2x8x8xf32>
    %235 = arith.mulf %230, %234 : vector<2x8x8xf32>
    "tpu.trace_start"() <{level = 10 : i32, message = "bqk,bke->bqe"}> : () -> ()
    %cst_101 = arith.constant dense<0.000000e+00> : vector<2x8x8xf32>
    %236 = tpu.matmul %235, %222, %cst_101 {dimension_numbers = #tpu.dot_dimension_numbers<[2], [1], [1], [2], [0, 0, 0, 1, 1, 2], [0], [0]>} : vector<2x8x8xf32>, vector<2x8x8xf32>, vector<2x8x8xf32> -> vector<2x8x8xf32>
    "tpu.trace_stop"() : () -> ()
    %237 = tpu.concatenate %185, %202, %219, %236 in 2 : vector<2x8x8xf32>, vector<2x8x8xf32>, vector<2x8x8xf32>, vector<2x8x8xf32> -> vector<2x8x32xf32>
    %238 = vector.shape_cast %237 : vector<2x8x32xf32> to vector<16x32xf32>
    %c1_102 = arith.constant 1 : index
    %c0_103 = arith.constant 0 : index
    %c0_104 = arith.constant 0 : index
    %239 = vector.load %arg5[%c1_102, %c0_103, %c0_104] : memref<2x32x32xf32, #tpu.memory_space<vmem>>, vector<1x32x32xf32>
    %240 = vector.shape_cast %239 : vector<1x32x32xf32> to vector<32x32xf32>
    %cst_105 = arith.constant dense<0.000000e+00> : vector<16x32xf32>
    %241 = tpu.matmul %238, %240, %cst_105 {dimension_numbers = #tpu.dot_dimension_numbers<[1], [0], [0], [1], [0, 0, 1, 1], [], []>} : vector<16x32xf32>, vector<32x32xf32>, vector<16x32xf32> -> vector<16x32xf32>
    %c1_106 = arith.constant 1 : index
    %c0_107 = arith.constant 0 : index
    %c0_108 = arith.constant 0 : index
    %242 = vector.load %arg6[%c1_106, %c0_107, %c0_108] : memref<2x1x32xf32, #tpu.memory_space<vmem>>, vector<1x1x32xf32>
    %243 = vector.shape_cast %242 : vector<1x1x32xf32> to vector<1x32xf32>
    %244 = vector.broadcast %243 : vector<1x32xf32> to vector<16x32xf32>
    %245 = arith.addf %241, %244 : vector<16x32xf32>
    %246 = arith.addf %160, %245 : vector<16x32xf32>
    %c1_109 = arith.constant 1 : index
    %c0_110 = arith.constant 0 : index
    %c0_111 = arith.constant 0 : index
    %247 = vector.load %arg7[%c1_109, %c0_110, %c0_111] : memref<2x1x32xf32, #tpu.memory_space<vmem>>, vector<1x1x32xf32>
    %248 = vector.shape_cast %247 : vector<1x1x32xf32> to vector<1x32xf32>
    %c1_112 = arith.constant 1 : index
    %c0_113 = arith.constant 0 : index
    %c0_114 = arith.constant 0 : index
    %249 = vector.load %arg8[%c1_112, %c0_113, %c0_114] : memref<2x1x32xf32, #tpu.memory_space<vmem>>, vector<1x1x32xf32>
    %250 = vector.shape_cast %249 : vector<1x1x32xf32> to vector<1x32xf32>
    %cst_115 = arith.constant dense<0.000000e+00> : vector<16xf32>
    %251 = vector.multi_reduction <add>, %246, %cst_115 [1] : vector<16x32xf32> to vector<16xf32>
    %252 = vector.shape_cast %251 : vector<16xf32> to vector<16x1xf32>
    %cst_116 = arith.constant 3.200000e+01 : f32
    %253 = vector.broadcast %cst_116 : f32 to vector<16x1xf32>
    %254 = arith.divf %252, %253 : vector<16x1xf32>
    %255 = arith.mulf %246, %246 : vector<16x32xf32>
    %cst_117 = arith.constant dense<0.000000e+00> : vector<16xf32>
    %256 = vector.multi_reduction <add>, %255, %cst_117 [1] : vector<16x32xf32> to vector<16xf32>
    %257 = vector.shape_cast %256 : vector<16xf32> to vector<16x1xf32>
    %cst_118 = arith.constant 3.200000e+01 : f32
    %258 = vector.broadcast %cst_118 : f32 to vector<16x1xf32>
    %259 = arith.divf %257, %258 : vector<16x1xf32>
    %260 = arith.mulf %254, %254 : vector<16x1xf32>
    %261 = arith.subf %259, %260 : vector<16x1xf32>
    %262 = vector.broadcast %254 : vector<16x1xf32> to vector<16x32xf32>
    %263 = arith.subf %246, %262 : vector<16x32xf32>
    %cst_119 = arith.constant 9.99999974E-6 : f32
    %264 = vector.broadcast %cst_119 : f32 to vector<16x1xf32>
    %265 = arith.addf %261, %264 : vector<16x1xf32>
    %266 = math.rsqrt %265 : vector<16x1xf32>
    %267 = vector.broadcast %266 : vector<16x1xf32> to vector<16x32xf32>
    %268 = arith.mulf %263, %267 : vector<16x32xf32>
    %269 = vector.broadcast %248 : vector<1x32xf32> to vector<16x32xf32>
    %270 = arith.mulf %268, %269 : vector<16x32xf32>
    %271 = vector.broadcast %250 : vector<1x32xf32> to vector<16x32xf32>
    %272 = arith.addf %270, %271 : vector<16x32xf32>
    %c1_120 = arith.constant 1 : index
    %c0_121 = arith.constant 0 : index
    %c0_122 = arith.constant 0 : index
    %273 = vector.load %arg9[%c1_120, %c0_121, %c0_122] : memref<2x32x64xf32, #tpu.memory_space<vmem>>, vector<1x32x64xf32>
    %274 = vector.shape_cast %273 : vector<1x32x64xf32> to vector<32x64xf32>
    %cst_123 = arith.constant dense<0.000000e+00> : vector<16x64xf32>
    %275 = tpu.matmul %272, %274, %cst_123 {dimension_numbers = #tpu.dot_dimension_numbers<[1], [0], [0], [1], [0, 0, 1, 1], [], []>} : vector<16x32xf32>, vector<32x64xf32>, vector<16x64xf32> -> vector<16x64xf32>
    %c1_124 = arith.constant 1 : index
    %c0_125 = arith.constant 0 : index
    %c0_126 = arith.constant 0 : index
    %276 = vector.load %arg10[%c1_124, %c0_125, %c0_126] : memref<2x1x64xf32, #tpu.memory_space<vmem>>, vector<1x1x64xf32>
    %277 = vector.shape_cast %276 : vector<1x1x64xf32> to vector<1x64xf32>
    %278 = vector.broadcast %277 : vector<1x64xf32> to vector<16x64xf32>
    %279 = arith.addf %275, %278 : vector<16x64xf32>
    %cst_127 = arith.constant 0.000000e+00 : f32
    %280 = vector.broadcast %cst_127 : f32 to vector<16x64xf32>
    %281 = arith.maximumf %279, %280 : vector<16x64xf32>
    %c1_128 = arith.constant 1 : index
    %c0_129 = arith.constant 0 : index
    %c0_130 = arith.constant 0 : index
    %282 = vector.load %arg11[%c1_128, %c0_129, %c0_130] : memref<2x64x32xf32, #tpu.memory_space<vmem>>, vector<1x64x32xf32>
    %283 = vector.shape_cast %282 : vector<1x64x32xf32> to vector<64x32xf32>
    %cst_131 = arith.constant dense<0.000000e+00> : vector<16x32xf32>
    %284 = tpu.matmul %281, %283, %cst_131 {dimension_numbers = #tpu.dot_dimension_numbers<[1], [0], [0], [1], [0, 0, 1, 1], [], []>} : vector<16x64xf32>, vector<64x32xf32>, vector<16x32xf32> -> vector<16x32xf32>
    %c1_132 = arith.constant 1 : index
    %c0_133 = arith.constant 0 : index
    %c0_134 = arith.constant 0 : index
    %285 = vector.load %arg12[%c1_132, %c0_133, %c0_134] : memref<2x1x32xf32, #tpu.memory_space<vmem>>, vector<1x1x32xf32>
    %286 = vector.shape_cast %285 : vector<1x1x32xf32> to vector<1x32xf32>
    %287 = vector.broadcast %286 : vector<1x32xf32> to vector<16x32xf32>
    %288 = arith.addf %284, %287 : vector<16x32xf32>
    %289 = arith.addf %272, %288 : vector<16x32xf32>
    %c1_135 = arith.constant 1 : index
    %c0_136 = arith.constant 0 : index
    %c0_137 = arith.constant 0 : index
    %290 = vector.load %arg13[%c1_135, %c0_136, %c0_137] : memref<2x1x32xf32, #tpu.memory_space<vmem>>, vector<1x1x32xf32>
    %291 = vector.shape_cast %290 : vector<1x1x32xf32> to vector<1x32xf32>
    %c1_138 = arith.constant 1 : index
    %c0_139 = arith.constant 0 : index
    %c0_140 = arith.constant 0 : index
    %292 = vector.load %arg14[%c1_138, %c0_139, %c0_140] : memref<2x1x32xf32, #tpu.memory_space<vmem>>, vector<1x1x32xf32>
    %293 = vector.shape_cast %292 : vector<1x1x32xf32> to vector<1x32xf32>
    %cst_141 = arith.constant dense<0.000000e+00> : vector<16xf32>
    %294 = vector.multi_reduction <add>, %289, %cst_141 [1] : vector<16x32xf32> to vector<16xf32>
    %295 = vector.shape_cast %294 : vector<16xf32> to vector<16x1xf32>
    %cst_142 = arith.constant 3.200000e+01 : f32
    %296 = vector.broadcast %cst_142 : f32 to vector<16x1xf32>
    %297 = arith.divf %295, %296 : vector<16x1xf32>
    %298 = arith.mulf %289, %289 : vector<16x32xf32>
    %cst_143 = arith.constant dense<0.000000e+00> : vector<16xf32>
    %299 = vector.multi_reduction <add>, %298, %cst_143 [1] : vector<16x32xf32> to vector<16xf32>
    %300 = vector.shape_cast %299 : vector<16xf32> to vector<16x1xf32>
    %cst_144 = arith.constant 3.200000e+01 : f32
    %301 = vector.broadcast %cst_144 : f32 to vector<16x1xf32>
    %302 = arith.divf %300, %301 : vector<16x1xf32>
    %303 = arith.mulf %297, %297 : vector<16x1xf32>
    %304 = arith.subf %302, %303 : vector<16x1xf32>
    %305 = vector.broadcast %297 : vector<16x1xf32> to vector<16x32xf32>
    %306 = arith.subf %289, %305 : vector<16x32xf32>
    %cst_145 = arith.constant 9.99999974E-6 : f32
    %307 = vector.broadcast %cst_145 : f32 to vector<16x1xf32>
    %308 = arith.addf %304, %307 : vector<16x1xf32>
    %309 = math.rsqrt %308 : vector<16x1xf32>
    %310 = vector.broadcast %309 : vector<16x1xf32> to vector<16x32xf32>
    %311 = arith.mulf %306, %310 : vector<16x32xf32>
    %312 = vector.broadcast %291 : vector<1x32xf32> to vector<16x32xf32>
    %313 = arith.mulf %311, %312 : vector<16x32xf32>
    %314 = vector.broadcast %293 : vector<1x32xf32> to vector<16x32xf32>
    %315 = arith.addf %313, %314 : vector<16x32xf32>
    %316 = vector.shape_cast %315 : vector<16x32xf32> to vector<2x8x32xf32>
    %317 = vector.extract_strided_slice %316 {offsets = [0, 7, 0], sizes = [2, 1, 32], strides = [1, 1, 1]} : vector<2x8x32xf32> to vector<2x1x32xf32>
    %318 = vector.shape_cast %317 : vector<2x1x32xf32> to vector<2x32xf32>
    %c0_146 = arith.constant 0 : index
    %c0_147 = arith.constant 0 : index
    %319 = vector.load %arg15[%c0_146, %c0_147] : memref<1x32xf32, #tpu.memory_space<vmem>>, vector<1x32xf32>
    %c0_148 = arith.constant 0 : index
    %c0_149 = arith.constant 0 : index
    %320 = vector.load %arg16[%c0_148, %c0_149] : memref<1x32xf32, #tpu.memory_space<vmem>>, vector<1x32xf32>
    %cst_150 = arith.constant dense<0.000000e+00> : vector<2xf32>
    %321 = vector.multi_reduction <add>, %318, %cst_150 [1] : vector<2x32xf32> to vector<2xf32>
    %322 = vector.shape_cast %321 : vector<2xf32> to vector<2x1xf32>
    %cst_151 = arith.constant 3.200000e+01 : f32
    %323 = vector.broadcast %cst_151 : f32 to vector<2x1xf32>
    %324 = arith.divf %322, %323 : vector<2x1xf32>
    %325 = arith.mulf %318, %318 : vector<2x32xf32>
    %cst_152 = arith.constant dense<0.000000e+00> : vector<2xf32>
    %326 = vector.multi_reduction <add>, %325, %cst_152 [1] : vector<2x32xf32> to vector<2xf32>
    %327 = vector.shape_cast %326 : vector<2xf32> to vector<2x1xf32>
    %cst_153 = arith.constant 3.200000e+01 : f32
    %328 = vector.broadcast %cst_153 : f32 to vector<2x1xf32>
    %329 = arith.divf %327, %328 : vector<2x1xf32>
    %330 = arith.mulf %324, %324 : vector<2x1xf32>
    %331 = arith.subf %329, %330 : vector<2x1xf32>
    %332 = vector.broadcast %324 : vector<2x1xf32> to vector<2x32xf32>
    %333 = arith.subf %318, %332 : vector<2x32xf32>
    %cst_154 = arith.constant 9.99999974E-6 : f32
    %334 = vector.broadcast %cst_154 : f32 to vector<2x1xf32>
    %335 = arith.addf %331, %334 : vector<2x1xf32>
    %336 = math.rsqrt %335 : vector<2x1xf32>
    %337 = vector.broadcast %336 : vector<2x1xf32> to vector<2x32xf32>
    %338 = arith.mulf %333, %337 : vector<2x32xf32>
    %339 = vector.broadcast %319 : vector<1x32xf32> to vector<2x32xf32>
    %340 = arith.mulf %338, %339 : vector<2x32xf32>
    %341 = vector.broadcast %320 : vector<1x32xf32> to vector<2x32xf32>
    %342 = arith.addf %340, %341 : vector<2x32xf32>
    %c0_155 = arith.constant 0 : index
    %c0_156 = arith.constant 0 : index
    %343 = vector.load %arg17[%c0_155, %c0_156] : memref<32x1xf32, #tpu.memory_space<vmem>>, vector<32x1xf32>
    %cst_157 = arith.constant dense<0.000000e+00> : vector<2x1xf32>
    %344 = tpu.matmul %342, %343, %cst_157 {dimension_numbers = #tpu.dot_dimension_numbers<[1], [0], [0], [1], [0, 0, 1, 1], [], []>} : vector<2x32xf32>, vector<32x1xf32>, vector<2x1xf32> -> vector<2x1xf32>
    %c0_158 = arith.constant 0 : index
    %c0_159 = arith.constant 0 : index
    %345 = vector.load %arg18[%c0_158, %c0_159] : memref<1x1xf32, #tpu.memory_space<vmem>>, vector<1x1xf32>
    %346 = vector.broadcast %345 : vector<1x1xf32> to vector<2x1xf32>
    %347 = arith.addf %344, %346 : vector<2x1xf32>
    %c0_160 = arith.constant 0 : index
    %c0_161 = arith.constant 0 : index
    %348 = vector.load %arg19[%c0_160, %c0_161] : memref<2x1xf32, #tpu.memory_space<vmem>>, vector<2x1xf32>
    tpu.vector_store %arg19[%c0_160, %c0_161], %347 {strides = array<i32>} : memref<2x1xf32, #tpu.memory_space<vmem>>, vector<2x1xf32>,
    return
  }
}

</mosaic_0001>

<llo_original>
// kernel: transformer_forward.1
$region0: #{transformer_forward.1}
  #allocation0 [shape = 'u32[]', space=smem, size = 0x4, offset = 0x4, fixed_abs, tag = 'smem constant byte address 0x4 - core index']
  #allocation1 [shape = 'u32[144,128]{1,0:T(1,128)}', space=vmem, size = 0x12000, scoped, tag = 'internal scratch']
  #allocation2 [shape = 'f32[1,1]{1,0:T(1,128)S(1)}', space=vmem, size = 0x200, scoped, tag = 'scoped memory for transformer_forward.1']
  %s0 = inlined_call_operand.vmem [shape: f32[16,16], index: 0, kind: input, shape index: {}]
  %s1 = inlined_call_operand.hbm [shape: f32[16,32], index: 1, kind: input, shape index: {}]
  %s2 = inlined_call_operand.vmem [shape: f32[1,32], index: 2, kind: input, shape index: {}]
  %s3 = inlined_call_operand.vmem [shape: f32[2,32,96], index: 3, kind: input, shape index: {}]
  %s4 = inlined_call_operand.vmem [shape: f32[2,1,96], index: 4, kind: input, shape index: {}]
  %s5 = inlined_call_operand.vmem [shape: f32[2,32,32], index: 5, kind: input, shape index: {}]
  %s6 = inlined_call_operand.vmem [shape: f32[2,1,32], index: 6, kind: input, shape index: {}]
  %s7 = inlined_call_operand.vmem [shape: f32[2,1,32], index: 7, kind: input, shape index: {}]
  %s8 = inlined_call_operand.vmem [shape: f32[2,1,32], index: 8, kind: input, shape index: {}]
  %s9 = inlined_call_operand.vmem [shape: f32[2,32,64], index: 9, kind: input, shape index: {}]
  %s10 = inlined_call_operand.hbm [shape: f32[2,1,64], index: 10, kind: input, shape index: {}]
  %s11 = inlined_call_operand.vmem [shape: f32[2,64,32], index: 11, kind: input, shape index: {}]
  %s12 = inlined_call_operand.hbm [shape: f32[2,1,32], index: 12, kind: input, shape index: {}]
  %s13 = inlined_call_operand.hbm [shape: f32[2,1,32], index: 13, kind: input, shape index: {}]
  %s14 = inlined_call_operand.hbm [shape: f32[2,1,32], index: 14, kind: input, shape index: {}]
  %s15 = inlined_call_operand.hbm [shape: f32[1,32], index: 15, kind: input, shape index: {}]
  %s16 = inlined_call_operand.hbm [shape: f32[1,32], index: 16, kind: input, shape index: {}]
  %s17 = inlined_call_operand.vmem [shape: f32[32,1], index: 17, kind: input, shape index: {}]
  %s18 = inlined_call_operand.<no memory space> [shape: f32[1,1], index: 18, kind: input, shape index: {}]
  %s19 = inlined_call_operand.vmem [shape: f32[2,1], index: 19, kind: output, shape index: {}]
  %s20 = sld [smem:[#allocation0]]
  $region114: #{transformer_forward.1} parent=0
    _
  %s22 = ssub.s32 1, %s20
  %s23 = scalar_select 0, %s22, %s20
  %v24 = vstv %s18
  %25 = vst [vmem:[#allocation2] sm:$0x1] %v24
  $region1: #{transformer_forward.1} parent=0
    #allocation3 [shape = 'u8[8192]{0}', space=vmem, size = 0x2000, scoped, tag = 'input window, operand 1, single buffered']
    #allocation4 [shape = 's32[1]{0}', space=sflag, size = 0x4, scoped, tag = 'scoped memory for transformer_forward.1']
    #allocation5 [shape = 'u8[1024]{0}', space=vmem, size = 0x400, scoped, tag = 'input window, operand 10, single buffered']
    #allocation6 [shape = 's32[1]{0}', space=sflag, size = 0x4, scoped, tag = 'scoped memory for transformer_forward.1']
    #allocation7 [shape = 'u8[1024]{0}', space=vmem, size = 0x400, scoped, tag = 'input window, operand 12, single buffered']
    #allocation8 [shape = 'u8[1024]{0}', space=vmem, size = 0x400, scoped, tag = 'input window, operand 13, single buffered']
    #allocation9 [shape = 's32[1]{0}', space=sflag, size = 0x4, scoped, tag = 'scoped memory for transformer_forward.1']
    #allocation10 [shape = 'u8[1024]{0}', space=vmem, size = 0x400, scoped, tag = 'input window, operand 14, single buffered']
    #allocation11 [shape = 'u8[512]{0}', space=vmem, size = 0x400, scoped, tag = 'input window, operand 15, single buffered']
    #allocation12 [shape = 's32[1]{0}', space=sflag, size = 0x4, scoped, tag = 'scoped memory for transformer_forward.1']
    #allocation13 [shape = 'u8[512]{0}', space=vmem, size = 0x400, scoped, tag = 'input window, operand 16, single buffered']
    %26 = vsyncpa [#allocation4], 0
    %27 = vsyncpa [#allocation6], 0
    %28 = vsyncpa [#allocation9], 0
    %29 = vsyncpa [#allocation12], 0
    // Predicated region
    $region2: #{transformer_forward.1} parent=1 // pred_check
      _
    $region3: #{transformer_forward.1} parent=1 // pred_check_branch
      %31 = sbr.rel (0) target = $region5
    $region4: #{transformer_forward.1} parent=1 // pred_region
      _
    $region5: #{transformer_forward.1} parent=1 // pred_fallthru
      _
    // Predicated region
    $region6: #{transformer_forward.1} parent=1 // pred_check
      _
    $region7: #{transformer_forward.1} parent=1 // pred_check_branch
      %33 = sbr.rel (0) target = $region9
    $region8: #{transformer_forward.1} parent=1 // pred_region
      %s35 = ssub.s32 256, 256
      %36 = vsyncadd [#allocation4], %s35
      %s37 = sshll.u32 [#allocation3], 4
      %s38 = int_to_ptr.vmem [resolvable:$true] %s37
      %43 = dma.hbm_to_vmem [thread:$0]  %s1, 256, %s38, [#allocation4], 128, 128, 8
    $region9: #{transformer_forward.1} parent=1 // pred_fallthru
      _
    // Predicated region
    $region10: #{transformer_forward.1} parent=1 // pred_check
      _
    $region11: #{transformer_forward.1} parent=1 // pred_check_branch
      %45 = sbr.rel (0) target = $region13
    $region12: #{transformer_forward.1} parent=1 // pred_region
      _
    $region13: #{transformer_forward.1} parent=1 // pred_fallthru
      _
    // Predicated region
    $region14: #{transformer_forward.1} parent=1 // pred_check
      _
    $region15: #{transformer_forward.1} parent=1 // pred_check_branch
      %47 = sbr.rel (0) target = $region17
    $region16: #{transformer_forward.1} parent=1 // pred_region
      _
    $region17: #{transformer_forward.1} parent=1 // pred_fallthru
      _
    // Predicated region
    $region18: #{transformer_forward.1} parent=1 // pred_check
      _
    $region19: #{transformer_forward.1} parent=1 // pred_check_branch
      %49 = sbr.rel (0) target = $region21
    $region20: #{transformer_forward.1} parent=1 // pred_region
      _
    $region21: #{transformer_forward.1} parent=1 // pred_fallthru
      _
    // Predicated region
    $region22: #{transformer_forward.1} parent=1 // pred_check
      _
    $region23: #{transformer_forward.1} parent=1 // pred_check_branch
      %51 = sbr.rel (0) target = $region25
    $region24: #{transformer_forward.1} parent=1 // pred_region
      _
    $region25: #{transformer_forward.1} parent=1 // pred_fallthru
      _
    // Predicated region
    $region26: #{transformer_forward.1} parent=1 // pred_check
      _
    $region27: #{transformer_forward.1} parent=1 // pred_check_branch
      %53 = sbr.rel (0) target = $region29
    $region28: #{transformer_forward.1} parent=1 // pred_region
      _
    $region29: #{transformer_forward.1} parent=1 // pred_fallthru
      _
    // Predicated region
    $region30: #{transformer_forward.1} parent=1 // pred_check
      _
    $region31: #{transformer_forward.1} parent=1 // pred_check_branch
      %55 = sbr.rel (0) target = $region33
    $region32: #{transformer_forward.1} parent=1 // pred_region
      _
    $region33: #{transformer_forward.1} parent=1 // pred_fallthru
      _
    // Predicated region
    $region34: #{transformer_forward.1} parent=1 // pred_check
      _
    $region35: #{transformer_forward.1} parent=1 // pred_check_branch
      %57 = sbr.rel (0) target = $region37
    $region36: #{transformer_forward.1} parent=1 // pred_region
      _
    $region37: #{transformer_forward.1} parent=1 // pred_fallthru
      _
    // Predicated region
    $region38: #{transformer_forward.1} parent=1 // pred_check
      _
    $region39: #{transformer_forward.1} parent=1 // pred_check_branch
      %59 = sbr.rel (0) target = $region41
    $region40: #{transformer_forward.1} parent=1 // pred_region
      _
    $region41: #{transformer_forward.1} parent=1 // pred_fallthru
      _
    // Predicated region
    $region42: #{transformer_forward.1} parent=1 // pred_check
      _
    $region43: #{transformer_forward.1} parent=1 // pred_check_branch
      %61 = sbr.rel (0) target = $region45
    $region44: #{transformer_forward.1} parent=1 // pred_region
      %s63 = ssub.s32 32, 32
      %64 = vsyncadd [#allocation6], %s63
      %s65 = sshll.u32 [#allocation5], 4
      %s66 = int_to_ptr.vmem [resolvable:$true] %s65
      %71 = dma.hbm_to_vmem [thread:$0]  %s10, 32, %s66, [#allocation6], 16, 16, 1
    $region45: #{transformer_forward.1} parent=1 // pred_fallthru
      _
    // Predicated region
    $region46: #{transformer_forward.1} parent=1 // pred_check
      _
    $region47: #{transformer_forward.1} parent=1 // pred_check_branch
      %73 = sbr.rel (0) target = $region49
    $region48: #{transformer_forward.1} parent=1 // pred_region
      _
    $region49: #{transformer_forward.1} parent=1 // pred_fallthru
      _
    // Predicated region
    $region50: #{transformer_forward.1} parent=1 // pred_check
      _
    $region51: #{transformer_forward.1} parent=1 // pred_check_branch
      %75 = sbr.rel (0) target = $region53
    $region52: #{transformer_forward.1} parent=1 // pred_region
      %s77 = ssub.s32 32, 32
      %78 = vsyncadd [#allocation6], %s77
      %s79 = sshll.u32 [#allocation7], 4
      %s80 = int_to_ptr.vmem [resolvable:$true] %s79
      %85 = dma.hbm_to_vmem [thread:$0]  %s12, 32, %s80, [#allocation6], 16, 16, 1
    $region53: #{transformer_forward.1} parent=1 // pred_fallthru
      _
    // Predicated region
    $region54: #{transformer_forward.1} parent=1 // pred_check
      _
    $region55: #{transformer_forward.1} parent=1 // pred_check_branch
      %87 = sbr.rel (0) target = $region57
    $region56: #{transformer_forward.1} parent=1 // pred_region
      %s89 = ssub.s32 32, 32
      %90 = vsyncadd [#allocation9], %s89
      %s91 = sshll.u32 [#allocation8], 4
      %s92 = int_to_ptr.vmem [resolvable:$true] %s91
      %97 = dma.hbm_to_vmem [thread:$0]  %s13, 32, %s92, [#allocation9], 16, 16, 1
    $region57: #{transformer_forward.1} parent=1 // pred_fallthru
      _
    // Predicated region
    $region58: #{transformer_forward.1} parent=1 // pred_check
      _
    $region59: #{transformer_forward.1} parent=1 // pred_check_branch
      %99 = sbr.rel (0) target = $region61
    $region60: #{transformer_forward.1} parent=1 // pred_region
      %s101 = ssub.s32 32, 32
      %102 = vsyncadd [#allocation9], %s101
      %s103 = sshll.u32 [#allocation10], 4
      %s104 = int_to_ptr.vmem [resolvable:$true] %s103
      %109 = dma.hbm_to_vmem [thread:$0]  %s14, 32, %s104, [#allocation9], 16, 16, 1
    $region61: #{transformer_forward.1} parent=1 // pred_fallthru
      _
    // Predicated region
    $region62: #{transformer_forward.1} parent=1 // pred_check
      _
    $region63: #{transformer_forward.1} parent=1 // pred_check_branch
      %111 = sbr.rel (0) target = $region65
    $region64: #{transformer_forward.1} parent=1 // pred_region
      %s113 = ssub.s32 16, 16
      %114 = vsyncadd [#allocation12], %s113
      %s116 = sshll.u32 [#allocation11], 4
      %s117 = int_to_ptr.vmem [resolvable:$true] %s116
      %119 = dma.hbm_to_vmem [thread:$0]  %s15, 16, %s117, [#allocation12]
    $region65: #{transformer_forward.1} parent=1 // pred_fallthru
      _
    // Predicated region
    $region66: #{transformer_forward.1} parent=1 // pred_check
      _
    $region67: #{transformer_forward.1} parent=1 // pred_check_branch
      %121 = sbr.rel (0) target = $region69
    $region68: #{transformer_forward.1} parent=1 // pred_region
      %s123 = ssub.s32 16, 16
      %124 = vsyncadd [#allocation12], %s123
      %s126 = sshll.u32 [#allocation13], 4
      %s127 = int_to_ptr.vmem [resolvable:$true] %s126
      %129 = dma.hbm_to_vmem [thread:$0]  %s16, 16, %s127, [#allocation12]
    $region69: #{transformer_forward.1} parent=1 // pred_fallthru
      _
    // Predicated region
    $region70: #{transformer_forward.1} parent=1 // pred_check
      _
    $region71: #{transformer_forward.1} parent=1 // pred_check_branch
      %131 = sbr.rel (0) target = $region73
    $region72: #{transformer_forward.1} parent=1 // pred_region
      _
    $region73: #{transformer_forward.1} parent=1 // pred_fallthru
      _
    // Predicated region
    $region74: #{transformer_forward.1} parent=1 // pred_check
      _
    $region75: #{transformer_forward.1} parent=1 // pred_check_branch
      %133 = sbr.rel (0) target = $region77
    $region76: #{transformer_forward.1} parent=1 // pred_region
      _
    $region77: #{transformer_forward.1} parent=1 // pred_fallthru
      _
    // Predicated region
    $region78: #{transformer_forward.1} parent=1 // pred_check
      _
    $region79: #{transformer_forward.1} parent=1 // pred_check_branch
      %135 = sbr.rel (0) target = $region81
    $region80: #{transformer_forward.1} parent=1 // pred_region
      %136 = dma.done [#allocation4], 256
    $region81: #{transformer_forward.1} parent=1 // pred_fallthru
      _
    // Predicated region
    $region82: #{transformer_forward.1} parent=1 // pred_check
      _
    $region83: #{transformer_forward.1} parent=1 // pred_check_branch
      %138 = sbr.rel (0) target = $region85
    $region84: #{transformer_forward.1} parent=1 // pred_region
      %139 = dma.done [#allocation6], 32
    $region85: #{transformer_forward.1} parent=1 // pred_fallthru
      _
    // Predicated region
    $region86: #{transformer_forward.1} parent=1 // pred_check
      _
    $region87: #{transformer_forward.1} parent=1 // pred_check_branch
      %141 = sbr.rel (0) target = $region89
    $region88: #{transformer_forward.1} parent=1 // pred_region
      %142 = dma.done [#allocation6], 32
    $region89: #{transformer_forward.1} parent=1 // pred_fallthru
      _
    // Predicated region
    $region90: #{transformer_forward.1} parent=1 // pred_check
      _
    $region91: #{transformer_forward.1} parent=1 // pred_check_branch
      %144 = sbr.rel (0) target = $region93
    $region92: #{transformer_forward.1} parent=1 // pred_region
      %145 = dma.done [#allocation9], 32
    $region93: #{transformer_forward.1} parent=1 // pred_fallthru
      _
    // Predicated region
    $region94: #{transformer_forward.1} parent=1 // pred_check
      _
    $region95: #{transformer_forward.1} parent=1 // pred_check_branch
      %147 = sbr.rel (0) target = $region97
    $region96: #{transformer_forward.1} parent=1 // pred_region
      %148 = dma.done [#allocation9], 32
    $region97: #{transformer_forward.1} parent=1 // pred_fallthru
      _
    // Predicated region
    $region98: #{transformer_forward.1} parent=1 // pred_check
      _
    $region99: #{transformer_forward.1} parent=1 // pred_check_branch
      %150 = sbr.rel (0) target = $region101
    $region100: #{transformer_forward.1} parent=1 // pred_region
      %151 = dma.done [#allocation12], 16
    $region101: #{transformer_forward.1} parent=1 // pred_fallthru
      _
    // Predicated region
    $region102: #{transformer_forward.1} parent=1 // pred_check
      _
    $region103: #{transformer_forward.1} parent=1 // pred_check_branch
      %153 = sbr.rel (0) target = $region105
    $region104: #{transformer_forward.1} parent=1 // pred_region
      %154 = dma.done [#allocation12], 16
    $region105: #{transformer_forward.1} parent=1 // pred_fallthru
      _
    %v155 = vld [vmem:[%s0] sm:$0xff]
    %v156 = vld [vmem:[%s0 + $0x8] sm:$0xff]
    %v157 = vld [vmem:[#allocation3] sm:$0xff]
    %v158 = vld [vmem:[#allocation3 + $0x8] sm:$0xff]
    %v159 = vld [vmem:[%s2] sm:$0x1]
    %v161 = vlaneseq
    %v162 = vshrl.u32 %v161, 7
    %v163 = vsub.s32 0, %v162
    %v164 = vrot.slane %v159, %v163
    %vm166 = vcmask 130048
    %v168 = vsel %vm166, %v155, 0
    %v171 = vsel %vm166, %v156, 0
    %173 = vmatprep.subr.mxu0 0.0
    %174 = vmatpush1.msra.mxu0 %v157
    %175 = vmatprep.subr.mxu0 0.0
    %176 = vmatpush1.msra.mxu0 %v158
    %177 = vmatprep.subr.mxu0 0.0
    %178 = vmatpush1.msra.mxu0 0.0
    %179 = vmatprep.subr.mxu0 0.0
    %180 = vmatpush1.msra.mxu0 0.0
    %181 = vmatprep.subr.mxu0 0.0
    %182 = vmatpush1.msra.mxu0 0.0
    %183 = vmatprep.subr.mxu0 0.0
    %184 = vmatpush1.msra.mxu0 0.0
    %185 = vmatprep.subr.mxu0 0.0
    %186 = vmatpush1.msra.mxu0 0.0
    %187 = vmatprep.subr.mxu0 0.0
    %188 = vmatpush1.msra.mxu0 0.0
    %189 = vmatprep.subr.mxu0 0.0
    %190 = vmatpush1.msra.mxu0 0.0
    %191 = vmatprep.subr.mxu0 0.0
    %192 = vmatpush1.msra.mxu0 0.0
    %193 = vmatprep.subr.mxu0 0.0
    %194 = vmatpush1.msra.mxu0 0.0
    %195 = vmatprep.subr.mxu0 0.0
    %196 = vmatpush1.msra.mxu0 0.0
    %197 = vmatprep.subr.mxu0 0.0
    %198 = vmatpush1.msra.mxu0 0.0
    %199 = vmatprep.subr.mxu0 0.0
    %200 = vmatpush1.msra.mxu0 0.0
    %201 = vmatprep.subr.mxu0 0.0
    %202 = vmatpush1.msra.mxu0 0.0
    %203 = vmatprep.subr.mxu0 0.0
    %204 = vmatpush1.msra.mxu0 0.0
    %205 = vmatprep.subr.mxu0 0.0
    %206 = vmatpush1.msra.mxu0 0.0
    %207 = vmatprep.subr.mxu0 0.0
    %208 = vmatpush1.msra.mxu0 0.0
    %209 = vmatprep.subr.mxu0 0.0
    %210 = vmatpush1.msra.mxu0 0.0
    %211 = vmatprep.subr.mxu0 0.0
    %212 = vmatpush1.msra.mxu0 0.0
    %213 = vmatprep.subr.mxu0 0.0
    %214 = vmatpush1.msra.mxu0 0.0
    %215 = vmatprep.subr.mxu0 0.0
    %216 = vmatpush1.msra.mxu0 0.0
    %217 = vmatprep.subr.mxu0 0.0
    %218 = vmatpush1.msra.mxu0 0.0
    %219 = vmatprep.subr.mxu0 0.0
    %220 = vmatpush1.msra.mxu0 0.0
    %221 = vmatprep.subr.mxu0 0.0
    %222 = vmatpush1.msra.mxu0 0.0
    %223 = vmatprep.subr.mxu0 0.0
    %224 = vmatpush1.msra.mxu0 0.0
    %225 = vmatprep.subr.mxu0 0.0
    %226 = vmatpush1.msra.mxu0 0.0
    %227 = vmatprep.subr.mxu0 0.0
    %228 = vmatpush1.msra.mxu0 0.0
    %229 = vmatprep.subr.mxu0 0.0
    %230 = vmatpush1.msra.mxu0 0.0
    %231 = vmatprep.subr.mxu0 0.0
    %232 = vmatpush1.msra.mxu0 0.0
    %233 = vmatprep.subr.mxu0 0.0
    %234 = vmatpush1.msra.mxu0 0.0
    %235 = vmatprep.subr.mxu0 0.0
    %236 = vmatpush1.msra.mxu0 0.0
    %237 = vmatprep.mubr.f32.mxu0 0.0
    %238 = vmatmul.mubr.f32.gmra.mrb[0].mxu0 %v168
    %v239 = vpop.f32.mrb[0].mxu0
    %v240 = vadd.f32 %v164, %v239
    %v241 = vpop.f32.mrb[0].mxu0
    %242 = vmatprep.mubr.f32.mxu0 0.0
    %243 = vmatmul.mubr.f32.gmra.mrb[0].mxu0 %v171
    %v244 = vpop.f32.mrb[0].mxu0
    %v245 = vadd.f32 %v164, %v244
    %v246 = vpop.f32.mrb[0].mxu0
    %247 = vdwg.mxu0
    %v248 = vld [vmem:[%s3] sm:$0xff]
    %v249 = vld [vmem:[%s3 + $0x8] sm:$0xff]
    %v250 = vld [vmem:[%s3 + $0x10] sm:$0xff]
    %v251 = vld [vmem:[%s3 + $0x18] sm:$0xff]
    %v252 = vld [vmem:[%s4] sm:$0x1]
    %v254 = vlaneseq
    %v255 = vshrl.u32 %v254, 7
    %v256 = vsub.s32 0, %v255
    %v257 = vrot.slane %v252, %v256
    %vm259 = vcmask 261120
    %v261 = vsel %vm259, %v240, 0
    %v264 = vsel %vm259, %v245, 0
    %266 = vmatprep.subr.mxu0 0.0
    %267 = vmatpush1.msra.mxu0 %v248
    %268 = vmatprep.subr.mxu0 0.0
    %269 = vmatpush1.msra.mxu0 %v249
    %270 = vmatprep.subr.mxu0 0.0
    %271 = vmatpush1.msra.mxu0 %v250
    %272 = vmatprep.subr.mxu0 0.0
    %273 = vmatpush1.msra.mxu0 %v251
    %274 = vmatprep.subr.mxu0 0.0
    %275 = vmatpush1.msra.mxu0 0.0
    %276 = vmatprep.subr.mxu0 0.0
    %277 = vmatpush1.msra.mxu0 0.0
    %278 = vmatprep.subr.mxu0 0.0
    %279 = vmatpush1.msra.mxu0 0.0
    %280 = vmatprep.subr.mxu0 0.0
    %281 = vmatpush1.msra.mxu0 0.0
    %282 = vmatprep.subr.mxu0 0.0
    %283 = vmatpush1.msra.mxu0 0.0
    %284 = vmatprep.subr.mxu0 0.0
    %285 = vmatpush1.msra.mxu0 0.0
    %286 = vmatprep.subr.mxu0 0.0
    %287 = vmatpush1.msra.mxu0 0.0
    %288 = vmatprep.subr.mxu0 0.0
    %289 = vmatpush1.msra.mxu0 0.0
    %290 = vmatprep.subr.mxu0 0.0
    %291 = vmatpush1.msra.mxu0 0.0
    %292 = vmatprep.subr.mxu0 0.0
    %293 = vmatpush1.msra.mxu0 0.0
    %294 = vmatprep.subr.mxu0 0.0
    %295 = vmatpush1.msra.mxu0 0.0
    %296 = vmatprep.subr.mxu0 0.0
    %297 = vmatpush1.msra.mxu0 0.0
    %298 = vmatprep.subr.mxu0 0.0
    %299 = vmatpush1.msra.mxu0 0.0
    %300 = vmatprep.subr.mxu0 0.0
    %301 = vmatpush1.msra.mxu0 0.0
    %302 = vmatprep.subr.mxu0 0.0
    %303 = vmatpush1.msra.mxu0 0.0
    %304 = vmatprep.subr.mxu0 0.0
    %305 = vmatpush1.msra.mxu0 0.0
    %306 = vmatprep.subr.mxu0 0.0
    %307 = vmatpush1.msra.mxu0 0.0
    %308 = vmatprep.subr.mxu0 0.0
    %309 = vmatpush1.msra.mxu0 0.0
    %310 = vmatprep.subr.mxu0 0.0
    %311 = vmatpush1.msra.mxu0 0.0
    %312 = vmatprep.subr.mxu0 0.0
    %313 = vmatpush1.msra.mxu0 0.0
    %314 = vmatprep.subr.mxu0 0.0
    %315 = vmatpush1.msra.mxu0 0.0
    %316 = vmatprep.subr.mxu0 0.0
    %317 = vmatpush1.msra.mxu0 0.0
    %318 = vmatprep.subr.mxu0 0.0
    %319 = vmatpush1.msra.mxu0 0.0
    %320 = vmatprep.subr.mxu0 0.0
    %321 = vmatpush1.msra.mxu0 0.0
    %322 = vmatprep.subr.mxu0 0.0
    %323 = vmatpush1.msra.mxu0 0.0
    %324 = vmatprep.subr.mxu0 0.0
    %325 = vmatpush1.msra.mxu0 0.0
    %326 = vmatprep.subr.mxu0 0.0
    %327 = vmatpush1.msra.mxu0 0.0
    %328 = vmatprep.subr.mxu0 0.0
    %329 = vmatpush1.msra.mxu0 0.0
    %330 = vmatprep.mubr.f32.mxu0 0.0
    %331 = vmatmul.mubr.f32.gmra.mrb[0].mxu0 %v261
    %v332 = vpop.f32.mrb[0].mxu0
    %v333 = vadd.f32 %v257, %v332
    %v334 = vpop.f32.mrb[0].mxu0
    %335 = vmatprep.mubr.f32.mxu0 0.0
    %336 = vmatmul.mubr.f32.gmra.mrb[0].mxu0 %v264
    %v337 = vpop.f32.mrb[0].mxu0
    %v338 = vadd.f32 %v257, %v337
    %v339 = vpop.f32.mrb[0].mxu0
    %340 = vdwg.mxu0
    %342 = vrot.lane.b32.xlu0 %v333, 96
    %v343 = vpop.permute.xlu0 %342
    %vm344 = vcmask 64512
    %v345 = vsel %vm344, %v333, 0
    %v347 = vsel %vm344, %v343, 0
    %349 = vmatprep.subr.mxu0 0.0
    %350 = vmatpush1.xpose.msra.mxu0 %v347
    %351 = vmatprep.subr.mxu0 0.0
    %352 = vmatpush1.xpose.msra.mxu0 0.0
    %353 = vmatprep.subr.mxu0 0.0
    %354 = vmatpush1.xpose.msra.mxu0 0.0
    %355 = vmatprep.subr.mxu0 0.0
    %356 = vmatpush1.xpose.msra.mxu0 0.0
    %357 = vmatprep.subr.mxu0 0.0
    %358 = vmatpush1.xpose.msra.mxu0 0.0
    %359 = vmatprep.subr.mxu0 0.0
    %360 = vmatpush1.xpose.msra.mxu0 0.0
    %361 = vmatprep.subr.mxu0 0.0
    %362 = vmatpush1.xpose.msra.mxu0 0.0
    %363 = vmatprep.subr.mxu0 0.0
    %364 = vmatpush1.xpose.msra.mxu0 0.0
    %365 = vmatprep.subr.mxu0 0.0
    %366 = vmatpush1.xpose.msra.mxu0 0.0
    %367 = vmatprep.subr.mxu0 0.0
    %368 = vmatpush1.xpose.msra.mxu0 0.0
    %369 = vmatprep.subr.mxu0 0.0
    %370 = vmatpush1.xpose.msra.mxu0 0.0
    %371 = vmatprep.subr.mxu0 0.0
    %372 = vmatpush1.xpose.msra.mxu0 0.0
    %373 = vmatprep.subr.mxu0 0.0
    %374 = vmatpush1.xpose.msra.mxu0 0.0
    %375 = vmatprep.subr.mxu0 0.0
    %376 = vmatpush1.xpose.msra.mxu0 0.0
    %377 = vmatprep.subr.mxu0 0.0
    %378 = vmatpush1.xpose.msra.mxu0 0.0
    %379 = vmatprep.subr.mxu0 0.0
    %380 = vmatpush1.xpose.msra.mxu0 0.0
    %381 = vmatprep.subr.mxu0 0.0
    %382 = vmatpush1.xpose.msra.mxu0 0.0
    %383 = vmatprep.subr.mxu0 0.0
    %384 = vmatpush1.xpose.msra.mxu0 0.0
    %385 = vmatprep.subr.mxu0 0.0
    %386 = vmatpush1.xpose.msra.mxu0 0.0
    %387 = vmatprep.subr.mxu0 0.0
    %388 = vmatpush1.xpose.msra.mxu0 0.0
    %389 = vmatprep.subr.mxu0 0.0
    %390 = vmatpush1.xpose.msra.mxu0 0.0
    %391 = vmatprep.subr.mxu0 0.0
    %392 = vmatpush1.xpose.msra.mxu0 0.0
    %393 = vmatprep.subr.mxu0 0.0
    %394 = vmatpush1.xpose.msra.mxu0 0.0
    %395 = vmatprep.subr.mxu0 0.0
    %396 = vmatpush1.xpose.msra.mxu0 0.0
    %397 = vmatprep.subr.mxu0 0.0
    %398 = vmatpush1.xpose.msra.mxu0 0.0
    %399 = vmatprep.subr.mxu0 0.0
    %400 = vmatpush1.xpose.msra.mxu0 0.0
    %401 = vmatprep.subr.mxu0 0.0
    %402 = vmatpush1.xpose.msra.mxu0 0.0
    %403 = vmatprep.subr.mxu0 0.0
    %404 = vmatpush1.xpose.msra.mxu0 0.0
    %405 = vmatprep.subr.mxu0 0.0
    %406 = vmatpush1.xpose.msra.mxu0 0.0
    %407 = vmatprep.subr.mxu0 0.0
    %408 = vmatpush1.xpose.msra.mxu0 0.0
    %409 = vmatprep.subr.mxu0 0.0
    %410 = vmatpush1.xpose.msra.mxu0 0.0
    %411 = vmatprep.subr.mxu0 0.0
    %412 = vmatpush1.xpose.msra.mxu0 0.0
    %413 = vmatprep.mubr.f32.mxu0 0.0
    %414 = vmatmul.mubr.f32.gmra.mrb[0].mxu0 %v345
    %v415 = vpop.f32.mrb[0].mxu0
    %v416 = vadd.f32 0.0, %v415
    %v417 = vpop.f32.mrb[0].mxu0
    %418 = vdwg.mxu0
    %420 = vrot.lane.b32.xlu0 %v338, 96
    %v421 = vpop.permute.xlu0 %420
    %v422 = vsel %vm344, %v338, 0
    %v424 = vsel %vm344, %v421, 0
    %426 = vmatprep.subr.mxu0 0.0
    %427 = vmatpush1.xpose.msra.mxu0 %v424
    %428 = vmatprep.subr.mxu0 0.0
    %429 = vmatpush1.xpose.msra.mxu0 0.0
    %430 = vmatprep.subr.mxu0 0.0
    %431 = vmatpush1.xpose.msra.mxu0 0.0
    %432 = vmatprep.subr.mxu0 0.0
    %433 = vmatpush1.xpose.msra.mxu0 0.0
    %434 = vmatprep.subr.mxu0 0.0
    %435 = vmatpush1.xpose.msra.mxu0 0.0
    %436 = vmatprep.subr.mxu0 0.0
    %437 = vmatpush1.xpose.msra.mxu0 0.0
    %438 = vmatprep.subr.mxu0 0.0
    %439 = vmatpush1.xpose.msra.mxu0 0.0
    %440 = vmatprep.subr.mxu0 0.0
    %441 = vmatpush1.xpose.msra.mxu0 0.0
    %442 = vmatprep.subr.mxu0 0.0
    %443 = vmatpush1.xpose.msra.mxu0 0.0
    %444 = vmatprep.subr.mxu0 0.0
    %445 = vmatpush1.xpose.msra.mxu0 0.0
    %446 = vmatprep.subr.mxu0 0.0
    %447 = vmatpush1.xpose.msra.mxu0 0.0
    %448 = vmatprep.subr.mxu0 0.0
    %449 = vmatpush1.xpose.msra.mxu0 0.0
    %450 = vmatprep.subr.mxu0 0.0
    %451 = vmatpush1.xpose.msra.mxu0 0.0
    %452 = vmatprep.subr.mxu0 0.0
    %453 = vmatpush1.xpose.msra.mxu0 0.0
    %454 = vmatprep.subr.mxu0 0.0
    %455 = vmatpush1.xpose.msra.mxu0 0.0
    %456 = vmatprep.subr.mxu0 0.0
    %457 = vmatpush1.xpose.msra.mxu0 0.0
    %458 = vmatprep.subr.mxu0 0.0
    %459 = vmatpush1.xpose.msra.mxu0 0.0
    %460 = vmatprep.subr.mxu0 0.0
    %461 = vmatpush1.xpose.msra.mxu0 0.0
    %462 = vmatprep.subr.mxu0 0.0
    %463 = vmatpush1.xpose.msra.mxu0 0.0
    %464 = vmatprep.subr.mxu0 0.0
    %465 = vmatpush1.xpose.msra.mxu0 0.0
    %466 = vmatprep.subr.mxu0 0.0
    %467 = vmatpush1.xpose.msra.mxu0 0.0
    %468 = vmatprep.subr.mxu0 0.0
    %469 = vmatpush1.xpose.msra.mxu0 0.0
    %470 = vmatprep.subr.mxu0 0.0
    %471 = vmatpush1.xpose.msra.mxu0 0.0
    %472 = vmatprep.subr.mxu0 0.0
    %473 = vmatpush1.xpose.msra.mxu0 0.0
    %474 = vmatprep.subr.mxu0 0.0
    %475 = vmatpush1.xpose.msra.mxu0 0.0
    %476 = vmatprep.subr.mxu0 0.0
    %477 = vmatpush1.xpose.msra.mxu0 0.0
    %478 = vmatprep.subr.mxu0 0.0
    %479 = vmatpush1.xpose.msra.mxu0 0.0
    %480 = vmatprep.subr.mxu0 0.0
    %481 = vmatpush1.xpose.msra.mxu0 0.0
    %482 = vmatprep.subr.mxu0 0.0
    %483 = vmatpush1.xpose.msra.mxu0 0.0
    %484 = vmatprep.subr.mxu0 0.0
    %485 = vmatpush1.xpose.msra.mxu0 0.0
    %486 = vmatprep.subr.mxu0 0.0
    %487 = vmatpush1.xpose.msra.mxu0 0.0
    %488 = vmatprep.subr.mxu0 0.0
    %489 = vmatpush1.xpose.msra.mxu0 0.0
    %490 = vmatprep.mubr.f32.mxu0 0.0
    %491 = vmatmul.mubr.f32.gmra.mrb[0].mxu0 %v422
    %v492 = vpop.f32.mrb[0].mxu0
    %v493 = vadd.f32 0.0, %v492
    %v494 = vpop.f32.mrb[0].mxu0
    %495 = vdwg.mxu0
    %v496 = vmul.f32 %v416, 0.35355338
    %v497 = vmul.f32 %v493, 0.35355338
    %v498 = vsel %vm344, %v496, -inf
    %499 = vmax.xlane.f32.xlu0 %v498
    %v500 = vpop.xlane.xlu0 %499
    %v501 = vsel %vm344, %v497, -inf
    %502 = vmax.xlane.f32.xlu0 %v501
    %v503 = vpop.xlane.xlu0 %502
    %v504 = vsub.f32 %v496, %v500
    %v505 = vsub.f32 %v497, %v503
    %v506 = vmul.f32 %v504, 1.442695
    %v507 = vpow.pop %v506
    %v508 = vmul.f32 %v505, 1.442695
    %v509 = vpow.pop %v508
    %v510 = vsel %vm344, %v507, 0.0
    %511 = vadd.xlane.f32.xlu0 %v510
    %v512 = vpop.xlane.xlu0 %511
    %v513 = vsel %vm344, %v509, 0.0
    %514 = vadd.xlane.f32.xlu0 %v513
    %v515 = vpop.xlane.xlu0 %514
    %v516 = vrcp.pop %v512
    %v517 = vrcp.pop %v515
    %v518 = vmul.f32 %v507, %v516
    %v519 = vmul.f32 %v509, %v517
    %520 = vrot.lane.b32.xlu0 %v333, 64
    %v521 = vpop.permute.xlu0 %520
    %v524 = vsel %vm344, %v518, 0
    %526 = vmatprep.subr.mxu0 0.0
    %527 = vmatpush1.msra.mxu0 %v521
    %528 = vmatprep.subr.mxu0 0.0
    %529 = vmatpush1.msra.mxu0 0.0
    %530 = vmatprep.subr.mxu0 0.0
    %531 = vmatpush1.msra.mxu0 0.0
    %532 = vmatprep.subr.mxu0 0.0
    %533 = vmatpush1.msra.mxu0 0.0
    %534 = vmatprep.subr.mxu0 0.0
    %535 = vmatpush1.msra.mxu0 0.0
    %536 = vmatprep.subr.mxu0 0.0
    %537 = vmatpush1.msra.mxu0 0.0
    %538 = vmatprep.subr.mxu0 0.0
    %539 = vmatpush1.msra.mxu0 0.0
    %540 = vmatprep.subr.mxu0 0.0
    %541 = vmatpush1.msra.mxu0 0.0
    %542 = vmatprep.subr.mxu0 0.0
    %543 = vmatpush1.msra.mxu0 0.0
    %544 = vmatprep.subr.mxu0 0.0
    %545 = vmatpush1.msra.mxu0 0.0
    %546 = vmatprep.subr.mxu0 0.0
    %547 = vmatpush1.msra.mxu0 0.0
    %548 = vmatprep.subr.mxu0 0.0
    %549 = vmatpush1.msra.mxu0 0.0
    %550 = vmatprep.subr.mxu0 0.0
    %551 = vmatpush1.msra.mxu0 0.0
    %552 = vmatprep.subr.mxu0 0.0
    %553 = vmatpush1.msra.mxu0 0.0
    %554 = vmatprep.subr.mxu0 0.0
    %555 = vmatpush1.msra.mxu0 0.0
    %556 = vmatprep.subr.mxu0 0.0
    %557 = vmatpush1.msra.mxu0 0.0
    %558 = vmatprep.subr.mxu0 0.0
    %559 = vmatpush1.msra.mxu0 0.0
    %560 = vmatprep.subr.mxu0 0.0
    %561 = vmatpush1.msra.mxu0 0.0
    %562 = vmatprep.subr.mxu0 0.0
    %563 = vmatpush1.msra.mxu0 0.0
    %564 = vmatprep.subr.mxu0 0.0
    %565 = vmatpush1.msra.mxu0 0.0
    %566 = vmatprep.subr.mxu0 0.0
    %567 = vmatpush1.msra.mxu0 0.0
    %568 = vmatprep.subr.mxu0 0.0
    %569 = vmatpush1.msra.mxu0 0.0
    %570 = vmatprep.subr.mxu0 0.0
    %571 = vmatpush1.msra.mxu0 0.0
    %572 = vmatprep.subr.mxu0 0.0
    %573 = vmatpush1.msra.mxu0 0.0
    %574 = vmatprep.subr.mxu0 0.0
    %575 = vmatpush1.msra.mxu0 0.0
    %576 = vmatprep.subr.mxu0 0.0
    %577 = vmatpush1.msra.mxu0 0.0
    %578 = vmatprep.subr.mxu0 0.0
    %579 = vmatpush1.msra.mxu0 0.0
    %580 = vmatprep.subr.mxu0 0.0
    %581 = vmatpush1.msra.mxu0 0.0
    %582 = vmatprep.subr.mxu0 0.0
    %583 = vmatpush1.msra.mxu0 0.0
    %584 = vmatprep.subr.mxu0 0.0
    %585 = vmatpush1.msra.mxu0 0.0
    %586 = vmatprep.subr.mxu0 0.0
    %587 = vmatpush1.msra.mxu0 0.0
    %588 = vmatprep.subr.mxu0 0.0
    %589 = vmatpush1.msra.mxu0 0.0
    %590 = vmatprep.mubr.f32.mxu0 0.0
    %591 = vmatmul.mubr.f32.gmra.mrb[0].mxu0 %v524
    %v592 = vpop.f32.mrb[0].mxu0
    %v593 = vadd.f32 0.0, %v592
    %v594 = vpop.f32.mrb[0].mxu0
    %595 = vdwg.mxu0
    %596 = vrot.lane.b32.xlu0 %v338, 64
    %v597 = vpop.permute.xlu0 %596
    %v600 = vsel %vm344, %v519, 0
    %602 = vmatprep.subr.mxu0 0.0
    %603 = vmatpush1.msra.mxu0 %v597
    %604 = vmatprep.subr.mxu0 0.0
    %605 = vmatpush1.msra.mxu0 0.0
    %606 = vmatprep.subr.mxu0 0.0
    %607 = vmatpush1.msra.mxu0 0.0
    %608 = vmatprep.subr.mxu0 0.0
    %609 = vmatpush1.msra.mxu0 0.0
    %610 = vmatprep.subr.mxu0 0.0
    %611 = vmatpush1.msra.mxu0 0.0
    %612 = vmatprep.subr.mxu0 0.0
    %613 = vmatpush1.msra.mxu0 0.0
    %614 = vmatprep.subr.mxu0 0.0
    %615 = vmatpush1.msra.mxu0 0.0
    %616 = vmatprep.subr.mxu0 0.0
    %617 = vmatpush1.msra.mxu0 0.0
    %618 = vmatprep.subr.mxu0 0.0
    %619 = vmatpush1.msra.mxu0 0.0
    %620 = vmatprep.subr.mxu0 0.0
    %621 = vmatpush1.msra.mxu0 0.0
    %622 = vmatprep.subr.mxu0 0.0
    %623 = vmatpush1.msra.mxu0 0.0
    %624 = vmatprep.subr.mxu0 0.0
    %625 = vmatpush1.msra.mxu0 0.0
    %626 = vmatprep.subr.mxu0 0.0
    %627 = vmatpush1.msra.mxu0 0.0
    %628 = vmatprep.subr.mxu0 0.0
    %629 = vmatpush1.msra.mxu0 0.0
    %630 = vmatprep.subr.mxu0 0.0
    %631 = vmatpush1.msra.mxu0 0.0
    %632 = vmatprep.subr.mxu0 0.0
    %633 = vmatpush1.msra.mxu0 0.0
    %634 = vmatprep.subr.mxu0 0.0
    %635 = vmatpush1.msra.mxu0 0.0
    %636 = vmatprep.subr.mxu0 0.0
    %637 = vmatpush1.msra.mxu0 0.0
    %638 = vmatprep.subr.mxu0 0.0
    %639 = vmatpush1.msra.mxu0 0.0
    %640 = vmatprep.subr.mxu0 0.0
    %641 = vmatpush1.msra.mxu0 0.0
    %642 = vmatprep.subr.mxu0 0.0
    %643 = vmatpush1.msra.mxu0 0.0
    %644 = vmatprep.subr.mxu0 0.0
    %645 = vmatpush1.msra.mxu0 0.0
    %646 = vmatprep.subr.mxu0 0.0
    %647 = vmatpush1.msra.mxu0 0.0
    %648 = vmatprep.subr.mxu0 0.0
    %649 = vmatpush1.msra.mxu0 0.0
    %650 = vmatprep.subr.mxu0 0.0
    %651 = vmatpush1.msra.mxu0 0.0
    %652 = vmatprep.subr.mxu0 0.0
    %653 = vmatpush1.msra.mxu0 0.0
    %654 = vmatprep.subr.mxu0 0.0
    %655 = vmatpush1.msra.mxu0 0.0
    %656 = vmatprep.subr.mxu0 0.0
    %657 = vmatpush1.msra.mxu0 0.0
    %658 = vmatprep.subr.mxu0 0.0
    %659 = vmatpush1.msra.mxu0 0.0
    %660 = vmatprep.subr.mxu0 0.0
    %661 = vmatpush1.msra.mxu0 0.0
    %662 = vmatprep.subr.mxu0 0.0
    %663 = vmatpush1.msra.mxu0 0.0
    %664 = vmatprep.subr.mxu0 0.0
    %665 = vmatpush1.msra.mxu0 0.0
    %666 = vmatprep.mubr.f32.mxu0 0.0
    %667 = vmatmul.mubr.f32.gmra.mrb[0].mxu0 %v600
    %v668 = vpop.f32.mrb[0].mxu0
    %v669 = vadd.f32 0.0, %v668
    %v670 = vpop.f32.mrb[0].mxu0
    %671 = vdwg.mxu0
    %672 = vrot.lane.b32.xlu0 %v333, 120
    %v673 = vpop.permute.xlu0 %672
    %674 = vrot.lane.b32.xlu0 %v333, 88
    %v675 = vpop.permute.xlu0 %674
    %v676 = vsel %vm344, %v673, 0
    %v678 = vsel %vm344, %v675, 0
    %680 = vmatprep.subr.mxu0 0.0
    %681 = vmatpush1.xpose.msra.mxu0 %v678
    %682 = vmatprep.subr.mxu0 0.0
    %683 = vmatpush1.xpose.msra.mxu0 0.0
    %684 = vmatprep.subr.mxu0 0.0
    %685 = vmatpush1.xpose.msra.mxu0 0.0
    %686 = vmatprep.subr.mxu0 0.0
    %687 = vmatpush1.xpose.msra.mxu0 0.0
    %688 = vmatprep.subr.mxu0 0.0
    %689 = vmatpush1.xpose.msra.mxu0 0.0
    %690 = vmatprep.subr.mxu0 0.0
    %691 = vmatpush1.xpose.msra.mxu0 0.0
    %692 = vmatprep.subr.mxu0 0.0
    %693 = vmatpush1.xpose.msra.mxu0 0.0
    %694 = vmatprep.subr.mxu0 0.0
    %695 = vmatpush1.xpose.msra.mxu0 0.0
    %696 = vmatprep.subr.mxu0 0.0
    %697 = vmatpush1.xpose.msra.mxu0 0.0
    %698 = vmatprep.subr.mxu0 0.0
    %699 = vmatpush1.xpose.msra.mxu0 0.0
    %700 = vmatprep.subr.mxu0 0.0
    %701 = vmatpush1.xpose.msra.mxu0 0.0
    %702 = vmatprep.subr.mxu0 0.0
    %703 = vmatpush1.xpose.msra.mxu0 0.0
    %704 = vmatprep.subr.mxu0 0.0
    %705 = vmatpush1.xpose.msra.mxu0 0.0
    %706 = vmatprep.subr.mxu0 0.0
    %707 = vmatpush1.xpose.msra.mxu0 0.0
    %708 = vmatprep.subr.mxu0 0.0
    %709 = vmatpush1.xpose.msra.mxu0 0.0
    %710 = vmatprep.subr.mxu0 0.0
    %711 = vmatpush1.xpose.msra.mxu0 0.0
    %712 = vmatprep.subr.mxu0 0.0
    %713 = vmatpush1.xpose.msra.mxu0 0.0
    %714 = vmatprep.subr.mxu0 0.0
    %715 = vmatpush1.xpose.msra.mxu0 0.0
    %716 = vmatprep.subr.mxu0 0.0
    %717 = vmatpush1.xpose.msra.mxu0 0.0
    %718 = vmatprep.subr.mxu0 0.0
    %719 = vmatpush1.xpose.msra.mxu0 0.0
    %720 = vmatprep.subr.mxu0 0.0
    %721 = vmatpush1.xpose.msra.mxu0 0.0
    %722 = vmatprep.subr.mxu0 0.0
    %723 = vmatpush1.xpose.msra.mxu0 0.0
    %724 = vmatprep.subr.mxu0 0.0
    %725 = vmatpush1.xpose.msra.mxu0 0.0
    %726 = vmatprep.subr.mxu0 0.0
    %727 = vmatpush1.xpose.msra.mxu0 0.0
    %728 = vmatprep.subr.mxu0 0.0
    %729 = vmatpush1.xpose.msra.mxu0 0.0
    %730 = vmatprep.subr.mxu0 0.0
    %731 = vmatpush1.xpose.msra.mxu0 0.0
    %732 = vmatprep.subr.mxu0 0.0
    %733 = vmatpush1.xpose.msra.mxu0 0.0
    %734 = vmatprep.subr.mxu0 0.0
    %735 = vmatpush1.xpose.msra.mxu0 0.0
    %736 = vmatprep.subr.mxu0 0.0
    %737 = vmatpush1.xpose.msra.mxu0 0.0
    %738 = vmatprep.subr.mxu0 0.0
    %739 = vmatpush1.xpose.msra.mxu0 0.0
    %740 = vmatprep.subr.mxu0 0.0
    %741 = vmatpush1.xpose.msra.mxu0 0.0
    %742 = vmatprep.subr.mxu0 0.0
    %743 = vmatpush1.xpose.msra.mxu0 0.0
    %744 = vmatprep.mubr.f32.mxu0 0.0
    %745 = vmatmul.mubr.f32.gmra.mrb[0].mxu0 %v676
    %v746 = vpop.f32.mrb[0].mxu0
    %v747 = vadd.f32 0.0, %v746
    %v748 = vpop.f32.mrb[0].mxu0
    %749 = vdwg.mxu0
    %750 = vrot.lane.b32.xlu0 %v338, 120
    %v751 = vpop.permute.xlu0 %750
    %752 = vrot.lane.b32.xlu0 %v338, 88
    %v753 = vpop.permute.xlu0 %752
    %v754 = vsel %vm344, %v751, 0
    %v756 = vsel %vm344, %v753, 0
    %758 = vmatprep.subr.mxu0 0.0
    %759 = vmatpush1.xpose.msra.mxu0 %v756
    %760 = vmatprep.subr.mxu0 0.0
    %761 = vmatpush1.xpose.msra.mxu0 0.0
    %762 = vmatprep.subr.mxu0 0.0
    %763 = vmatpush1.xpose.msra.mxu0 0.0
    %764 = vmatprep.subr.mxu0 0.0
    %765 = vmatpush1.xpose.msra.mxu0 0.0
    %766 = vmatprep.subr.mxu0 0.0
    %767 = vmatpush1.xpose.msra.mxu0 0.0
    %768 = vmatprep.subr.mxu0 0.0
    %769 = vmatpush1.xpose.msra.mxu0 0.0
    %770 = vmatprep.subr.mxu0 0.0
    %771 = vmatpush1.xpose.msra.mxu0 0.0
    %772 = vmatprep.subr.mxu0 0.0
    %773 = vmatpush1.xpose.msra.mxu0 0.0
    %774 = vmatprep.subr.mxu0 0.0
    %775 = vmatpush1.xpose.msra.mxu0 0.0
    %776 = vmatprep.subr.mxu0 0.0
    %777 = vmatpush1.xpose.msra.mxu0 0.0
    %778 = vmatprep.subr.mxu0 0.0
    %779 = vmatpush1.xpose.msra.mxu0 0.0
    %780 = vmatprep.subr.mxu0 0.0
    %781 = vmatpush1.xpose.msra.mxu0 0.0
    %782 = vmatprep.subr.mxu0 0.0
    %783 = vmatpush1.xpose.msra.mxu0 0.0
    %784 = vmatprep.subr.mxu0 0.0
    %785 = vmatpush1.xpose.msra.mxu0 0.0
    %786 = vmatprep.subr.mxu0 0.0
    %787 = vmatpush1.xpose.msra.mxu0 0.0
    %788 = vmatprep.subr.mxu0 0.0
    %789 = vmatpush1.xpose.msra.mxu0 0.0
    %790 = vmatprep.subr.mxu0 0.0
    %791 = vmatpush1.xpose.msra.mxu0 0.0
    %792 = vmatprep.subr.mxu0 0.0
    %793 = vmatpush1.xpose.msra.mxu0 0.0
    %794 = vmatprep.subr.mxu0 0.0
    %795 = vmatpush1.xpose.msra.mxu0 0.0
    %796 = vmatprep.subr.mxu0 0.0
    %797 = vmatpush1.xpose.msra.mxu0 0.0
    %798 = vmatprep.subr.mxu0 0.0
    %799 = vmatpush1.xpose.msra.mxu0 0.0
    %800 = vmatprep.subr.mxu0 0.0
    %801 = vmatpush1.xpose.msra.mxu0 0.0
    %802 = vmatprep.subr.mxu0 0.0
    %803 = vmatpush1.xpose.msra.mxu0 0.0
    %804 = vmatprep.subr.mxu0 0.0
    %805 = vmatpush1.xpose.msra.mxu0 0.0
    %806 = vmatprep.subr.mxu0 0.0
    %807 = vmatpush1.xpose.msra.mxu0 0.0
    %808 = vmatprep.subr.mxu0 0.0
    %809 = vmatpush1.xpose.msra.mxu0 0.0
    %810 = vmatprep.subr.mxu0 0.0
    %811 = vmatpush1.xpose.msra.mxu0 0.0
    %812 = vmatprep.subr.mxu0 0.0
    %813 = vmatpush1.xpose.msra.mxu0 0.0
    %814 = vmatprep.subr.mxu0 0.0
    %815 = vmatpush1.xpose.msra.mxu0 0.0
    %816 = vmatprep.subr.mxu0 0.0
    %817 = vmatpush1.xpose.msra.mxu0 0.0
    %818 = vmatprep.subr.mxu0 0.0
    %819 = vmatpush1.xpose.msra.mxu0 0.0
    %820 = vmatprep.subr.mxu0 0.0
    %821 = vmatpush1.xpose.msra.mxu0 0.0
    %822 = vmatprep.mubr.f32.mxu0 0.0
    %823 = vmatmul.mubr.f32.gmra.mrb[0].mxu0 %v754
    %v824 = vpop.f32.mrb[0].mxu0
    %v825 = vadd.f32 0.0, %v824
    %v826 = vpop.f32.mrb[0].mxu0
    %827 = vdwg.mxu0
    %v828 = vmul.f32 %v747, 0.35355338
    %v829 = vmul.f32 %v825, 0.35355338
    %v830 = vsel %vm344, %v828, -inf
    %831 = vmax.xlane.f32.xlu0 %v830
    %v832 = vpop.xlane.xlu0 %831
    %v833 = vsel %vm344, %v829, -inf
    %834 = vmax.xlane.f32.xlu0 %v833
    %v835 = vpop.xlane.xlu0 %834
    %v836 = vsub.f32 %v828, %v832
    %v837 = vsub.f32 %v829, %v835
    %v838 = vmul.f32 %v836, 1.442695
    %v839 = vpow.pop %v838
    %v840 = vmul.f32 %v837, 1.442695
    %v841 = vpow.pop %v840
    %v842 = vsel %vm344, %v839, 0.0
    %843 = vadd.xlane.f32.xlu0 %v842
    %v844 = vpop.xlane.xlu0 %843
    %v845 = vsel %vm344, %v841, 0.0
    %846 = vadd.xlane.f32.xlu0 %v845
    %v847 = vpop.xlane.xlu0 %846
    %v848 = vrcp.pop %v844
    %v849 = vrcp.pop %v847
    %v850 = vmul.f32 %v839, %v848
    %v851 = vmul.f32 %v841, %v849
    %852 = vrot.lane.b32.xlu0 %v333, 56
    %v853 = vpop.permute.xlu0 %852
    %v856 = vsel %vm344, %v850, 0
    %858 = vmatprep.subr.mxu0 0.0
    %859 = vmatpush1.msra.mxu0 %v853
    %860 = vmatprep.subr.mxu0 0.0
    %861 = vmatpush1.msra.mxu0 0.0
    %862 = vmatprep.subr.mxu0 0.0
    %863 = vmatpush1.msra.mxu0 0.0
    %864 = vmatprep.subr.mxu0 0.0
    %865 = vmatpush1.msra.mxu0 0.0
    %866 = vmatprep.subr.mxu0 0.0
    %867 = vmatpush1.msra.mxu0 0.0
    %868 = vmatprep.subr.mxu0 0.0
    %869 = vmatpush1.msra.mxu0 0.0
    %870 = vmatprep.subr.mxu0 0.0
    %871 = vmatpush1.msra.mxu0 0.0
    %872 = vmatprep.subr.mxu0 0.0
    %873 = vmatpush1.msra.mxu0 0.0
    %874 = vmatprep.subr.mxu0 0.0
    %875 = vmatpush1.msra.mxu0 0.0
    %876 = vmatprep.subr.mxu0 0.0
    %877 = vmatpush1.msra.mxu0 0.0
    %878 = vmatprep.subr.mxu0 0.0
    %879 = vmatpush1.msra.mxu0 0.0
    %880 = vmatprep.subr.mxu0 0.0
    %881 = vmatpush1.msra.mxu0 0.0
    %882 = vmatprep.subr.mxu0 0.0
    %883 = vmatpush1.msra.mxu0 0.0
    %884 = vmatprep.subr.mxu0 0.0
    %885 = vmatpush1.msra.mxu0 0.0
    %886 = vmatprep.subr.mxu0 0.0
    %887 = vmatpush1.msra.mxu0 0.0
    %888 = vmatprep.subr.mxu0 0.0
    %889 = vmatpush1.msra.mxu0 0.0
    %890 = vmatprep.subr.mxu0 0.0
    %891 = vmatpush1.msra.mxu0 0.0
    %892 = vmatprep.subr.mxu0 0.0
    %893 = vmatpush1.msra.mxu0 0.0
    %894 = vmatprep.subr.mxu0 0.0
    %895 = vmatpush1.msra.mxu0 0.0
    %896 = vmatprep.subr.mxu0 0.0
    %897 = vmatpush1.msra.mxu0 0.0
    %898 = vmatprep.subr.mxu0 0.0
    %899 = vmatpush1.msra.mxu0 0.0
    %900 = vmatprep.subr.mxu0 0.0
    %901 = vmatpush1.msra.mxu0 0.0
    %902 = vmatprep.subr.mxu0 0.0
    %903 = vmatpush1.msra.mxu0 0.0
    %904 = vmatprep.subr.mxu0 0.0
    %905 = vmatpush1.msra.mxu0 0.0
    %906 = vmatprep.subr.mxu0 0.0
    %907 = vmatpush1.msra.mxu0 0.0
    %908 = vmatprep.subr.mxu0 0.0
    %909 = vmatpush1.msra.mxu0 0.0
    %910 = vmatprep.subr.mxu0 0.0
    %911 = vmatpush1.msra.mxu0 0.0
    %912 = vmatprep.subr.mxu0 0.0
    %913 = vmatpush1.msra.mxu0 0.0
    %914 = vmatprep.subr.mxu0 0.0
    %915 = vmatpush1.msra.mxu0 0.0
    %916 = vmatprep.subr.mxu0 0.0
    %917 = vmatpush1.msra.mxu0 0.0
    %918 = vmatprep.subr.mxu0 0.0
    %919 = vmatpush1.msra.mxu0 0.0
    %920 = vmatprep.subr.mxu0 0.0
    %921 = vmatpush1.msra.mxu0 0.0
    %922 = vmatprep.mubr.f32.mxu0 0.0
    %923 = vmatmul.mubr.f32.gmra.mrb[0].mxu0 %v856
    %v924 = vpop.f32.mrb[0].mxu0
    %v925 = vadd.f32 0.0, %v924
    %v926 = vpop.f32.mrb[0].mxu0
    %927 = vdwg.mxu0
    %928 = vrot.lane.b32.xlu0 %v338, 56
    %v929 = vpop.permute.xlu0 %928
    %v932 = vsel %vm344, %v851, 0
    %934 = vmatprep.subr.mxu0 0.0
    %935 = vmatpush1.msra.mxu0 %v929
    %936 = vmatprep.subr.mxu0 0.0
    %937 = vmatpush1.msra.mxu0 0.0
    %938 = vmatprep.subr.mxu0 0.0
    %939 = vmatpush1.msra.mxu0 0.0
    %940 = vmatprep.subr.mxu0 0.0
    %941 = vmatpush1.msra.mxu0 0.0
    %942 = vmatprep.subr.mxu0 0.0
    %943 = vmatpush1.msra.mxu0 0.0
    %944 = vmatprep.subr.mxu0 0.0
    %945 = vmatpush1.msra.mxu0 0.0
    %946 = vmatprep.subr.mxu0 0.0
    %947 = vmatpush1.msra.mxu0 0.0
    %948 = vmatprep.subr.mxu0 0.0
    %949 = vmatpush1.msra.mxu0 0.0
    %950 = vmatprep.subr.mxu0 0.0
    %951 = vmatpush1.msra.mxu0 0.0
    %952 = vmatprep.subr.mxu0 0.0
    %953 = vmatpush1.msra.mxu0 0.0
    %954 = vmatprep.subr.mxu0 0.0
    %955 = vmatpush1.msra.mxu0 0.0
    %956 = vmatprep.subr.mxu0 0.0
    %957 = vmatpush1.msra.mxu0 0.0
    %958 = vmatprep.subr.mxu0 0.0
    %959 = vmatpush1.msra.mxu0 0.0
    %960 = vmatprep.subr.mxu0 0.0
    %961 = vmatpush1.msra.mxu0 0.0
    %962 = vmatprep.subr.mxu0 0.0
    %963 = vmatpush1.msra.mxu0 0.0
    %964 = vmatprep.subr.mxu0 0.0
    %965 = vmatpush1.msra.mxu0 0.0
    %966 = vmatprep.subr.mxu0 0.0
    %967 = vmatpush1.msra.mxu0 0.0
    %968 = vmatprep.subr.mxu0 0.0
    %969 = vmatpush1.msra.mxu0 0.0
    %970 = vmatprep.subr.mxu0 0.0
    %971 = vmatpush1.msra.mxu0 0.0
    %972 = vmatprep.subr.mxu0 0.0
    %973 = vmatpush1.msra.mxu0 0.0
    %974 = vmatprep.subr.mxu0 0.0
    %975 = vmatpush1.msra.mxu0 0.0
    %976 = vmatprep.subr.mxu0 0.0
    %977 = vmatpush1.msra.mxu0 0.0
    %978 = vmatprep.subr.mxu0 0.0
    %979 = vmatpush1.msra.mxu0 0.0
    %980 = vmatprep.subr.mxu0 0.0
    %981 = vmatpush1.msra.mxu0 0.0
    %982 = vmatprep.subr.mxu0 0.0
    %983 = vmatpush1.msra.mxu0 0.0
    %984 = vmatprep.subr.mxu0 0.0
    %985 = vmatpush1.msra.mxu0 0.0
    %986 = vmatprep.subr.mxu0 0.0
    %987 = vmatpush1.msra.mxu0 0.0
    %988 = vmatprep.subr.mxu0 0.0
    %989 = vmatpush1.msra.mxu0 0.0
    %990 = vmatprep.subr.mxu0 0.0
    %991 = vmatpush1.msra.mxu0 0.0
    %992 = vmatprep.subr.mxu0 0.0
    %993 = vmatpush1.msra.mxu0 0.0
    %994 = vmatprep.subr.mxu0 0.0
    %995 = vmatpush1.msra.mxu0 0.0
    %996 = vmatprep.subr.mxu0 0.0
    %997 = vmatpush1.msra.mxu0 0.0
    %998 = vmatprep.mubr.f32.mxu0 0.0
    %999 = vmatmul.mubr.f32.gmra.mrb[0].mxu0 %v932
    %v1000 = vpop.f32.mrb[0].mxu0
    %v1001 = vadd.f32 0.0, %v1000
    %v1002 = vpop.f32.mrb[0].mxu0
    %1003 = vdwg.mxu0
    %1004 = vrot.lane.b32.xlu0 %v333, 112
    %v1005 = vpop.permute.xlu0 %1004
    %1006 = vrot.lane.b32.xlu0 %v333, 80
    %v1007 = vpop.permute.xlu0 %1006
    %v1008 = vsel %vm344, %v1005, 0
    %v1010 = vsel %vm344, %v1007, 0
    %1012 = vmatprep.subr.mxu0 0.0
    %1013 = vmatpush1.xpose.msra.mxu0 %v1010
    %1014 = vmatprep.subr.mxu0 0.0
    %1015 = vmatpush1.xpose.msra.mxu0 0.0
    %1016 = vmatprep.subr.mxu0 0.0
    %1017 = vmatpush1.xpose.msra.mxu0 0.0
    %1018 = vmatprep.subr.mxu0 0.0
    %1019 = vmatpush1.xpose.msra.mxu0 0.0
    %1020 = vmatprep.subr.mxu0 0.0
    %1021 = vmatpush1.xpose.msra.mxu0 0.0
    %1022 = vmatprep.subr.mxu0 0.0
    %1023 = vmatpush1.xpose.msra.mxu0 0.0
    %1024 = vmatprep.subr.mxu0 0.0
    %1025 = vmatpush1.xpose.msra.mxu0 0.0
    %1026 = vmatprep.subr.mxu0 0.0
    %1027 = vmatpush1.xpose.msra.mxu0 0.0
    %1028 = vmatprep.subr.mxu0 0.0
    %1029 = vmatpush1.xpose.msra.mxu0 0.0
    %1030 = vmatprep.subr.mxu0 0.0
    %1031 = vmatpush1.xpose.msra.mxu0 0.0
    %1032 = vmatprep.subr.mxu0 0.0
    %1033 = vmatpush1.xpose.msra.mxu0 0.0
    %1034 = vmatprep.subr.mxu0 0.0
    %1035 = vmatpush1.xpose.msra.mxu0 0.0
    %1036 = vmatprep.subr.mxu0 0.0
    %1037 = vmatpush1.xpose.msra.mxu0 0.0
    %1038 = vmatprep.subr.mxu0 0.0
    %1039 = vmatpush1.xpose.msra.mxu0 0.0
    %1040 = vmatprep.subr.mxu0 0.0
    %1041 = vmatpush1.xpose.msra.mxu0 0.0
    %1042 = vmatprep.subr.mxu0 0.0
    %1043 = vmatpush1.xpose.msra.mxu0 0.0
    %1044 = vmatprep.subr.mxu0 0.0
    %1045 = vmatpush1.xpose.msra.mxu0 0.0
    %1046 = vmatprep.subr.mxu0 0.0
    %1047 = vmatpush1.xpose.msra.mxu0 0.0
    %1048 = vmatprep.subr.mxu0 0.0
    %1049 = vmatpush1.xpose.msra.mxu0 0.0
    %1050 = vmatprep.subr.mxu0 0.0
    %1051 = vmatpush1.xpose.msra.mxu0 0.0
    %1052 = vmatprep.subr.mxu0 0.0
    %1053 = vmatpush1.xpose.msra.mxu0 0.0
    %1054 = vmatprep.subr.mxu0 0.0
    %1055 = vmatpush1.xpose.msra.mxu0 0.0
    %1056 = vmatprep.subr.mxu0 0.0
    %1057 = vmatpush1.xpose.msra.mxu0 0.0
    %1058 = vmatprep.subr.mxu0 0.0
    %1059 = vmatpush1.xpose.msra.mxu0 0.0
    %1060 = vmatprep.subr.mxu0 0.0
    %1061 = vmatpush1.xpose.msra.mxu0 0.0
    %1062 = vmatprep.subr.mxu0 0.0
    %1063 = vmatpush1.xpose.msra.mxu0 0.0
    %1064 = vmatprep.subr.mxu0 0.0
    %1065 = vmatpush1.xpose.msra.mxu0 0.0
    %1066 = vmatprep.subr.mxu0 0.0
    %1067 = vmatpush1.xpose.msra.mxu0 0.0
    %1068 = vmatprep.subr.mxu0 0.0
    %1069 = vmatpush1.xpose.msra.mxu0 0.0
    %1070 = vmatprep.subr.mxu0 0.0
    %1071 = vmatpush1.xpose.msra.mxu0 0.0
    %1072 = vmatprep.subr.mxu0 0.0
    %1073 = vmatpush1.xpose.msra.mxu0 0.0
    %1074 = vmatprep.subr.mxu0 0.0
    %1075 = vmatpush1.xpose.msra.mxu0 0.0
    %1076 = vmatprep.mubr.f32.mxu0 0.0
    %1077 = vmatmul.mubr.f32.gmra.mrb[0].mxu0 %v1008
    %v1078 = vpop.f32.mrb[0].mxu0
    %v1079 = vadd.f32 0.0, %v1078
    %v1080 = vpop.f32.mrb[0].mxu0
    %1081 = vdwg.mxu0
    %1082 = vrot.lane.b32.xlu0 %v338, 112
    %v1083 = vpop.permute.xlu0 %1082
    %1084 = vrot.lane.b32.xlu0 %v338, 80
    %v1085 = vpop.permute.xlu0 %1084
    %v1086 = vsel %vm344, %v1083, 0
    %v1088 = vsel %vm344, %v1085, 0
    %1090 = vmatprep.subr.mxu0 0.0
    %1091 = vmatpush1.xpose.msra.mxu0 %v1088
    %1092 = vmatprep.subr.mxu0 0.0
    %1093 = vmatpush1.xpose.msra.mxu0 0.0
    %1094 = vmatprep.subr.mxu0 0.0
    %1095 = vmatpush1.xpose.msra.mxu0 0.0
    %1096 = vmatprep.subr.mxu0 0.0
    %1097 = vmatpush1.xpose.msra.mxu0 0.0
    %1098 = vmatprep.subr.mxu0 0.0
    %1099 = vmatpush1.xpose.msra.mxu0 0.0
    %1100 = vmatprep.subr.mxu0 0.0
    %1101 = vmatpush1.xpose.msra.mxu0 0.0
    %1102 = vmatprep.subr.mxu0 0.0
    %1103 = vmatpush1.xpose.msra.mxu0 0.0
    %1104 = vmatprep.subr.mxu0 0.0
    %1105 = vmatpush1.xpose.msra.mxu0 0.0
    %1106 = vmatprep.subr.mxu0 0.0
    %1107 = vmatpush1.xpose.msra.mxu0 0.0
    %1108 = vmatprep.subr.mxu0 0.0
    %1109 = vmatpush1.xpose.msra.mxu0 0.0
    %1110 = vmatprep.subr.mxu0 0.0
    %1111 = vmatpush1.xpose.msra.mxu0 0.0
    %1112 = vmatprep.subr.mxu0 0.0
    %1113 = vmatpush1.xpose.msra.mxu0 0.0
    %1114 = vmatprep.subr.mxu0 0.0
    %1115 = vmatpush1.xpose.msra.mxu0 0.0
    %1116 = vmatprep.subr.mxu0 0.0
    %1117 = vmatpush1.xpose.msra.mxu0 0.0
    %1118 = vmatprep.subr.mxu0 0.0
    %1119 = vmatpush1.xpose.msra.mxu0 0.0
    %1120 = vmatprep.subr.mxu0 0.0
    %1121 = vmatpush1.xpose.msra.mxu0 0.0
    %1122 = vmatprep.subr.mxu0 0.0
    %1123 = vmatpush1.xpose.msra.mxu0 0.0
    %1124 = vmatprep.subr.mxu0 0.0
    %1125 = vmatpush1.xpose.msra.mxu0 0.0
    %1126 = vmatprep.subr.mxu0 0.0
    %1127 = vmatpush1.xpose.msra.mxu0 0.0
    %1128 = vmatprep.subr.mxu0 0.0
    %1129 = vmatpush1.xpose.msra.mxu0 0.0
    %1130 = vmatprep.subr.mxu0 0.0
    %1131 = vmatpush1.xpose.msra.mxu0 0.0
    %1132 = vmatprep.subr.mxu0 0.0
    %1133 = vmatpush1.xpose.msra.mxu0 0.0
    %1134 = vmatprep.subr.mxu0 0.0
    %1135 = vmatpush1.xpose.msra.mxu0 0.0
    %1136 = vmatprep.subr.mxu0 0.0
    %1137 = vmatpush1.xpose.msra.mxu0 0.0
    %1138 = vmatprep.subr.mxu0 0.0
    %1139 = vmatpush1.xpose.msra.mxu0 0.0
    %1140 = vmatprep.subr.mxu0 0.0
    %1141 = vmatpush1.xpose.msra.mxu0 0.0
    %1142 = vmatprep.subr.mxu0 0.0
    %1143 = vmatpush1.xpose.msra.mxu0 0.0
    %1144 = vmatprep.subr.mxu0 0.0
    %1145 = vmatpush1.xpose.msra.mxu0 0.0
    %1146 = vmatprep.subr.mxu0 0.0
    %1147 = vmatpush1.xpose.msra.mxu0 0.0
    %1148 = vmatprep.subr.mxu0 0.0
    %1149 = vmatpush1.xpose.msra.mxu0 0.0
    %1150 = vmatprep.subr.mxu0 0.0
    %1151 = vmatpush1.xpose.msra.mxu0 0.0
    %1152 = vmatprep.subr.mxu0 0.0
    %1153 = vmatpush1.xpose.msra.mxu0 0.0
    %1154 = vmatprep.mubr.f32.mxu0 0.0
    %1155 = vmatmul.mubr.f32.gmra.mrb[0].mxu0 %v1086
    %v1156 = vpop.f32.mrb[0].mxu0
    %v1157 = vadd.f32 0.0, %v1156
    %v1158 = vpop.f32.mrb[0].mxu0
    %1159 = vdwg.mxu0
    %v1160 = vmul.f32 %v1079, 0.35355338
    %v1161 = vmul.f32 %v1157, 0.35355338
    %v1162 = vsel %vm344, %v1160, -inf
    %1163 = vmax.xlane.f32.xlu0 %v1162
    %v1164 = vpop.xlane.xlu0 %1163
    %v1165 = vsel %vm344, %v1161, -inf
    %1166 = vmax.xlane.f32.xlu0 %v1165
    %v1167 = vpop.xlane.xlu0 %1166
    %v1168 = vsub.f32 %v1160, %v1164
    %v1169 = vsub.f32 %v1161, %v1167
    %v1170 = vmul.f32 %v1168, 1.442695
    %v1171 = vpow.pop %v1170
    %v1172 = vmul.f32 %v1169, 1.442695
    %v1173 = vpow.pop %v1172
    %v1174 = vsel %vm344, %v1171, 0.0
    %1175 = vadd.xlane.f32.xlu0 %v1174
    %v1176 = vpop.xlane.xlu0 %1175
    %v1177 = vsel %vm344, %v1173, 0.0
    %1178 = vadd.xlane.f32.xlu0 %v1177
    %v1179 = vpop.xlane.xlu0 %1178
    %v1180 = vrcp.pop %v1176
    %v1181 = vrcp.pop %v1179
    %v1182 = vmul.f32 %v1171, %v1180
    %v1183 = vmul.f32 %v1173, %v1181
    %1184 = vrot.lane.b32.xlu0 %v333, 48
    %v1185 = vpop.permute.xlu0 %1184
    %v1188 = vsel %vm344, %v1182, 0
    %1190 = vmatprep.subr.mxu0 0.0
    %1191 = vmatpush1.msra.mxu0 %v1185
    %1192 = vmatprep.subr.mxu0 0.0
    %1193 = vmatpush1.msra.mxu0 0.0
    %1194 = vmatprep.subr.mxu0 0.0
    %1195 = vmatpush1.msra.mxu0 0.0
    %1196 = vmatprep.subr.mxu0 0.0
    %1197 = vmatpush1.msra.mxu0 0.0
    %1198 = vmatprep.subr.mxu0 0.0
    %1199 = vmatpush1.msra.mxu0 0.0
    %1200 = vmatprep.subr.mxu0 0.0
    %1201 = vmatpush1.msra.mxu0 0.0
    %1202 = vmatprep.subr.mxu0 0.0
    %1203 = vmatpush1.msra.mxu0 0.0
    %1204 = vmatprep.subr.mxu0 0.0
    %1205 = vmatpush1.msra.mxu0 0.0
    %1206 = vmatprep.subr.mxu0 0.0
    %1207 = vmatpush1.msra.mxu0 0.0
    %1208 = vmatprep.subr.mxu0 0.0
    %1209 = vmatpush1.msra.mxu0 0.0
    %1210 = vmatprep.subr.mxu0 0.0
    %1211 = vmatpush1.msra.mxu0 0.0
    %1212 = vmatprep.subr.mxu0 0.0
    %1213 = vmatpush1.msra.mxu0 0.0
    %1214 = vmatprep.subr.mxu0 0.0
    %1215 = vmatpush1.msra.mxu0 0.0
    %1216 = vmatprep.subr.mxu0 0.0
    %1217 = vmatpush1.msra.mxu0 0.0
    %1218 = vmatprep.subr.mxu0 0.0
    %1219 = vmatpush1.msra.mxu0 0.0
    %1220 = vmatprep.subr.mxu0 0.0
    %1221 = vmatpush1.msra.mxu0 0.0
    %1222 = vmatprep.subr.mxu0 0.0
    %1223 = vmatpush1.msra.mxu0 0.0
    %1224 = vmatprep.subr.mxu0 0.0
    %1225 = vmatpush1.msra.mxu0 0.0
    %1226 = vmatprep.subr.mxu0 0.0
    %1227 = vmatpush1.msra.mxu0 0.0
    %1228 = vmatprep.subr.mxu0 0.0
    %1229 = vmatpush1.msra.mxu0 0.0
    %1230 = vmatprep.subr.mxu0 0.0
    %1231 = vmatpush1.msra.mxu0 0.0
    %1232 = vmatprep.subr.mxu0 0.0
    %1233 = vmatpush1.msra.mxu0 0.0
    %1234 = vmatprep.subr.mxu0 0.0
    %1235 = vmatpush1.msra.mxu0 0.0
    %1236 = vmatprep.subr.mxu0 0.0
    %1237 = vmatpush1.msra.mxu0 0.0
    %1238 = vmatprep.subr.mxu0 0.0
    %1239 = vmatpush1.msra.mxu0 0.0
    %1240 = vmatprep.subr.mxu0 0.0
    %1241 = vmatpush1.msra.mxu0 0.0
    %1242 = vmatprep.subr.mxu0 0.0
    %1243 = vmatpush1.msra.mxu0 0.0
    %1244 = vmatprep.subr.mxu0 0.0
    %1245 = vmatpush1.msra.mxu0 0.0
    %1246 = vmatprep.subr.mxu0 0.0
    %1247 = vmatpush1.msra.mxu0 0.0
    %1248 = vmatprep.subr.mxu0 0.0
    %1249 = vmatpush1.msra.mxu0 0.0
    %1250 = vmatprep.subr.mxu0 0.0
    %1251 = vmatpush1.msra.mxu0 0.0
    %1252 = vmatprep.subr.mxu0 0.0
    %1253 = vmatpush1.msra.mxu0 0.0
    %1254 = vmatprep.mubr.f32.mxu0 0.0
    %1255 = vmatmul.mubr.f32.gmra.mrb[0].mxu0 %v1188
    %v1256 = vpop.f32.mrb[0].mxu0
    %v1257 = vadd.f32 0.0, %v1256
    %v1258 = vpop.f32.mrb[0].mxu0
    %1259 = vdwg.mxu0
    %1260 = vrot.lane.b32.xlu0 %v338, 48
    %v1261 = vpop.permute.xlu0 %1260
    %v1264 = vsel %vm344, %v1183, 0
    %1266 = vmatprep.subr.mxu0 0.0
    %1267 = vmatpush1.msra.mxu0 %v1261
    %1268 = vmatprep.subr.mxu0 0.0
    %1269 = vmatpush1.msra.mxu0 0.0
    %1270 = vmatprep.subr.mxu0 0.0
    %1271 = vmatpush1.msra.mxu0 0.0
    %1272 = vmatprep.subr.mxu0 0.0
    %1273 = vmatpush1.msra.mxu0 0.0
    %1274 = vmatprep.subr.mxu0 0.0
    %1275 = vmatpush1.msra.mxu0 0.0
    %1276 = vmatprep.subr.mxu0 0.0
    %1277 = vmatpush1.msra.mxu0 0.0
    %1278 = vmatprep.subr.mxu0 0.0
    %1279 = vmatpush1.msra.mxu0 0.0
    %1280 = vmatprep.subr.mxu0 0.0
    %1281 = vmatpush1.msra.mxu0 0.0
    %1282 = vmatprep.subr.mxu0 0.0
    %1283 = vmatpush1.msra.mxu0 0.0
    %1284 = vmatprep.subr.mxu0 0.0
    %1285 = vmatpush1.msra.mxu0 0.0
    %1286 = vmatprep.subr.mxu0 0.0
    %1287 = vmatpush1.msra.mxu0 0.0
    %1288 = vmatprep.subr.mxu0 0.0
    %1289 = vmatpush1.msra.mxu0 0.0
    %1290 = vmatprep.subr.mxu0 0.0
    %1291 = vmatpush1.msra.mxu0 0.0
    %1292 = vmatprep.subr.mxu0 0.0
    %1293 = vmatpush1.msra.mxu0 0.0
    %1294 = vmatprep.subr.mxu0 0.0
    %1295 = vmatpush1.msra.mxu0 0.0
    %1296 = vmatprep.subr.mxu0 0.0
    %1297 = vmatpush1.msra.mxu0 0.0
    %1298 = vmatprep.subr.mxu0 0.0
    %1299 = vmatpush1.msra.mxu0 0.0
    %1300 = vmatprep.subr.mxu0 0.0
    %1301 = vmatpush1.msra.mxu0 0.0
    %1302 = vmatprep.subr.mxu0 0.0
    %1303 = vmatpush1.msra.mxu0 0.0
    %1304 = vmatprep.subr.mxu0 0.0
    %1305 = vmatpush1.msra.mxu0 0.0
    %1306 = vmatprep.subr.mxu0 0.0
    %1307 = vmatpush1.msra.mxu0 0.0
    %1308 = vmatprep.subr.mxu0 0.0
    %1309 = vmatpush1.msra.mxu0 0.0
    %1310 = vmatprep.subr.mxu0 0.0
    %1311 = vmatpush1.msra.mxu0 0.0
    %1312 = vmatprep.subr.mxu0 0.0
    %1313 = vmatpush1.msra.mxu0 0.0
    %1314 = vmatprep.subr.mxu0 0.0
    %1315 = vmatpush1.msra.mxu0 0.0
    %1316 = vmatprep.subr.mxu0 0.0
    %1317 = vmatpush1.msra.mxu0 0.0
    %1318 = vmatprep.subr.mxu0 0.0
    %1319 = vmatpush1.msra.mxu0 0.0
    %1320 = vmatprep.subr.mxu0 0.0
    %1321 = vmatpush1.msra.mxu0 0.0
    %1322 = vmatprep.subr.mxu0 0.0
    %1323 = vmatpush1.msra.mxu0 0.0
    %1324 = vmatprep.subr.mxu0 0.0
    %1325 = vmatpush1.msra.mxu0 0.0
    %1326 = vmatprep.subr.mxu0 0.0
    %1327 = vmatpush1.msra.mxu0 0.0
    %1328 = vmatprep.subr.mxu0 0.0
    %1329 = vmatpush1.msra.mxu0 0.0
    %1330 = vmatprep.mubr.f32.mxu0 0.0
    %1331 = vmatmul.mubr.f32.gmra.mrb[0].mxu0 %v1264
    %v1332 = vpop.f32.mrb[0].mxu0
    %v1333 = vadd.f32 0.0, %v1332
    %v1334 = vpop.f32.mrb[0].mxu0
    %1335 = vdwg.mxu0
    %1336 = vrot.lane.b32.xlu0 %v333, 104
    %v1337 = vpop.permute.xlu0 %1336
    %1338 = vrot.lane.b32.xlu0 %v333, 72
    %v1339 = vpop.permute.xlu0 %1338
    %v1340 = vsel %vm344, %v1337, 0
    %v1342 = vsel %vm344, %v1339, 0
    %1344 = vmatprep.subr.mxu0 0.0
    %1345 = vmatpush1.xpose.msra.mxu0 %v1342
    %1346 = vmatprep.subr.mxu0 0.0
    %1347 = vmatpush1.xpose.msra.mxu0 0.0
    %1348 = vmatprep.subr.mxu0 0.0
    %1349 = vmatpush1.xpose.msra.mxu0 0.0
    %1350 = vmatprep.subr.mxu0 0.0
    %1351 = vmatpush1.xpose.msra.mxu0 0.0
    %1352 = vmatprep.subr.mxu0 0.0
    %1353 = vmatpush1.xpose.msra.mxu0 0.0
    %1354 = vmatprep.subr.mxu0 0.0
    %1355 = vmatpush1.xpose.msra.mxu0 0.0
    %1356 = vmatprep.subr.mxu0 0.0
    %1357 = vmatpush1.xpose.msra.mxu0 0.0
    %1358 = vmatprep.subr.mxu0 0.0
    %1359 = vmatpush1.xpose.msra.mxu0 0.0
    %1360 = vmatprep.subr.mxu0 0.0
    %1361 = vmatpush1.xpose.msra.mxu0 0.0
    %1362 = vmatprep.subr.mxu0 0.0
    %1363 = vmatpush1.xpose.msra.mxu0 0.0
    %1364 = vmatprep.subr.mxu0 0.0
    %1365 = vmatpush1.xpose.msra.mxu0 0.0
    %1366 = vmatprep.subr.mxu0 0.0
    %1367 = vmatpush1.xpose.msra.mxu0 0.0
    %1368 = vmatprep.subr.mxu0 0.0
    %1369 = vmatpush1.xpose.msra.mxu0 0.0
    %1370 = vmatprep.subr.mxu0 0.0
    %1371 = vmatpush1.xpose.msra.mxu0 0.0
    %1372 = vmatprep.subr.mxu0 0.0
    %1373 = vmatpush1.xpose.msra.mxu0 0.0
    %1374 = vmatprep.subr.mxu0 0.0
    %1375 = vmatpush1.xpose.msra.mxu0 0.0
    %1376 = vmatprep.subr.mxu0 0.0
    %1377 = vmatpush1.xpose.msra.mxu0 0.0
    %1378 = vmatprep.subr.mxu0 0.0
    %1379 = vmatpush1.xpose.msra.mxu0 0.0
    %1380 = vmatprep.subr.mxu0 0.0
    %1381 = vmatpush1.xpose.msra.mxu0 0.0
    %1382 = vmatprep.subr.mxu0 0.0
    %1383 = vmatpush1.xpose.msra.mxu0 0.0
    %1384 = vmatprep.subr.mxu0 0.0
    %1385 = vmatpush1.xpose.msra.mxu0 0.0
    %1386 = vmatprep.subr.mxu0 0.0
    %1387 = vmatpush1.xpose.msra.mxu0 0.0
    %1388 = vmatprep.subr.mxu0 0.0
    %1389 = vmatpush1.xpose.msra.mxu0 0.0
    %1390 = vmatprep.subr.mxu0 0.0
    %1391 = vmatpush1.xpose.msra.mxu0 0.0
    %1392 = vmatprep.subr.mxu0 0.0
    %1393 = vmatpush1.xpose.msra.mxu0 0.0
    %1394 = vmatprep.subr.mxu0 0.0
    %1395 = vmatpush1.xpose.msra.mxu0 0.0
    %1396 = vmatprep.subr.mxu0 0.0
    %1397 = vmatpush1.xpose.msra.mxu0 0.0
    %1398 = vmatprep.subr.mxu0 0.0
    %1399 = vmatpush1.xpose.msra.mxu0 0.0
    %1400 = vmatprep.subr.mxu0 0.0
    %1401 = vmatpush1.xpose.msra.mxu0 0.0
    %1402 = vmatprep.subr.mxu0 0.0
    %1403 = vmatpush1.xpose.msra.mxu0 0.0
    %1404 = vmatprep.subr.mxu0 0.0
    %1405 = vmatpush1.xpose.msra.mxu0 0.0
    %1406 = vmatprep.subr.mxu0 0.0
    %1407 = vmatpush1.xpose.msra.mxu0 0.0
    %1408 = vmatprep.mubr.f32.mxu0 0.0
    %1409 = vmatmul.mubr.f32.gmra.mrb[0].mxu0 %v1340
    %v1410 = vpop.f32.mrb[0].mxu0
    %v1411 = vadd.f32 0.0, %v1410
    %v1412 = vpop.f32.mrb[0].mxu0
    %1413 = vdwg.mxu0
    %1414 = vrot.lane.b32.xlu0 %v338, 104
    %v1415 = vpop.permute.xlu0 %1414
    %1416 = vrot.lane.b32.xlu0 %v338, 72
    %v1417 = vpop.permute.xlu0 %1416
    %v1418 = vsel %vm344, %v1415, 0
    %v1420 = vsel %vm344, %v1417, 0
    %1422 = vmatprep.subr.mxu0 0.0
    %1423 = vmatpush1.xpose.msra.mxu0 %v1420
    %1424 = vmatprep.subr.mxu0 0.0
    %1425 = vmatpush1.xpose.msra.mxu0 0.0
    %1426 = vmatprep.subr.mxu0 0.0
    %1427 = vmatpush1.xpose.msra.mxu0 0.0
    %1428 = vmatprep.subr.mxu0 0.0
    %1429 = vmatpush1.xpose.msra.mxu0 0.0
    %1430 = vmatprep.subr.mxu0 0.0
    %1431 = vmatpush1.xpose.msra.mxu0 0.0
    %1432 = vmatprep.subr.mxu0 0.0
    %1433 = vmatpush1.xpose.msra.mxu0 0.0
    %1434 = vmatprep.subr.mxu0 0.0
    %1435 = vmatpush1.xpose.msra.mxu0 0.0
    %1436 = vmatprep.subr.mxu0 0.0
    %1437 = vmatpush1.xpose.msra.mxu0 0.0
    %1438 = vmatprep.subr.mxu0 0.0
    %1439 = vmatpush1.xpose.msra.mxu0 0.0
    %1440 = vmatprep.subr.mxu0 0.0
    %1441 = vmatpush1.xpose.msra.mxu0 0.0
    %1442 = vmatprep.subr.mxu0 0.0
    %1443 = vmatpush1.xpose.msra.mxu0 0.0
    %1444 = vmatprep.subr.mxu0 0.0
    %1445 = vmatpush1.xpose.msra.mxu0 0.0
    %1446 = vmatprep.subr.mxu0 0.0
    %1447 = vmatpush1.xpose.msra.mxu0 0.0
    %1448 = vmatprep.subr.mxu0 0.0
    %1449 = vmatpush1.xpose.msra.mxu0 0.0
    %1450 = vmatprep.subr.mxu0 0.0
    %1451 = vmatpush1.xpose.msra.mxu0 0.0
    %1452 = vmatprep.subr.mxu0 0.0
    %1453 = vmatpush1.xpose.msra.mxu0 0.0
    %1454 = vmatprep.subr.mxu0 0.0
    %1455 = vmatpush1.xpose.msra.mxu0 0.0
    %1456 = vmatprep.subr.mxu0 0.0
    %1457 = vmatpush1.xpose.msra.mxu0 0.0
    %1458 = vmatprep.subr.mxu0 0.0
    %1459 = vmatpush1.xpose.msra.mxu0 0.0
    %1460 = vmatprep.subr.mxu0 0.0
    %1461 = vmatpush1.xpose.msra.mxu0 0.0
    %1462 = vmatprep.subr.mxu0 0.0
    %1463 = vmatpush1.xpose.msra.mxu0 0.0
    %1464 = vmatprep.subr.mxu0 0.0
    %1465 = vmatpush1.xpose.msra.mxu0 0.0
    %1466 = vmatprep.subr.mxu0 0.0
    %1467 = vmatpush1.xpose.msra.mxu0 0.0
    %1468 = vmatprep.subr.mxu0 0.0
    %1469 = vmatpush1.xpose.msra.mxu0 0.0
    %1470 = vmatprep.subr.mxu0 0.0
    %1471 = vmatpush1.xpose.msra.mxu0 0.0
    %1472 = vmatprep.subr.mxu0 0.0
    %1473 = vmatpush1.xpose.msra.mxu0 0.0
    %1474 = vmatprep.subr.mxu0 0.0
    %1475 = vmatpush1.xpose.msra.mxu0 0.0
    %1476 = vmatprep.subr.mxu0 0.0
    %1477 = vmatpush1.xpose.msra.mxu0 0.0
    %1478 = vmatprep.subr.mxu0 0.0
    %1479 = vmatpush1.xpose.msra.mxu0 0.0
    %1480 = vmatprep.subr.mxu0 0.0
    %1481 = vmatpush1.xpose.msra.mxu0 0.0
    %1482 = vmatprep.subr.mxu0 0.0
    %1483 = vmatpush1.xpose.msra.mxu0 0.0
    %1484 = vmatprep.subr.mxu0 0.0
    %1485 = vmatpush1.xpose.msra.mxu0 0.0
    %1486 = vmatprep.mubr.f32.mxu0 0.0
    %1487 = vmatmul.mubr.f32.gmra.mrb[0].mxu0 %v1418
    %v1488 = vpop.f32.mrb[0].mxu0
    %v1489 = vadd.f32 0.0, %v1488
    %v1490 = vpop.f32.mrb[0].mxu0
    %1491 = vdwg.mxu0
    %v1492 = vmul.f32 %v1411, 0.35355338
    %v1493 = vmul.f32 %v1489, 0.35355338
    %v1494 = vsel %vm344, %v1492, -inf
    %1495 = vmax.xlane.f32.xlu0 %v1494
    %v1496 = vpop.xlane.xlu0 %1495
    %v1497 = vsel %vm344, %v1493, -inf
    %1498 = vmax.xlane.f32.xlu0 %v1497
    %v1499 = vpop.xlane.xlu0 %1498
    %v1500 = vsub.f32 %v1492, %v1496
    %v1501 = vsub.f32 %v1493, %v1499
    %v1502 = vmul.f32 %v1500, 1.442695
    %v1503 = vpow.pop %v1502
    %v1504 = vmul.f32 %v1501, 1.442695
    %v1505 = vpow.pop %v1504
    %v1506 = vsel %vm344, %v1503, 0.0
    %1507 = vadd.xlane.f32.xlu0 %v1506
    %v1508 = vpop.xlane.xlu0 %1507
    %v1509 = vsel %vm344, %v1505, 0.0
    %1510 = vadd.xlane.f32.xlu0 %v1509
    %v1511 = vpop.xlane.xlu0 %1510
    %v1512 = vrcp.pop %v1508
    %v1513 = vrcp.pop %v1511
    %v1514 = vmul.f32 %v1503, %v1512
    %v1515 = vmul.f32 %v1505, %v1513
    %1516 = vrot.lane.b32.xlu0 %v333, 40
    %v1517 = vpop.permute.xlu0 %1516
    %v1520 = vsel %vm344, %v1514, 0
    %1522 = vmatprep.subr.mxu0 0.0
    %1523 = vmatpush1.msra.mxu0 %v1517
    %1524 = vmatprep.subr.mxu0 0.0
    %1525 = vmatpush1.msra.mxu0 0.0
    %1526 = vmatprep.subr.mxu0 0.0
    %1527 = vmatpush1.msra.mxu0 0.0
    %1528 = vmatprep.subr.mxu0 0.0
    %1529 = vmatpush1.msra.mxu0 0.0
    %1530 = vmatprep.subr.mxu0 0.0
    %1531 = vmatpush1.msra.mxu0 0.0
    %1532 = vmatprep.subr.mxu0 0.0
    %1533 = vmatpush1.msra.mxu0 0.0
    %1534 = vmatprep.subr.mxu0 0.0
    %1535 = vmatpush1.msra.mxu0 0.0
    %1536 = vmatprep.subr.mxu0 0.0
    %1537 = vmatpush1.msra.mxu0 0.0
    %1538 = vmatprep.subr.mxu0 0.0
    %1539 = vmatpush1.msra.mxu0 0.0
    %1540 = vmatprep.subr.mxu0 0.0
    %1541 = vmatpush1.msra.mxu0 0.0
    %1542 = vmatprep.subr.mxu0 0.0
    %1543 = vmatpush1.msra.mxu0 0.0
    %1544 = vmatprep.subr.mxu0 0.0
    %1545 = vmatpush1.msra.mxu0 0.0
    %1546 = vmatprep.subr.mxu0 0.0
    %1547 = vmatpush1.msra.mxu0 0.0
    %1548 = vmatprep.subr.mxu0 0.0
    %1549 = vmatpush1.msra.mxu0 0.0
    %1550 = vmatprep.subr.mxu0 0.0
    %1551 = vmatpush1.msra.mxu0 0.0
    %1552 = vmatprep.subr.mxu0 0.0
    %1553 = vmatpush1.msra.mxu0 0.0
    %1554 = vmatprep.subr.mxu0 0.0
    %1555 = vmatpush1.msra.mxu0 0.0
    %1556 = vmatprep.subr.mxu0 0.0
    %1557 = vmatpush1.msra.mxu0 0.0
    %1558 = vmatprep.subr.mxu0 0.0
    %1559 = vmatpush1.msra.mxu0 0.0
    %1560 = vmatprep.subr.mxu0 0.0
    %1561 = vmatpush1.msra.mxu0 0.0
    %1562 = vmatprep.subr.mxu0 0.0
    %1563 = vmatpush1.msra.mxu0 0.0
    %1564 = vmatprep.subr.mxu0 0.0
    %1565 = vmatpush1.msra.mxu0 0.0
    %1566 = vmatprep.subr.mxu0 0.0
    %1567 = vmatpush1.msra.mxu0 0.0
    %1568 = vmatprep.subr.mxu0 0.0
    %1569 = vmatpush1.msra.mxu0 0.0
    %1570 = vmatprep.subr.mxu0 0.0
    %1571 = vmatpush1.msra.mxu0 0.0
    %1572 = vmatprep.subr.mxu0 0.0
    %1573 = vmatpush1.msra.mxu0 0.0
    %1574 = vmatprep.subr.mxu0 0.0
    %1575 = vmatpush1.msra.mxu0 0.0
    %1576 = vmatprep.subr.mxu0 0.0
    %1577 = vmatpush1.msra.mxu0 0.0
    %1578 = vmatprep.subr.mxu0 0.0
    %1579 = vmatpush1.msra.mxu0 0.0
    %1580 = vmatprep.subr.mxu0 0.0
    %1581 = vmatpush1.msra.mxu0 0.0
    %1582 = vmatprep.subr.mxu0 0.0
    %1583 = vmatpush1.msra.mxu0 0.0
    %1584 = vmatprep.subr.mxu0 0.0
    %1585 = vmatpush1.msra.mxu0 0.0
    %1586 = vmatprep.mubr.f32.mxu0 0.0
    %1587 = vmatmul.mubr.f32.gmra.mrb[0].mxu0 %v1520
    %v1588 = vpop.f32.mrb[0].mxu0
    %v1589 = vadd.f32 0.0, %v1588
    %v1590 = vpop.f32.mrb[0].mxu0
    %1591 = vdwg.mxu0
    %1592 = vrot.lane.b32.xlu0 %v338, 40
    %v1593 = vpop.permute.xlu0 %1592
    %v1596 = vsel %vm344, %v1515, 0
    %1598 = vmatprep.subr.mxu0 0.0
    %1599 = vmatpush1.msra.mxu0 %v1593
    %1600 = vmatprep.subr.mxu0 0.0
    %1601 = vmatpush1.msra.mxu0 0.0
    %1602 = vmatprep.subr.mxu0 0.0
    %1603 = vmatpush1.msra.mxu0 0.0
    %1604 = vmatprep.subr.mxu0 0.0
    %1605 = vmatpush1.msra.mxu0 0.0
    %1606 = vmatprep.subr.mxu0 0.0
    %1607 = vmatpush1.msra.mxu0 0.0
    %1608 = vmatprep.subr.mxu0 0.0
    %1609 = vmatpush1.msra.mxu0 0.0
    %1610 = vmatprep.subr.mxu0 0.0
    %1611 = vmatpush1.msra.mxu0 0.0
    %1612 = vmatprep.subr.mxu0 0.0
    %1613 = vmatpush1.msra.mxu0 0.0
    %1614 = vmatprep.subr.mxu0 0.0
    %1615 = vmatpush1.msra.mxu0 0.0
    %1616 = vmatprep.subr.mxu0 0.0
    %1617 = vmatpush1.msra.mxu0 0.0
    %1618 = vmatprep.subr.mxu0 0.0
    %1619 = vmatpush1.msra.mxu0 0.0
    %1620 = vmatprep.subr.mxu0 0.0
    %1621 = vmatpush1.msra.mxu0 0.0
    %1622 = vmatprep.subr.mxu0 0.0
    %1623 = vmatpush1.msra.mxu0 0.0
    %1624 = vmatprep.subr.mxu0 0.0
    %1625 = vmatpush1.msra.mxu0 0.0
    %1626 = vmatprep.subr.mxu0 0.0
    %1627 = vmatpush1.msra.mxu0 0.0
    %1628 = vmatprep.subr.mxu0 0.0
    %1629 = vmatpush1.msra.mxu0 0.0
    %1630 = vmatprep.subr.mxu0 0.0
    %1631 = vmatpush1.msra.mxu0 0.0
    %1632 = vmatprep.subr.mxu0 0.0
    %1633 = vmatpush1.msra.mxu0 0.0
    %1634 = vmatprep.subr.mxu0 0.0
    %1635 = vmatpush1.msra.mxu0 0.0
    %1636 = vmatprep.subr.mxu0 0.0
    %1637 = vmatpush1.msra.mxu0 0.0
    %1638 = vmatprep.subr.mxu0 0.0
    %1639 = vmatpush1.msra.mxu0 0.0
    %1640 = vmatprep.subr.mxu0 0.0
    %1641 = vmatpush1.msra.mxu0 0.0
    %1642 = vmatprep.subr.mxu0 0.0
    %1643 = vmatpush1.msra.mxu0 0.0
    %1644 = vmatprep.subr.mxu0 0.0
    %1645 = vmatpush1.msra.mxu0 0.0
    %1646 = vmatprep.subr.mxu0 0.0
    %1647 = vmatpush1.msra.mxu0 0.0
    %1648 = vmatprep.subr.mxu0 0.0
    %1649 = vmatpush1.msra.mxu0 0.0
    %1650 = vmatprep.subr.mxu0 0.0
    %1651 = vmatpush1.msra.mxu0 0.0
    %1652 = vmatprep.subr.mxu0 0.0
    %1653 = vmatpush1.msra.mxu0 0.0
    %1654 = vmatprep.subr.mxu0 0.0
    %1655 = vmatpush1.msra.mxu0 0.0
    %1656 = vmatprep.subr.mxu0 0.0
    %1657 = vmatpush1.msra.mxu0 0.0
    %1658 = vmatprep.subr.mxu0 0.0
    %1659 = vmatpush1.msra.mxu0 0.0
    %1660 = vmatprep.subr.mxu0 0.0
    %1661 = vmatpush1.msra.mxu0 0.0
    %1662 = vmatprep.mubr.f32.mxu0 0.0
    %1663 = vmatmul.mubr.f32.gmra.mrb[0].mxu0 %v1596
    %v1664 = vpop.f32.mrb[0].mxu0
    %v1665 = vadd.f32 0.0, %v1664
    %v1666 = vpop.f32.mrb[0].mxu0
    %1667 = vdwg.mxu0
    %1670 = vrot.lane.b32.xlu0 %v925, 8
    %v1671 = vpop.permute.xlu0 %1670
    %1672 = vrot.lane.b32.xlu0 %v1001, 8
    %v1673 = vpop.permute.xlu0 %1672
    %1678 = vrot.lane.b32.xlu0 %v1257, 16
    %v1679 = vpop.permute.xlu0 %1678
    %1680 = vrot.lane.b32.xlu0 %v1333, 16
    %v1681 = vpop.permute.xlu0 %1680
    %1686 = vrot.lane.b32.xlu0 %v1589, 24
    %v1687 = vpop.permute.xlu0 %1686
    %1688 = vrot.lane.b32.xlu0 %v1665, 24
    %v1689 = vpop.permute.xlu0 %1688
    %v1692 = vsel %vm344, %v593, %v1671
    %v1693 = vsel %vm344, %v669, %v1673
    %v1694 = vsel %vm166, %v1692, %v1679
    %v1695 = vsel %vm166, %v1693, %v1681
    %vm1696 = vcmask 195584
    %v1697 = vsel %vm1696, %v1694, %v1687
    %v1698 = vsel %vm1696, %v1695, %v1689
    %v1699 = vld [vmem:[%s5] sm:$0xff]
    %v1700 = vld [vmem:[%s5 + $0x8] sm:$0xff]
    %v1701 = vld [vmem:[%s5 + $0x10] sm:$0xff]
    %v1702 = vld [vmem:[%s5 + $0x18] sm:$0xff]
    %v1703 = vld [vmem:[%s6] sm:$0x1]
    %v1705 = vlaneseq
    %v1706 = vshrl.u32 %v1705, 7
    %v1707 = vsub.s32 0, %v1706
    %v1708 = vrot.slane %v1703, %v1707
    %v1711 = vsel %vm259, %v1697, 0
    %v1714 = vsel %vm259, %v1698, 0
    %1716 = vmatprep.subr.mxu0 0.0
    %1717 = vmatpush1.msra.mxu0 %v1699
    %1718 = vmatprep.subr.mxu0 0.0
    %1719 = vmatpush1.msra.mxu0 %v1700
    %1720 = vmatprep.subr.mxu0 0.0
    %1721 = vmatpush1.msra.mxu0 %v1701
    %1722 = vmatprep.subr.mxu0 0.0
    %1723 = vmatpush1.msra.mxu0 %v1702
    %1724 = vmatprep.subr.mxu0 0.0
    %1725 = vmatpush1.msra.mxu0 0.0
    %1726 = vmatprep.subr.mxu0 0.0
    %1727 = vmatpush1.msra.mxu0 0.0
    %1728 = vmatprep.subr.mxu0 0.0
    %1729 = vmatpush1.msra.mxu0 0.0
    %1730 = vmatprep.subr.mxu0 0.0
    %1731 = vmatpush1.msra.mxu0 0.0
    %1732 = vmatprep.subr.mxu0 0.0
    %1733 = vmatpush1.msra.mxu0 0.0
    %1734 = vmatprep.subr.mxu0 0.0
    %1735 = vmatpush1.msra.mxu0 0.0
    %1736 = vmatprep.subr.mxu0 0.0
    %1737 = vmatpush1.msra.mxu0 0.0
    %1738 = vmatprep.subr.mxu0 0.0
    %1739 = vmatpush1.msra.mxu0 0.0
    %1740 = vmatprep.subr.mxu0 0.0
    %1741 = vmatpush1.msra.mxu0 0.0
    %1742 = vmatprep.subr.mxu0 0.0
    %1743 = vmatpush1.msra.mxu0 0.0
    %1744 = vmatprep.subr.mxu0 0.0
    %1745 = vmatpush1.msra.mxu0 0.0
    %1746 = vmatprep.subr.mxu0 0.0
    %1747 = vmatpush1.msra.mxu0 0.0
    %1748 = vmatprep.subr.mxu0 0.0
    %1749 = vmatpush1.msra.mxu0 0.0
    %1750 = vmatprep.subr.mxu0 0.0
    %1751 = vmatpush1.msra.mxu0 0.0
    %1752 = vmatprep.subr.mxu0 0.0
    %1753 = vmatpush1.msra.mxu0 0.0
    %1754 = vmatprep.subr.mxu0 0.0
    %1755 = vmatpush1.msra.mxu0 0.0
    %1756 = vmatprep.subr.mxu0 0.0
    %1757 = vmatpush1.msra.mxu0 0.0
    %1758 = vmatprep.subr.mxu0 0.0
    %1759 = vmatpush1.msra.mxu0 0.0
    %1760 = vmatprep.subr.mxu0 0.0
    %1761 = vmatpush1.msra.mxu0 0.0
    %1762 = vmatprep.subr.mxu0 0.0
    %1763 = vmatpush1.msra.mxu0 0.0
    %1764 = vmatprep.subr.mxu0 0.0
    %1765 = vmatpush1.msra.mxu0 0.0
    %1766 = vmatprep.subr.mxu0 0.0
    %1767 = vmatpush1.msra.mxu0 0.0
    %1768 = vmatprep.subr.mxu0 0.0
    %1769 = vmatpush1.msra.mxu0 0.0
    %1770 = vmatprep.subr.mxu0 0.0
    %1771 = vmatpush1.msra.mxu0 0.0
    %1772 = vmatprep.subr.mxu0 0.0
    %1773 = vmatpush1.msra.mxu0 0.0
    %1774 = vmatprep.subr.mxu0 0.0
    %1775 = vmatpush1.msra.mxu0 0.0
    %1776 = vmatprep.subr.mxu0 0.0
    %1777 = vmatpush1.msra.mxu0 0.0
    %1778 = vmatprep.subr.mxu0 0.0
    %1779 = vmatpush1.msra.mxu0 0.0
    %1780 = vmatprep.mubr.f32.mxu0 0.0
    %1781 = vmatmul.mubr.f32.gmra.mrb[0].mxu0 %v1711
    %v1782 = vpop.f32.mrb[0].mxu0
    %v1783 = vadd.f32 %v1708, %v1782
    %v1784 = vpop.f32.mrb[0].mxu0
    %1785 = vmatprep.mubr.f32.mxu0 0.0
    %1786 = vmatmul.mubr.f32.gmra.mrb[0].mxu0 %v1714
    %v1787 = vpop.f32.mrb[0].mxu0
    %v1788 = vadd.f32 %v1708, %v1787
    %v1789 = vpop.f32.mrb[0].mxu0
    %1790 = vdwg.mxu0
    %v1791 = vadd.f32 %v240, %v1783
    %v1792 = vadd.f32 %v245, %v1788
    %v1793 = vld [vmem:[%s7] sm:$0x1]
    %v1794 = vld [vmem:[%s8] sm:$0x1]
    %v1795 = vsel %vm259, %v1791, 0.0
    %1796 = vadd.xlane.f32.xlu0 %v1795
    %v1797 = vpop.xlane.xlu0 %1796
    %v1798 = vsel %vm259, %v1792, 0.0
    %1799 = vadd.xlane.f32.xlu0 %v1798
    %v1800 = vpop.xlane.xlu0 %1799
    %v1801 = vrcp.pop 32.0
    %v1802 = vmul.f32 %v1797, %v1801
    %v1803 = vmul.f32 %v1800, %v1801
    %v1804 = vmul.f32 %v1791, %v1791
    %v1805 = vmul.f32 %v1792, %v1792
    %v1806 = vsel %vm259, %v1804, 0.0
    %1807 = vadd.xlane.f32.xlu0 %v1806
    %v1808 = vpop.xlane.xlu0 %1807
    %v1809 = vsel %vm259, %v1805, 0.0
    %1810 = vadd.xlane.f32.xlu0 %v1809
    %v1811 = vpop.xlane.xlu0 %1810
    %v1812 = vmul.f32 %v1808, %v1801
    %v1813 = vmul.f32 %v1811, %v1801
    %v1814 = vmul.f32 %v1802, %v1802
    %v1815 = vmul.f32 %v1803, %v1803
    %v1816 = vsub.f32 %v1812, %v1814
    %v1817 = vsub.f32 %v1813, %v1815
    %v1818 = vsub.f32 %v1791, %v1802
    %v1819 = vsub.f32 %v1792, %v1803
    %v1820 = vadd.f32 %v1816, 1e-05
    %v1821 = vadd.f32 %v1817, 1e-05
    %v1822 = vrsqrt.pop %v1820
    %v1823 = vrsqrt.pop %v1821
    %v1824 = vmul.f32 %v1818, %v1822
    %v1825 = vmul.f32 %v1819, %v1823
    %v1827 = vlaneseq
    %v1828 = vshrl.u32 %v1827, 7
    %v1829 = vsub.s32 0, %v1828
    %v1830 = vrot.slane %v1793, %v1829
    %v1832 = vmul.f32 %v1824, %v1830
    %v1833 = vmul.f32 %v1825, %v1830
    %v1835 = vlaneseq
    %v1836 = vshrl.u32 %v1835, 7
    %v1837 = vsub.s32 0, %v1836
    %v1838 = vrot.slane %v1794, %v1837
    %v1840 = vadd.f32 %v1832, %v1838
    %v1841 = vadd.f32 %v1833, %v1838
    %v1842 = vld [vmem:[%s9] sm:$0xff]
    %v1843 = vld [vmem:[%s9 + $0x8] sm:$0xff]
    %v1844 = vld [vmem:[%s9 + $0x10] sm:$0xff]
    %v1845 = vld [vmem:[%s9 + $0x18] sm:$0xff]
    %v1846 = vld [vmem:[#allocation5] sm:$0x1]
    %v1848 = vlaneseq
    %v1849 = vshrl.u32 %v1848, 7
    %v1850 = vsub.s32 0, %v1849
    %v1851 = vrot.slane %v1846, %v1850
    %v1854 = vsel %vm259, %v1840, 0
    %v1857 = vsel %vm259, %v1841, 0
    %1859 = vmatprep.subr.mxu0 0.0
    %1860 = vmatpush1.msra.mxu0 %v1842
    %1861 = vmatprep.subr.mxu0 0.0
    %1862 = vmatpush1.msra.mxu0 %v1843
    %1863 = vmatprep.subr.mxu0 0.0
    %1864 = vmatpush1.msra.mxu0 %v1844
    %1865 = vmatprep.subr.mxu0 0.0
    %1866 = vmatpush1.msra.mxu0 %v1845
    %1867 = vmatprep.subr.mxu0 0.0
    %1868 = vmatpush1.msra.mxu0 0.0
    %1869 = vmatprep.subr.mxu0 0.0
    %1870 = vmatpush1.msra.mxu0 0.0
    %1871 = vmatprep.subr.mxu0 0.0
    %1872 = vmatpush1.msra.mxu0 0.0
    %1873 = vmatprep.subr.mxu0 0.0
    %1874 = vmatpush1.msra.mxu0 0.0
    %1875 = vmatprep.subr.mxu0 0.0
    %1876 = vmatpush1.msra.mxu0 0.0
    %1877 = vmatprep.subr.mxu0 0.0
    %1878 = vmatpush1.msra.mxu0 0.0
    %1879 = vmatprep.subr.mxu0 0.0
    %1880 = vmatpush1.msra.mxu0 0.0
    %1881 = vmatprep.subr.mxu0 0.0
    %1882 = vmatpush1.msra.mxu0 0.0
    %1883 = vmatprep.subr.mxu0 0.0
    %1884 = vmatpush1.msra.mxu0 0.0
    %1885 = vmatprep.subr.mxu0 0.0
    %1886 = vmatpush1.msra.mxu0 0.0
    %1887 = vmatprep.subr.mxu0 0.0
    %1888 = vmatpush1.msra.mxu0 0.0
    %1889 = vmatprep.subr.mxu0 0.0
    %1890 = vmatpush1.msra.mxu0 0.0
    %1891 = vmatprep.subr.mxu0 0.0
    %1892 = vmatpush1.msra.mxu0 0.0
    %1893 = vmatprep.subr.mxu0 0.0
    %1894 = vmatpush1.msra.mxu0 0.0
    %1895 = vmatprep.subr.mxu0 0.0
    %1896 = vmatpush1.msra.mxu0 0.0
    %1897 = vmatprep.subr.mxu0 0.0
    %1898 = vmatpush1.msra.mxu0 0.0
    %1899 = vmatprep.subr.mxu0 0.0
    %1900 = vmatpush1.msra.mxu0 0.0
    %1901 = vmatprep.subr.mxu0 0.0
    %1902 = vmatpush1.msra.mxu0 0.0
    %1903 = vmatprep.subr.mxu0 0.0
    %1904 = vmatpush1.msra.mxu0 0.0
    %1905 = vmatprep.subr.mxu0 0.0
    %1906 = vmatpush1.msra.mxu0 0.0
    %1907 = vmatprep.subr.mxu0 0.0
    %1908 = vmatpush1.msra.mxu0 0.0
    %1909 = vmatprep.subr.mxu0 0.0
    %1910 = vmatpush1.msra.mxu0 0.0
    %1911 = vmatprep.subr.mxu0 0.0
    %1912 = vmatpush1.msra.mxu0 0.0
    %1913 = vmatprep.subr.mxu0 0.0
    %1914 = vmatpush1.msra.mxu0 0.0
    %1915 = vmatprep.subr.mxu0 0.0
    %1916 = vmatpush1.msra.mxu0 0.0
    %1917 = vmatprep.subr.mxu0 0.0
    %1918 = vmatpush1.msra.mxu0 0.0
    %1919 = vmatprep.subr.mxu0 0.0
    %1920 = vmatpush1.msra.mxu0 0.0
    %1921 = vmatprep.subr.mxu0 0.0
    %1922 = vmatpush1.msra.mxu0 0.0
    %1923 = vmatprep.mubr.f32.mxu0 0.0
    %1924 = vmatmul.mubr.f32.gmra.mrb[0].mxu0 %v1854
    %v1925 = vpop.f32.mrb[0].mxu0
    %v1926 = vadd.f32 %v1851, %v1925
    %v1927 = vpop.f32.mrb[0].mxu0
    %1928 = vmatprep.mubr.f32.mxu0 0.0
    %1929 = vmatmul.mubr.f32.gmra.mrb[0].mxu0 %v1857
    %v1930 = vpop.f32.mrb[0].mxu0
    %v1931 = vadd.f32 %v1851, %v1930
    %v1932 = vpop.f32.mrb[0].mxu0
    %1933 = vdwg.mxu0
    %v1934 = vmax.f32 %v1926, 0.0
    %v1935 = vmax.f32 %v1931, 0.0
    %v1936 = vld [vmem:[%s11] sm:$0xff]
    %v1937 = vld [vmem:[%s11 + $0x8] sm:$0xff]
    %v1938 = vld [vmem:[%s11 + $0x10] sm:$0xff]
    %v1939 = vld [vmem:[%s11 + $0x18] sm:$0xff]
    %v1940 = vld [vmem:[%s11 + $0x20] sm:$0xff]
    %v1941 = vld [vmem:[%s11 + $0x28] sm:$0xff]
    %v1942 = vld [vmem:[%s11 + $0x30] sm:$0xff]
    %v1943 = vld [vmem:[%s11 + $0x38] sm:$0xff]
    %v1944 = vld [vmem:[#allocation7] sm:$0x1]
    %v1946 = vlaneseq
    %v1947 = vshrl.u32 %v1946, 7
    %v1948 = vsub.s32 0, %v1947
    %v1949 = vrot.slane %v1944, %v1948
    %vm1951 = vcmask 523264
    %v1953 = vsel %vm1951, %v1934, 0
    %v1956 = vsel %vm1951, %v1935, 0
    %1958 = vmatprep.subr.mxu0 0.0
    %1959 = vmatpush1.msra.mxu0 %v1936
    %1960 = vmatprep.subr.mxu0 0.0
    %1961 = vmatpush1.msra.mxu0 %v1937
    %1962 = vmatprep.subr.mxu0 0.0
    %1963 = vmatpush1.msra.mxu0 %v1938
    %1964 = vmatprep.subr.mxu0 0.0
    %1965 = vmatpush1.msra.mxu0 %v1939
    %1966 = vmatprep.subr.mxu0 0.0
    %1967 = vmatpush1.msra.mxu0 %v1940
    %1968 = vmatprep.subr.mxu0 0.0
    %1969 = vmatpush1.msra.mxu0 %v1941
    %1970 = vmatprep.subr.mxu0 0.0
    %1971 = vmatpush1.msra.mxu0 %v1942
    %1972 = vmatprep.subr.mxu0 0.0
    %1973 = vmatpush1.msra.mxu0 %v1943
    %1974 = vmatprep.subr.mxu0 0.0
    %1975 = vmatpush1.msra.mxu0 0.0
    %1976 = vmatprep.subr.mxu0 0.0
    %1977 = vmatpush1.msra.mxu0 0.0
    %1978 = vmatprep.subr.mxu0 0.0
    %1979 = vmatpush1.msra.mxu0 0.0
    %1980 = vmatprep.subr.mxu0 0.0
    %1981 = vmatpush1.msra.mxu0 0.0
    %1982 = vmatprep.subr.mxu0 0.0
    %1983 = vmatpush1.msra.mxu0 0.0
    %1984 = vmatprep.subr.mxu0 0.0
    %1985 = vmatpush1.msra.mxu0 0.0
    %1986 = vmatprep.subr.mxu0 0.0
    %1987 = vmatpush1.msra.mxu0 0.0
    %1988 = vmatprep.subr.mxu0 0.0
    %1989 = vmatpush1.msra.mxu0 0.0
    %1990 = vmatprep.subr.mxu0 0.0
    %1991 = vmatpush1.msra.mxu0 0.0
    %1992 = vmatprep.subr.mxu0 0.0
    %1993 = vmatpush1.msra.mxu0 0.0
    %1994 = vmatprep.subr.mxu0 0.0
    %1995 = vmatpush1.msra.mxu0 0.0
    %1996 = vmatprep.subr.mxu0 0.0
    %1997 = vmatpush1.msra.mxu0 0.0
    %1998 = vmatprep.subr.mxu0 0.0
    %1999 = vmatpush1.msra.mxu0 0.0
    %2000 = vmatprep.subr.mxu0 0.0
    %2001 = vmatpush1.msra.mxu0 0.0
    %2002 = vmatprep.subr.mxu0 0.0
    %2003 = vmatpush1.msra.mxu0 0.0
    %2004 = vmatprep.subr.mxu0 0.0
    %2005 = vmatpush1.msra.mxu0 0.0
    %2006 = vmatprep.subr.mxu0 0.0
    %2007 = vmatpush1.msra.mxu0 0.0
    %2008 = vmatprep.subr.mxu0 0.0
    %2009 = vmatpush1.msra.mxu0 0.0
    %2010 = vmatprep.subr.mxu0 0.0
    %2011 = vmatpush1.msra.mxu0 0.0
    %2012 = vmatprep.subr.mxu0 0.0
    %2013 = vmatpush1.msra.mxu0 0.0
    %2014 = vmatprep.subr.mxu0 0.0
    %2015 = vmatpush1.msra.mxu0 0.0
    %2016 = vmatprep.subr.mxu0 0.0
    %2017 = vmatpush1.msra.mxu0 0.0
    %2018 = vmatprep.subr.mxu0 0.0
    %2019 = vmatpush1.msra.mxu0 0.0
    %2020 = vmatprep.subr.mxu0 0.0
    %2021 = vmatpush1.msra.mxu0 0.0
    %2022 = vmatprep.mubr.f32.mxu0 0.0
    %2023 = vmatmul.mubr.f32.gmra.mrb[0].mxu0 %v1953
    %v2024 = vpop.f32.mrb[0].mxu0
    %v2025 = vadd.f32 %v1949, %v2024
    %v2026 = vpop.f32.mrb[0].mxu0
    %2027 = vmatprep.mubr.f32.mxu0 0.0
    %2028 = vmatmul.mubr.f32.gmra.mrb[0].mxu0 %v1956
    %v2029 = vpop.f32.mrb[0].mxu0
    %v2030 = vadd.f32 %v1949, %v2029
    %v2031 = vpop.f32.mrb[0].mxu0
    %2032 = vdwg.mxu0
    %v2033 = vadd.f32 %v1840, %v2025
    %v2034 = vadd.f32 %v1841, %v2030
    %v2035 = vld [vmem:[#allocation8] sm:$0x1]
    %v2036 = vld [vmem:[#allocation10] sm:$0x1]
    %v2037 = vsel %vm259, %v2033, 0.0
    %2038 = vadd.xlane.f32.xlu0 %v2037
    %v2039 = vpop.xlane.xlu0 %2038
    %v2040 = vsel %vm259, %v2034, 0.0
    %2041 = vadd.xlane.f32.xlu0 %v2040
    %v2042 = vpop.xlane.xlu0 %2041
    %v2043 = vmul.f32 %v2039, %v1801
    %v2044 = vmul.f32 %v2042, %v1801
    %v2045 = vmul.f32 %v2033, %v2033
    %v2046 = vmul.f32 %v2034, %v2034
    %v2047 = vsel %vm259, %v2045, 0.0
    %2048 = vadd.xlane.f32.xlu0 %v2047
    %v2049 = vpop.xlane.xlu0 %2048
    %v2050 = vsel %vm259, %v2046, 0.0
    %2051 = vadd.xlane.f32.xlu0 %v2050
    %v2052 = vpop.xlane.xlu0 %2051
    %v2053 = vmul.f32 %v2049, %v1801
    %v2054 = vmul.f32 %v2052, %v1801
    %v2055 = vmul.f32 %v2043, %v2043
    %v2056 = vmul.f32 %v2044, %v2044
    %v2057 = vsub.f32 %v2053, %v2055
    %v2058 = vsub.f32 %v2054, %v2056
    %v2059 = vsub.f32 %v2033, %v2043
    %v2060 = vsub.f32 %v2034, %v2044
    %v2061 = vadd.f32 %v2057, 1e-05
    %v2062 = vadd.f32 %v2058, 1e-05
    %v2063 = vrsqrt.pop %v2061
    %v2064 = vrsqrt.pop %v2062
    %v2065 = vmul.f32 %v2059, %v2063
    %v2066 = vmul.f32 %v2060, %v2064
    %v2068 = vlaneseq
    %v2069 = vshrl.u32 %v2068, 7
    %v2070 = vsub.s32 0, %v2069
    %v2071 = vrot.slane %v2035, %v2070
    %v2073 = vmul.f32 %v2065, %v2071
    %v2074 = vmul.f32 %v2066, %v2071
    %v2076 = vlaneseq
    %v2077 = vshrl.u32 %v2076, 7
    %v2078 = vsub.s32 0, %v2077
    %v2079 = vrot.slane %v2036, %v2078
    %v2081 = vadd.f32 %v2073, %v2079
    %v2082 = vadd.f32 %v2074, %v2079
    %s2083 = scalar_lea.vmem %s3, 32
    %v2084 = vld [vmem:[%s2083] sm:$0xff]
    %v2085 = vld [vmem:[%s2083 + $0x8] sm:$0xff]
    %v2086 = vld [vmem:[%s2083 + $0x10] sm:$0xff]
    %v2087 = vld [vmem:[%s2083 + $0x18] sm:$0xff]
    %s2088 = scalar_lea.vmem %s4, 1
    %v2089 = vld [vmem:[%s2088] sm:$0x1]
    %v2091 = vlaneseq
    %v2092 = vshrl.u32 %v2091, 7
    %v2093 = vsub.s32 0, %v2092
    %v2094 = vrot.slane %v2089, %v2093
    %v2097 = vsel %vm259, %v2081, 0
    %v2100 = vsel %vm259, %v2082, 0
    %2102 = vmatprep.subr.mxu0 0.0
    %2103 = vmatpush1.msra.mxu0 %v2084
    %2104 = vmatprep.subr.mxu0 0.0
    %2105 = vmatpush1.msra.mxu0 %v2085
    %2106 = vmatprep.subr.mxu0 0.0
    %2107 = vmatpush1.msra.mxu0 %v2086
    %2108 = vmatprep.subr.mxu0 0.0
    %2109 = vmatpush1.msra.mxu0 %v2087
    %2110 = vmatprep.subr.mxu0 0.0
    %2111 = vmatpush1.msra.mxu0 0.0
    %2112 = vmatprep.subr.mxu0 0.0
    %2113 = vmatpush1.msra.mxu0 0.0
    %2114 = vmatprep.subr.mxu0 0.0
    %2115 = vmatpush1.msra.mxu0 0.0
    %2116 = vmatprep.subr.mxu0 0.0
    %2117 = vmatpush1.msra.mxu0 0.0
    %2118 = vmatprep.subr.mxu0 0.0
    %2119 = vmatpush1.msra.mxu0 0.0
    %2120 = vmatprep.subr.mxu0 0.0
    %2121 = vmatpush1.msra.mxu0 0.0
    %2122 = vmatprep.subr.mxu0 0.0
    %2123 = vmatpush1.msra.mxu0 0.0
    %2124 = vmatprep.subr.mxu0 0.0
    %2125 = vmatpush1.msra.mxu0 0.0
    %2126 = vmatprep.subr.mxu0 0.0
    %2127 = vmatpush1.msra.mxu0 0.0
    %2128 = vmatprep.subr.mxu0 0.0
    %2129 = vmatpush1.msra.mxu0 0.0
    %2130 = vmatprep.subr.mxu0 0.0
    %2131 = vmatpush1.msra.mxu0 0.0
    %2132 = vmatprep.subr.mxu0 0.0
    %2133 = vmatpush1.msra.mxu0 0.0
    %2134 = vmatprep.subr.mxu0 0.0
    %2135 = vmatpush1.msra.mxu0 0.0
    %2136 = vmatprep.subr.mxu0 0.0
    %2137 = vmatpush1.msra.mxu0 0.0
    %2138 = vmatprep.subr.mxu0 0.0
    %2139 = vmatpush1.msra.mxu0 0.0
    %2140 = vmatprep.subr.mxu0 0.0
    %2141 = vmatpush1.msra.mxu0 0.0
    %2142 = vmatprep.subr.mxu0 0.0
    %2143 = vmatpush1.msra.mxu0 0.0
    %2144 = vmatprep.subr.mxu0 0.0
    %2145 = vmatpush1.msra.mxu0 0.0
    %2146 = vmatprep.subr.mxu0 0.0
    %2147 = vmatpush1.msra.mxu0 0.0
    %2148 = vmatprep.subr.mxu0 0.0
    %2149 = vmatpush1.msra.mxu0 0.0
    %2150 = vmatprep.subr.mxu0 0.0
    %2151 = vmatpush1.msra.mxu0 0.0
    %2152 = vmatprep.subr.mxu0 0.0
    %2153 = vmatpush1.msra.mxu0 0.0
    %2154 = vmatprep.subr.mxu0 0.0
    %2155 = vmatpush1.msra.mxu0 0.0
    %2156 = vmatprep.subr.mxu0 0.0
    %2157 = vmatpush1.msra.mxu0 0.0
    %2158 = vmatprep.subr.mxu0 0.0
    %2159 = vmatpush1.msra.mxu0 0.0
    %2160 = vmatprep.subr.mxu0 0.0
    %2161 = vmatpush1.msra.mxu0 0.0
    %2162 = vmatprep.subr.mxu0 0.0
    %2163 = vmatpush1.msra.mxu0 0.0
    %2164 = vmatprep.subr.mxu0 0.0
    %2165 = vmatpush1.msra.mxu0 0.0
    %2166 = vmatprep.mubr.f32.mxu0 0.0
    %2167 = vmatmul.mubr.f32.gmra.mrb[0].mxu0 %v2097
    %v2168 = vpop.f32.mrb[0].mxu0
    %v2169 = vadd.f32 %v2094, %v2168
    %v2170 = vpop.f32.mrb[0].mxu0
    %2171 = vmatprep.mubr.f32.mxu0 0.0
    %2172 = vmatmul.mubr.f32.gmra.mrb[0].mxu0 %v2100
    %v2173 = vpop.f32.mrb[0].mxu0
    %v2174 = vadd.f32 %v2094, %v2173
    %v2175 = vpop.f32.mrb[0].mxu0
    %2176 = vdwg.mxu0
    %2178 = vrot.lane.b32.xlu0 %v2169, 96
    %v2179 = vpop.permute.xlu0 %2178
    %v2180 = vsel %vm344, %v2169, 0
    %v2182 = vsel %vm344, %v2179, 0
    %2184 = vmatprep.subr.mxu0 0.0
    %2185 = vmatpush1.xpose.msra.mxu0 %v2182
    %2186 = vmatprep.subr.mxu0 0.0
    %2187 = vmatpush1.xpose.msra.mxu0 0.0
    %2188 = vmatprep.subr.mxu0 0.0
    %2189 = vmatpush1.xpose.msra.mxu0 0.0
    %2190 = vmatprep.subr.mxu0 0.0
    %2191 = vmatpush1.xpose.msra.mxu0 0.0
    %2192 = vmatprep.subr.mxu0 0.0
    %2193 = vmatpush1.xpose.msra.mxu0 0.0
    %2194 = vmatprep.subr.mxu0 0.0
    %2195 = vmatpush1.xpose.msra.mxu0 0.0
    %2196 = vmatprep.subr.mxu0 0.0
    %2197 = vmatpush1.xpose.msra.mxu0 0.0
    %2198 = vmatprep.subr.mxu0 0.0
    %2199 = vmatpush1.xpose.msra.mxu0 0.0
    %2200 = vmatprep.subr.mxu0 0.0
    %2201 = vmatpush1.xpose.msra.mxu0 0.0
    %2202 = vmatprep.subr.mxu0 0.0
    %2203 = vmatpush1.xpose.msra.mxu0 0.0
    %2204 = vmatprep.subr.mxu0 0.0
    %2205 = vmatpush1.xpose.msra.mxu0 0.0
    %2206 = vmatprep.subr.mxu0 0.0
    %2207 = vmatpush1.xpose.msra.mxu0 0.0
    %2208 = vmatprep.subr.mxu0 0.0
    %2209 = vmatpush1.xpose.msra.mxu0 0.0
    %2210 = vmatprep.subr.mxu0 0.0
    %2211 = vmatpush1.xpose.msra.mxu0 0.0
    %2212 = vmatprep.subr.mxu0 0.0
    %2213 = vmatpush1.xpose.msra.mxu0 0.0
    %2214 = vmatprep.subr.mxu0 0.0
    %2215 = vmatpush1.xpose.msra.mxu0 0.0
    %2216 = vmatprep.subr.mxu0 0.0
    %2217 = vmatpush1.xpose.msra.mxu0 0.0
    %2218 = vmatprep.subr.mxu0 0.0
    %2219 = vmatpush1.xpose.msra.mxu0 0.0
    %2220 = vmatprep.subr.mxu0 0.0
    %2221 = vmatpush1.xpose.msra.mxu0 0.0
    %2222 = vmatprep.subr.mxu0 0.0
    %2223 = vmatpush1.xpose.msra.mxu0 0.0
    %2224 = vmatprep.subr.mxu0 0.0
    %2225 = vmatpush1.xpose.msra.mxu0 0.0
    %2226 = vmatprep.subr.mxu0 0.0
    %2227 = vmatpush1.xpose.msra.mxu0 0.0
    %2228 = vmatprep.subr.mxu0 0.0
    %2229 = vmatpush1.xpose.msra.mxu0 0.0
    %2230 = vmatprep.subr.mxu0 0.0
    %2231 = vmatpush1.xpose.msra.mxu0 0.0
    %2232 = vmatprep.subr.mxu0 0.0
    %2233 = vmatpush1.xpose.msra.mxu0 0.0
    %2234 = vmatprep.subr.mxu0 0.0
    %2235 = vmatpush1.xpose.msra.mxu0 0.0
    %2236 = vmatprep.subr.mxu0 0.0
    %2237 = vmatpush1.xpose.msra.mxu0 0.0
    %2238 = vmatprep.subr.mxu0 0.0
    %2239 = vmatpush1.xpose.msra.mxu0 0.0
    %2240 = vmatprep.subr.mxu0 0.0
    %2241 = vmatpush1.xpose.msra.mxu0 0.0
    %2242 = vmatprep.subr.mxu0 0.0
    %2243 = vmatpush1.xpose.msra.mxu0 0.0
    %2244 = vmatprep.subr.mxu0 0.0
    %2245 = vmatpush1.xpose.msra.mxu0 0.0
    %2246 = vmatprep.subr.mxu0 0.0
    %2247 = vmatpush1.xpose.msra.mxu0 0.0
    %2248 = vmatprep.mubr.f32.mxu0 0.0
    %2249 = vmatmul.mubr.f32.gmra.mrb[0].mxu0 %v2180
    %v2250 = vpop.f32.mrb[0].mxu0
    %v2251 = vadd.f32 0.0, %v2250
    %v2252 = vpop.f32.mrb[0].mxu0
    %2253 = vdwg.mxu0
    %2255 = vrot.lane.b32.xlu0 %v2174, 96
    %v2256 = vpop.permute.xlu0 %2255
    %v2257 = vsel %vm344, %v2174, 0
    %v2259 = vsel %vm344, %v2256, 0
    %2261 = vmatprep.subr.mxu0 0.0
    %2262 = vmatpush1.xpose.msra.mxu0 %v2259
    %2263 = vmatprep.subr.mxu0 0.0
    %2264 = vmatpush1.xpose.msra.mxu0 0.0
    %2265 = vmatprep.subr.mxu0 0.0
    %2266 = vmatpush1.xpose.msra.mxu0 0.0
    %2267 = vmatprep.subr.mxu0 0.0
    %2268 = vmatpush1.xpose.msra.mxu0 0.0
    %2269 = vmatprep.subr.mxu0 0.0
    %2270 = vmatpush1.xpose.msra.mxu0 0.0
    %2271 = vmatprep.subr.mxu0 0.0
    %2272 = vmatpush1.xpose.msra.mxu0 0.0
    %2273 = vmatprep.subr.mxu0 0.0
    %2274 = vmatpush1.xpose.msra.mxu0 0.0
    %2275 = vmatprep.subr.mxu0 0.0
    %2276 = vmatpush1.xpose.msra.mxu0 0.0
    %2277 = vmatprep.subr.mxu0 0.0
    %2278 = vmatpush1.xpose.msra.mxu0 0.0
    %2279 = vmatprep.subr.mxu0 0.0
    %2280 = vmatpush1.xpose.msra.mxu0 0.0
    %2281 = vmatprep.subr.mxu0 0.0
    %2282 = vmatpush1.xpose.msra.mxu0 0.0
    %2283 = vmatprep.subr.mxu0 0.0
    %2284 = vmatpush1.xpose.msra.mxu0 0.0
    %2285 = vmatprep.subr.mxu0 0.0
    %2286 = vmatpush1.xpose.msra.mxu0 0.0
    %2287 = vmatprep.subr.mxu0 0.0
    %2288 = vmatpush1.xpose.msra.mxu0 0.0
    %2289 = vmatprep.subr.mxu0 0.0
    %2290 = vmatpush1.xpose.msra.mxu0 0.0
    %2291 = vmatprep.subr.mxu0 0.0
    %2292 = vmatpush1.xpose.msra.mxu0 0.0
    %2293 = vmatprep.subr.mxu0 0.0
    %2294 = vmatpush1.xpose.msra.mxu0 0.0
    %2295 = vmatprep.subr.mxu0 0.0
    %2296 = vmatpush1.xpose.msra.mxu0 0.0
    %2297 = vmatprep.subr.mxu0 0.0
    %2298 = vmatpush1.xpose.msra.mxu0 0.0
    %2299 = vmatprep.subr.mxu0 0.0
    %2300 = vmatpush1.xpose.msra.mxu0 0.0
    %2301 = vmatprep.subr.mxu0 0.0
    %2302 = vmatpush1.xpose.msra.mxu0 0.0
    %2303 = vmatprep.subr.mxu0 0.0
    %2304 = vmatpush1.xpose.msra.mxu0 0.0
    %2305 = vmatprep.subr.mxu0 0.0
    %2306 = vmatpush1.xpose.msra.mxu0 0.0
    %2307 = vmatprep.subr.mxu0 0.0
    %2308 = vmatpush1.xpose.msra.mxu0 0.0
    %2309 = vmatprep.subr.mxu0 0.0
    %2310 = vmatpush1.xpose.msra.mxu0 0.0
    %2311 = vmatprep.subr.mxu0 0.0
    %2312 = vmatpush1.xpose.msra.mxu0 0.0
    %2313 = vmatprep.subr.mxu0 0.0
    %2314 = vmatpush1.xpose.msra.mxu0 0.0
    %2315 = vmatprep.subr.mxu0 0.0
    %2316 = vmatpush1.xpose.msra.mxu0 0.0
    %2317 = vmatprep.subr.mxu0 0.0
    %2318 = vmatpush1.xpose.msra.mxu0 0.0
    %2319 = vmatprep.subr.mxu0 0.0
    %2320 = vmatpush1.xpose.msra.mxu0 0.0
    %2321 = vmatprep.subr.mxu0 0.0
    %2322 = vmatpush1.xpose.msra.mxu0 0.0
    %2323 = vmatprep.subr.mxu0 0.0
    %2324 = vmatpush1.xpose.msra.mxu0 0.0
    %2325 = vmatprep.mubr.f32.mxu0 0.0
    %2326 = vmatmul.mubr.f32.gmra.mrb[0].mxu0 %v2257
    %v2327 = vpop.f32.mrb[0].mxu0
    %v2328 = vadd.f32 0.0, %v2327
    %v2329 = vpop.f32.mrb[0].mxu0
    %2330 = vdwg.mxu0
    %v2331 = vmul.f32 %v2251, 0.35355338
    %v2332 = vmul.f32 %v2328, 0.35355338
    %v2333 = vsel %vm344, %v2331, -inf
    %2334 = vmax.xlane.f32.xlu0 %v2333
    %v2335 = vpop.xlane.xlu0 %2334
    %v2336 = vsel %vm344, %v2332, -inf
    %2337 = vmax.xlane.f32.xlu0 %v2336
    %v2338 = vpop.xlane.xlu0 %2337
    %v2339 = vsub.f32 %v2331, %v2335
    %v2340 = vsub.f32 %v2332, %v2338
    %v2341 = vmul.f32 %v2339, 1.442695
    %v2342 = vpow.pop %v2341
    %v2343 = vmul.f32 %v2340, 1.442695
    %v2344 = vpow.pop %v2343
    %v2345 = vsel %vm344, %v2342, 0.0
    %2346 = vadd.xlane.f32.xlu0 %v2345
    %v2347 = vpop.xlane.xlu0 %2346
    %v2348 = vsel %vm344, %v2344, 0.0
    %2349 = vadd.xlane.f32.xlu0 %v2348
    %v2350 = vpop.xlane.xlu0 %2349
    %v2351 = vrcp.pop %v2347
    %v2352 = vrcp.pop %v2350
    %v2353 = vmul.f32 %v2342, %v2351
    %v2354 = vmul.f32 %v2344, %v2352
    %2355 = vrot.lane.b32.xlu0 %v2169, 64
    %v2356 = vpop.permute.xlu0 %2355
    %v2359 = vsel %vm344, %v2353, 0
    %2361 = vmatprep.subr.mxu0 0.0
    %2362 = vmatpush1.msra.mxu0 %v2356
    %2363 = vmatprep.subr.mxu0 0.0
    %2364 = vmatpush1.msra.mxu0 0.0
    %2365 = vmatprep.subr.mxu0 0.0
    %2366 = vmatpush1.msra.mxu0 0.0
    %2367 = vmatprep.subr.mxu0 0.0
    %2368 = vmatpush1.msra.mxu0 0.0
    %2369 = vmatprep.subr.mxu0 0.0
    %2370 = vmatpush1.msra.mxu0 0.0
    %2371 = vmatprep.subr.mxu0 0.0
    %2372 = vmatpush1.msra.mxu0 0.0
    %2373 = vmatprep.subr.mxu0 0.0
    %2374 = vmatpush1.msra.mxu0 0.0
    %2375 = vmatprep.subr.mxu0 0.0
    %2376 = vmatpush1.msra.mxu0 0.0
    %2377 = vmatprep.subr.mxu0 0.0
    %2378 = vmatpush1.msra.mxu0 0.0
    %2379 = vmatprep.subr.mxu0 0.0
    %2380 = vmatpush1.msra.mxu0 0.0
    %2381 = vmatprep.subr.mxu0 0.0
    %2382 = vmatpush1.msra.mxu0 0.0
    %2383 = vmatprep.subr.mxu0 0.0
    %2384 = vmatpush1.msra.mxu0 0.0
    %2385 = vmatprep.subr.mxu0 0.0
    %2386 = vmatpush1.msra.mxu0 0.0
    %2387 = vmatprep.subr.mxu0 0.0
    %2388 = vmatpush1.msra.mxu0 0.0
    %2389 = vmatprep.subr.mxu0 0.0
    %2390 = vmatpush1.msra.mxu0 0.0
    %2391 = vmatprep.subr.mxu0 0.0
    %2392 = vmatpush1.msra.mxu0 0.0
    %2393 = vmatprep.subr.mxu0 0.0
    %2394 = vmatpush1.msra.mxu0 0.0
    %2395 = vmatprep.subr.mxu0 0.0
    %2396 = vmatpush1.msra.mxu0 0.0
    %2397 = vmatprep.subr.mxu0 0.0
    %2398 = vmatpush1.msra.mxu0 0.0
    %2399 = vmatprep.subr.mxu0 0.0
    %2400 = vmatpush1.msra.mxu0 0.0
    %2401 = vmatprep.subr.mxu0 0.0
    %2402 = vmatpush1.msra.mxu0 0.0
    %2403 = vmatprep.subr.mxu0 0.0
    %2404 = vmatpush1.msra.mxu0 0.0
    %2405 = vmatprep.subr.mxu0 0.0
    %2406 = vmatpush1.msra.mxu0 0.0
    %2407 = vmatprep.subr.mxu0 0.0
    %2408 = vmatpush1.msra.mxu0 0.0
    %2409 = vmatprep.subr.mxu0 0.0
    %2410 = vmatpush1.msra.mxu0 0.0
    %2411 = vmatprep.subr.mxu0 0.0
    %2412 = vmatpush1.msra.mxu0 0.0
    %2413 = vmatprep.subr.mxu0 0.0
    %2414 = vmatpush1.msra.mxu0 0.0
    %2415 = vmatprep.subr.mxu0 0.0
    %2416 = vmatpush1.msra.mxu0 0.0
    %2417 = vmatprep.subr.mxu0 0.0
    %2418 = vmatpush1.msra.mxu0 0.0
    %2419 = vmatprep.subr.mxu0 0.0
    %2420 = vmatpush1.msra.mxu0 0.0
    %2421 = vmatprep.subr.mxu0 0.0
    %2422 = vmatpush1.msra.mxu0 0.0
    %2423 = vmatprep.subr.mxu0 0.0
    %2424 = vmatpush1.msra.mxu0 0.0
    %2425 = vmatprep.mubr.f32.mxu0 0.0
    %2426 = vmatmul.mubr.f32.gmra.mrb[0].mxu0 %v2359
    %v2427 = vpop.f32.mrb[0].mxu0
    %v2428 = vadd.f32 0.0, %v2427
    %v2429 = vpop.f32.mrb[0].mxu0
    %2430 = vdwg.mxu0
    %2431 = vrot.lane.b32.xlu0 %v2174, 64
    %v2432 = vpop.permute.xlu0 %2431
    %v2435 = vsel %vm344, %v2354, 0
    %2437 = vmatprep.subr.mxu0 0.0
    %2438 = vmatpush1.msra.mxu0 %v2432
    %2439 = vmatprep.subr.mxu0 0.0
    %2440 = vmatpush1.msra.mxu0 0.0
    %2441 = vmatprep.subr.mxu0 0.0
    %2442 = vmatpush1.msra.mxu0 0.0
    %2443 = vmatprep.subr.mxu0 0.0
    %2444 = vmatpush1.msra.mxu0 0.0
    %2445 = vmatprep.subr.mxu0 0.0
    %2446 = vmatpush1.msra.mxu0 0.0
    %2447 = vmatprep.subr.mxu0 0.0
    %2448 = vmatpush1.msra.mxu0 0.0
    %2449 = vmatprep.subr.mxu0 0.0
    %2450 = vmatpush1.msra.mxu0 0.0
    %2451 = vmatprep.subr.mxu0 0.0
    %2452 = vmatpush1.msra.mxu0 0.0
    %2453 = vmatprep.subr.mxu0 0.0
    %2454 = vmatpush1.msra.mxu0 0.0
    %2455 = vmatprep.subr.mxu0 0.0
    %2456 = vmatpush1.msra.mxu0 0.0
    %2457 = vmatprep.subr.mxu0 0.0
    %2458 = vmatpush1.msra.mxu0 0.0
    %2459 = vmatprep.subr.mxu0 0.0
    %2460 = vmatpush1.msra.mxu0 0.0
    %2461 = vmatprep.subr.mxu0 0.0
    %2462 = vmatpush1.msra.mxu0 0.0
    %2463 = vmatprep.subr.mxu0 0.0
    %2464 = vmatpush1.msra.mxu0 0.0
    %2465 = vmatprep.subr.mxu0 0.0
    %2466 = vmatpush1.msra.mxu0 0.0
    %2467 = vmatprep.subr.mxu0 0.0
    %2468 = vmatpush1.msra.mxu0 0.0
    %2469 = vmatprep.subr.mxu0 0.0
    %2470 = vmatpush1.msra.mxu0 0.0
    %2471 = vmatprep.subr.mxu0 0.0
    %2472 = vmatpush1.msra.mxu0 0.0
    %2473 = vmatprep.subr.mxu0 0.0
    %2474 = vmatpush1.msra.mxu0 0.0
    %2475 = vmatprep.subr.mxu0 0.0
    %2476 = vmatpush1.msra.mxu0 0.0
    %2477 = vmatprep.subr.mxu0 0.0
    %2478 = vmatpush1.msra.mxu0 0.0
    %2479 = vmatprep.subr.mxu0 0.0
    %2480 = vmatpush1.msra.mxu0 0.0
    %2481 = vmatprep.subr.mxu0 0.0
    %2482 = vmatpush1.msra.mxu0 0.0
    %2483 = vmatprep.subr.mxu0 0.0
    %2484 = vmatpush1.msra.mxu0 0.0
    %2485 = vmatprep.subr.mxu0 0.0
    %2486 = vmatpush1.msra.mxu0 0.0
    %2487 = vmatprep.subr.mxu0 0.0
    %2488 = vmatpush1.msra.mxu0 0.0
    %2489 = vmatprep.subr.mxu0 0.0
    %2490 = vmatpush1.msra.mxu0 0.0
    %2491 = vmatprep.subr.mxu0 0.0
    %2492 = vmatpush1.msra.mxu0 0.0
    %2493 = vmatprep.subr.mxu0 0.0
    %2494 = vmatpush1.msra.mxu0 0.0
    %2495 = vmatprep.subr.mxu0 0.0
    %2496 = vmatpush1.msra.mxu0 0.0
    %2497 = vmatprep.subr.mxu0 0.0
    %2498 = vmatpush1.msra.mxu0 0.0
    %2499 = vmatprep.subr.mxu0 0.0
    %2500 = vmatpush1.msra.mxu0 0.0
    %2501 = vmatprep.mubr.f32.mxu0 0.0
    %2502 = vmatmul.mubr.f32.gmra.mrb[0].mxu0 %v2435
    %v2503 = vpop.f32.mrb[0].mxu0
    %v2504 = vadd.f32 0.0, %v2503
    %v2505 = vpop.f32.mrb[0].mxu0
    %2506 = vdwg.mxu0
    %2507 = vrot.lane.b32.xlu0 %v2169, 120
    %v2508 = vpop.permute.xlu0 %2507
    %2509 = vrot.lane.b32.xlu0 %v2169, 88
    %v2510 = vpop.permute.xlu0 %2509
    %v2511 = vsel %vm344, %v2508, 0
    %v2513 = vsel %vm344, %v2510, 0
    %2515 = vmatprep.subr.mxu0 0.0
    %2516 = vmatpush1.xpose.msra.mxu0 %v2513
    %2517 = vmatprep.subr.mxu0 0.0
    %2518 = vmatpush1.xpose.msra.mxu0 0.0
    %2519 = vmatprep.subr.mxu0 0.0
    %2520 = vmatpush1.xpose.msra.mxu0 0.0
    %2521 = vmatprep.subr.mxu0 0.0
    %2522 = vmatpush1.xpose.msra.mxu0 0.0
    %2523 = vmatprep.subr.mxu0 0.0
    %2524 = vmatpush1.xpose.msra.mxu0 0.0
    %2525 = vmatprep.subr.mxu0 0.0
    %2526 = vmatpush1.xpose.msra.mxu0 0.0
    %2527 = vmatprep.subr.mxu0 0.0
    %2528 = vmatpush1.xpose.msra.mxu0 0.0
    %2529 = vmatprep.subr.mxu0 0.0
    %2530 = vmatpush1.xpose.msra.mxu0 0.0
    %2531 = vmatprep.subr.mxu0 0.0
    %2532 = vmatpush1.xpose.msra.mxu0 0.0
    %2533 = vmatprep.subr.mxu0 0.0
    %2534 = vmatpush1.xpose.msra.mxu0 0.0
    %2535 = vmatprep.subr.mxu0 0.0
    %2536 = vmatpush1.xpose.msra.mxu0 0.0
    %2537 = vmatprep.subr.mxu0 0.0
    %2538 = vmatpush1.xpose.msra.mxu0 0.0
    %2539 = vmatprep.subr.mxu0 0.0
    %2540 = vmatpush1.xpose.msra.mxu0 0.0
    %2541 = vmatprep.subr.mxu0 0.0
    %2542 = vmatpush1.xpose.msra.mxu0 0.0
    %2543 = vmatprep.subr.mxu0 0.0
    %2544 = vmatpush1.xpose.msra.mxu0 0.0
    %2545 = vmatprep.subr.mxu0 0.0
    %2546 = vmatpush1.xpose.msra.mxu0 0.0
    %2547 = vmatprep.subr.mxu0 0.0
    %2548 = vmatpush1.xpose.msra.mxu0 0.0
    %2549 = vmatprep.subr.mxu0 0.0
    %2550 = vmatpush1.xpose.msra.mxu0 0.0
    %2551 = vmatprep.subr.mxu0 0.0
    %2552 = vmatpush1.xpose.msra.mxu0 0.0
    %2553 = vmatprep.subr.mxu0 0.0
    %2554 = vmatpush1.xpose.msra.mxu0 0.0
    %2555 = vmatprep.subr.mxu0 0.0
    %2556 = vmatpush1.xpose.msra.mxu0 0.0
    %2557 = vmatprep.subr.mxu0 0.0
    %2558 = vmatpush1.xpose.msra.mxu0 0.0
    %2559 = vmatprep.subr.mxu0 0.0
    %2560 = vmatpush1.xpose.msra.mxu0 0.0
    %2561 = vmatprep.subr.mxu0 0.0
    %2562 = vmatpush1.xpose.msra.mxu0 0.0
    %2563 = vmatprep.subr.mxu0 0.0
    %2564 = vmatpush1.xpose.msra.mxu0 0.0
    %2565 = vmatprep.subr.mxu0 0.0
    %2566 = vmatpush1.xpose.msra.mxu0 0.0
    %2567 = vmatprep.subr.mxu0 0.0
    %2568 = vmatpush1.xpose.msra.mxu0 0.0
    %2569 = vmatprep.subr.mxu0 0.0
    %2570 = vmatpush1.xpose.msra.mxu0 0.0
    %2571 = vmatprep.subr.mxu0 0.0
    %2572 = vmatpush1.xpose.msra.mxu0 0.0
    %2573 = vmatprep.subr.mxu0 0.0
    %2574 = vmatpush1.xpose.msra.mxu0 0.0
    %2575 = vmatprep.subr.mxu0 0.0
    %2576 = vmatpush1.xpose.msra.mxu0 0.0
    %2577 = vmatprep.subr.mxu0 0.0
    %2578 = vmatpush1.xpose.msra.mxu0 0.0
    %2579 = vmatprep.mubr.f32.mxu0 0.0
    %2580 = vmatmul.mubr.f32.gmra.mrb[0].mxu0 %v2511
    %v2581 = vpop.f32.mrb[0].mxu0
    %v2582 = vadd.f32 0.0, %v2581
    %v2583 = vpop.f32.mrb[0].mxu0
    %2584 = vdwg.mxu0
    %2585 = vrot.lane.b32.xlu0 %v2174, 120
    %v2586 = vpop.permute.xlu0 %2585
    %2587 = vrot.lane.b32.xlu0 %v2174, 88
    %v2588 = vpop.permute.xlu0 %2587
    %v2589 = vsel %vm344, %v2586, 0
    %v2591 = vsel %vm344, %v2588, 0
    %2593 = vmatprep.subr.mxu0 0.0
    %2594 = vmatpush1.xpose.msra.mxu0 %v2591
    %2595 = vmatprep.subr.mxu0 0.0
    %2596 = vmatpush1.xpose.msra.mxu0 0.0
    %2597 = vmatprep.subr.mxu0 0.0
    %2598 = vmatpush1.xpose.msra.mxu0 0.0
    %2599 = vmatprep.subr.mxu0 0.0
    %2600 = vmatpush1.xpose.msra.mxu0 0.0
    %2601 = vmatprep.subr.mxu0 0.0
    %2602 = vmatpush1.xpose.msra.mxu0 0.0
    %2603 = vmatprep.subr.mxu0 0.0
    %2604 = vmatpush1.xpose.msra.mxu0 0.0
    %2605 = vmatprep.subr.mxu0 0.0
    %2606 = vmatpush1.xpose.msra.mxu0 0.0
    %2607 = vmatprep.subr.mxu0 0.0
    %2608 = vmatpush1.xpose.msra.mxu0 0.0
    %2609 = vmatprep.subr.mxu0 0.0
    %2610 = vmatpush1.xpose.msra.mxu0 0.0
    %2611 = vmatprep.subr.mxu0 0.0
    %2612 = vmatpush1.xpose.msra.mxu0 0.0
    %2613 = vmatprep.subr.mxu0 0.0
    %2614 = vmatpush1.xpose.msra.mxu0 0.0
    %2615 = vmatprep.subr.mxu0 0.0
    %2616 = vmatpush1.xpose.msra.mxu0 0.0
    %2617 = vmatprep.subr.mxu0 0.0
    %2618 = vmatpush1.xpose.msra.mxu0 0.0
    %2619 = vmatprep.subr.mxu0 0.0
    %2620 = vmatpush1.xpose.msra.mxu0 0.0
    %2621 = vmatprep.subr.mxu0 0.0
    %2622 = vmatpush1.xpose.msra.mxu0 0.0
    %2623 = vmatprep.subr.mxu0 0.0
    %2624 = vmatpush1.xpose.msra.mxu0 0.0
    %2625 = vmatprep.subr.mxu0 0.0
    %2626 = vmatpush1.xpose.msra.mxu0 0.0
    %2627 = vmatprep.subr.mxu0 0.0
    %2628 = vmatpush1.xpose.msra.mxu0 0.0
    %2629 = vmatprep.subr.mxu0 0.0
    %2630 = vmatpush1.xpose.msra.mxu0 0.0
    %2631 = vmatprep.subr.mxu0 0.0
    %2632 = vmatpush1.xpose.msra.mxu0 0.0
    %2633 = vmatprep.subr.mxu0 0.0
    %2634 = vmatpush1.xpose.msra.mxu0 0.0
    %2635 = vmatprep.subr.mxu0 0.0
    %2636 = vmatpush1.xpose.msra.mxu0 0.0
    %2637 = vmatprep.subr.mxu0 0.0
    %2638 = vmatpush1.xpose.msra.mxu0 0.0
    %2639 = vmatprep.subr.mxu0 0.0
    %2640 = vmatpush1.xpose.msra.mxu0 0.0
    %2641 = vmatprep.subr.mxu0 0.0
    %2642 = vmatpush1.xpose.msra.mxu0 0.0
    %2643 = vmatprep.subr.mxu0 0.0
    %2644 = vmatpush1.xpose.msra.mxu0 0.0
    %2645 = vmatprep.subr.mxu0 0.0
    %2646 = vmatpush1.xpose.msra.mxu0 0.0
    %2647 = vmatprep.subr.mxu0 0.0
    %2648 = vmatpush1.xpose.msra.mxu0 0.0
    %2649 = vmatprep.subr.mxu0 0.0
    %2650 = vmatpush1.xpose.msra.mxu0 0.0
    %2651 = vmatprep.subr.mxu0 0.0
    %2652 = vmatpush1.xpose.msra.mxu0 0.0
    %2653 = vmatprep.subr.mxu0 0.0
    %2654 = vmatpush1.xpose.msra.mxu0 0.0
    %2655 = vmatprep.subr.mxu0 0.0
    %2656 = vmatpush1.xpose.msra.mxu0 0.0
    %2657 = vmatprep.mubr.f32.mxu0 0.0
    %2658 = vmatmul.mubr.f32.gmra.mrb[0].mxu0 %v2589
    %v2659 = vpop.f32.mrb[0].mxu0
    %v2660 = vadd.f32 0.0, %v2659
    %v2661 = vpop.f32.mrb[0].mxu0
    %2662 = vdwg.mxu0
    %v2663 = vmul.f32 %v2582, 0.35355338
    %v2664 = vmul.f32 %v2660, 0.35355338
    %v2665 = vsel %vm344, %v2663, -inf
    %2666 = vmax.xlane.f32.xlu0 %v2665
    %v2667 = vpop.xlane.xlu0 %2666
    %v2668 = vsel %vm344, %v2664, -inf
    %2669 = vmax.xlane.f32.xlu0 %v2668
    %v2670 = vpop.xlane.xlu0 %2669
    %v2671 = vsub.f32 %v2663, %v2667
    %v2672 = vsub.f32 %v2664, %v2670
    %v2673 = vmul.f32 %v2671, 1.442695
    %v2674 = vpow.pop %v2673
    %v2675 = vmul.f32 %v2672, 1.442695
    %v2676 = vpow.pop %v2675
    %v2677 = vsel %vm344, %v2674, 0.0
    %2678 = vadd.xlane.f32.xlu0 %v2677
    %v2679 = vpop.xlane.xlu0 %2678
    %v2680 = vsel %vm344, %v2676, 0.0
    %2681 = vadd.xlane.f32.xlu0 %v2680
    %v2682 = vpop.xlane.xlu0 %2681
    %v2683 = vrcp.pop %v2679
    %v2684 = vrcp.pop %v2682
    %v2685 = vmul.f32 %v2674, %v2683
    %v2686 = vmul.f32 %v2676, %v2684
    %2687 = vrot.lane.b32.xlu0 %v2169, 56
    %v2688 = vpop.permute.xlu0 %2687
    %v2691 = vsel %vm344, %v2685, 0
    %2693 = vmatprep.subr.mxu0 0.0
    %2694 = vmatpush1.msra.mxu0 %v2688
    %2695 = vmatprep.subr.mxu0 0.0
    %2696 = vmatpush1.msra.mxu0 0.0
    %2697 = vmatprep.subr.mxu0 0.0
    %2698 = vmatpush1.msra.mxu0 0.0
    %2699 = vmatprep.subr.mxu0 0.0
    %2700 = vmatpush1.msra.mxu0 0.0
    %2701 = vmatprep.subr.mxu0 0.0
    %2702 = vmatpush1.msra.mxu0 0.0
    %2703 = vmatprep.subr.mxu0 0.0
    %2704 = vmatpush1.msra.mxu0 0.0
    %2705 = vmatprep.subr.mxu0 0.0
    %2706 = vmatpush1.msra.mxu0 0.0
    %2707 = vmatprep.subr.mxu0 0.0
    %2708 = vmatpush1.msra.mxu0 0.0
    %2709 = vmatprep.subr.mxu0 0.0
    %2710 = vmatpush1.msra.mxu0 0.0
    %2711 = vmatprep.subr.mxu0 0.0
    %2712 = vmatpush1.msra.mxu0 0.0
    %2713 = vmatprep.subr.mxu0 0.0
    %2714 = vmatpush1.msra.mxu0 0.0
    %2715 = vmatprep.subr.mxu0 0.0
    %2716 = vmatpush1.msra.mxu0 0.0
    %2717 = vmatprep.subr.mxu0 0.0
    %2718 = vmatpush1.msra.mxu0 0.0
    %2719 = vmatprep.subr.mxu0 0.0
    %2720 = vmatpush1.msra.mxu0 0.0
    %2721 = vmatprep.subr.mxu0 0.0
    %2722 = vmatpush1.msra.mxu0 0.0
    %2723 = vmatprep.subr.mxu0 0.0
    %2724 = vmatpush1.msra.mxu0 0.0
    %2725 = vmatprep.subr.mxu0 0.0
    %2726 = vmatpush1.msra.mxu0 0.0
    %2727 = vmatprep.subr.mxu0 0.0
    %2728 = vmatpush1.msra.mxu0 0.0
    %2729 = vmatprep.subr.mxu0 0.0
    %2730 = vmatpush1.msra.mxu0 0.0
    %2731 = vmatprep.subr.mxu0 0.0
    %2732 = vmatpush1.msra.mxu0 0.0
    %2733 = vmatprep.subr.mxu0 0.0
    %2734 = vmatpush1.msra.mxu0 0.0
    %2735 = vmatprep.subr.mxu0 0.0
    %2736 = vmatpush1.msra.mxu0 0.0
    %2737 = vmatprep.subr.mxu0 0.0
    %2738 = vmatpush1.msra.mxu0 0.0
    %2739 = vmatprep.subr.mxu0 0.0
    %2740 = vmatpush1.msra.mxu0 0.0
    %2741 = vmatprep.subr.mxu0 0.0
    %2742 = vmatpush1.msra.mxu0 0.0
    %2743 = vmatprep.subr.mxu0 0.0
    %2744 = vmatpush1.msra.mxu0 0.0
    %2745 = vmatprep.subr.mxu0 0.0
    %2746 = vmatpush1.msra.mxu0 0.0
    %2747 = vmatprep.subr.mxu0 0.0
    %2748 = vmatpush1.msra.mxu0 0.0
    %2749 = vmatprep.subr.mxu0 0.0
    %2750 = vmatpush1.msra.mxu0 0.0
    %2751 = vmatprep.subr.mxu0 0.0
    %2752 = vmatpush1.msra.mxu0 0.0
    %2753 = vmatprep.subr.mxu0 0.0
    %2754 = vmatpush1.msra.mxu0 0.0
    %2755 = vmatprep.subr.mxu0 0.0
    %2756 = vmatpush1.msra.mxu0 0.0
    %2757 = vmatprep.mubr.f32.mxu0 0.0
    %2758 = vmatmul.mubr.f32.gmra.mrb[0].mxu0 %v2691
    %v2759 = vpop.f32.mrb[0].mxu0
    %v2760 = vadd.f32 0.0, %v2759
    %v2761 = vpop.f32.mrb[0].mxu0
    %2762 = vdwg.mxu0
    %2763 = vrot.lane.b32.xlu0 %v2174, 56
    %v2764 = vpop.permute.xlu0 %2763
    %v2767 = vsel %vm344, %v2686, 0
    %2769 = vmatprep.subr.mxu0 0.0
    %2770 = vmatpush1.msra.mxu0 %v2764
    %2771 = vmatprep.subr.mxu0 0.0
    %2772 = vmatpush1.msra.mxu0 0.0
    %2773 = vmatprep.subr.mxu0 0.0
    %2774 = vmatpush1.msra.mxu0 0.0
    %2775 = vmatprep.subr.mxu0 0.0
    %2776 = vmatpush1.msra.mxu0 0.0
    %2777 = vmatprep.subr.mxu0 0.0
    %2778 = vmatpush1.msra.mxu0 0.0
    %2779 = vmatprep.subr.mxu0 0.0
    %2780 = vmatpush1.msra.mxu0 0.0
    %2781 = vmatprep.subr.mxu0 0.0
    %2782 = vmatpush1.msra.mxu0 0.0
    %2783 = vmatprep.subr.mxu0 0.0
    %2784 = vmatpush1.msra.mxu0 0.0
    %2785 = vmatprep.subr.mxu0 0.0
    %2786 = vmatpush1.msra.mxu0 0.0
    %2787 = vmatprep.subr.mxu0 0.0
    %2788 = vmatpush1.msra.mxu0 0.0
    %2789 = vmatprep.subr.mxu0 0.0
    %2790 = vmatpush1.msra.mxu0 0.0
    %2791 = vmatprep.subr.mxu0 0.0
    %2792 = vmatpush1.msra.mxu0 0.0
    %2793 = vmatprep.subr.mxu0 0.0
    %2794 = vmatpush1.msra.mxu0 0.0
    %2795 = vmatprep.subr.mxu0 0.0
    %2796 = vmatpush1.msra.mxu0 0.0
    %2797 = vmatprep.subr.mxu0 0.0
    %2798 = vmatpush1.msra.mxu0 0.0
    %2799 = vmatprep.subr.mxu0 0.0
    %2800 = vmatpush1.msra.mxu0 0.0
    %2801 = vmatprep.subr.mxu0 0.0
    %2802 = vmatpush1.msra.mxu0 0.0
    %2803 = vmatprep.subr.mxu0 0.0
    %2804 = vmatpush1.msra.mxu0 0.0
    %2805 = vmatprep.subr.mxu0 0.0
    %2806 = vmatpush1.msra.mxu0 0.0
    %2807 = vmatprep.subr.mxu0 0.0
    %2808 = vmatpush1.msra.mxu0 0.0
    %2809 = vmatprep.subr.mxu0 0.0
    %2810 = vmatpush1.msra.mxu0 0.0
    %2811 = vmatprep.subr.mxu0 0.0
    %2812 = vmatpush1.msra.mxu0 0.0
    %2813 = vmatprep.subr.mxu0 0.0
    %2814 = vmatpush1.msra.mxu0 0.0
    %2815 = vmatprep.subr.mxu0 0.0
    %2816 = vmatpush1.msra.mxu0 0.0
    %2817 = vmatprep.subr.mxu0 0.0
    %2818 = vmatpush1.msra.mxu0 0.0
    %2819 = vmatprep.subr.mxu0 0.0
    %2820 = vmatpush1.msra.mxu0 0.0
    %2821 = vmatprep.subr.mxu0 0.0
    %2822 = vmatpush1.msra.mxu0 0.0
    %2823 = vmatprep.subr.mxu0 0.0
    %2824 = vmatpush1.msra.mxu0 0.0
    %2825 = vmatprep.subr.mxu0 0.0
    %2826 = vmatpush1.msra.mxu0 0.0
    %2827 = vmatprep.subr.mxu0 0.0
    %2828 = vmatpush1.msra.mxu0 0.0
    %2829 = vmatprep.subr.mxu0 0.0
    %2830 = vmatpush1.msra.mxu0 0.0
    %2831 = vmatprep.subr.mxu0 0.0
    %2832 = vmatpush1.msra.mxu0 0.0
    %2833 = vmatprep.mubr.f32.mxu0 0.0
    %2834 = vmatmul.mubr.f32.gmra.mrb[0].mxu0 %v2767
    %v2835 = vpop.f32.mrb[0].mxu0
    %v2836 = vadd.f32 0.0, %v2835
    %v2837 = vpop.f32.mrb[0].mxu0
    %2838 = vdwg.mxu0
    %2839 = vrot.lane.b32.xlu0 %v2169, 112
    %v2840 = vpop.permute.xlu0 %2839
    %2841 = vrot.lane.b32.xlu0 %v2169, 80
    %v2842 = vpop.permute.xlu0 %2841
    %v2843 = vsel %vm344, %v2840, 0
    %v2845 = vsel %vm344, %v2842, 0
    %2847 = vmatprep.subr.mxu0 0.0
    %2848 = vmatpush1.xpose.msra.mxu0 %v2845
    %2849 = vmatprep.subr.mxu0 0.0
    %2850 = vmatpush1.xpose.msra.mxu0 0.0
    %2851 = vmatprep.subr.mxu0 0.0
    %2852 = vmatpush1.xpose.msra.mxu0 0.0
    %2853 = vmatprep.subr.mxu0 0.0
    %2854 = vmatpush1.xpose.msra.mxu0 0.0
    %2855 = vmatprep.subr.mxu0 0.0
    %2856 = vmatpush1.xpose.msra.mxu0 0.0
    %2857 = vmatprep.subr.mxu0 0.0
    %2858 = vmatpush1.xpose.msra.mxu0 0.0
    %2859 = vmatprep.subr.mxu0 0.0
    %2860 = vmatpush1.xpose.msra.mxu0 0.0
    %2861 = vmatprep.subr.mxu0 0.0
    %2862 = vmatpush1.xpose.msra.mxu0 0.0
    %2863 = vmatprep.subr.mxu0 0.0
    %2864 = vmatpush1.xpose.msra.mxu0 0.0
    %2865 = vmatprep.subr.mxu0 0.0
    %2866 = vmatpush1.xpose.msra.mxu0 0.0
    %2867 = vmatprep.subr.mxu0 0.0
    %2868 = vmatpush1.xpose.msra.mxu0 0.0
    %2869 = vmatprep.subr.mxu0 0.0
    %2870 = vmatpush1.xpose.msra.mxu0 0.0
    %2871 = vmatprep.subr.mxu0 0.0
    %2872 = vmatpush1.xpose.msra.mxu0 0.0
    %2873 = vmatprep.subr.mxu0 0.0
    %2874 = vmatpush1.xpose.msra.mxu0 0.0
    %2875 = vmatprep.subr.mxu0 0.0
    %2876 = vmatpush1.xpose.msra.mxu0 0.0
    %2877 = vmatprep.subr.mxu0 0.0
    %2878 = vmatpush1.xpose.msra.mxu0 0.0
    %2879 = vmatprep.subr.mxu0 0.0
    %2880 = vmatpush1.xpose.msra.mxu0 0.0
    %2881 = vmatprep.subr.mxu0 0.0
    %2882 = vmatpush1.xpose.msra.mxu0 0.0
    %2883 = vmatprep.subr.mxu0 0.0
    %2884 = vmatpush1.xpose.msra.mxu0 0.0
    %2885 = vmatprep.subr.mxu0 0.0
    %2886 = vmatpush1.xpose.msra.mxu0 0.0
    %2887 = vmatprep.subr.mxu0 0.0
    %2888 = vmatpush1.xpose.msra.mxu0 0.0
    %2889 = vmatprep.subr.mxu0 0.0
    %2890 = vmatpush1.xpose.msra.mxu0 0.0
    %2891 = vmatprep.subr.mxu0 0.0
    %2892 = vmatpush1.xpose.msra.mxu0 0.0
    %2893 = vmatprep.subr.mxu0 0.0
    %2894 = vmatpush1.xpose.msra.mxu0 0.0
    %2895 = vmatprep.subr.mxu0 0.0
    %2896 = vmatpush1.xpose.msra.mxu0 0.0
    %2897 = vmatprep.subr.mxu0 0.0
    %2898 = vmatpush1.xpose.msra.mxu0 0.0
    %2899 = vmatprep.subr.mxu0 0.0
    %2900 = vmatpush1.xpose.msra.mxu0 0.0
    %2901 = vmatprep.subr.mxu0 0.0
    %2902 = vmatpush1.xpose.msra.mxu0 0.0
    %2903 = vmatprep.subr.mxu0 0.0
    %2904 = vmatpush1.xpose.msra.mxu0 0.0
    %2905 = vmatprep.subr.mxu0 0.0
    %2906 = vmatpush1.xpose.msra.mxu0 0.0
    %2907 = vmatprep.subr.mxu0 0.0
    %2908 = vmatpush1.xpose.msra.mxu0 0.0
    %2909 = vmatprep.subr.mxu0 0.0
    %2910 = vmatpush1.xpose.msra.mxu0 0.0
    %2911 = vmatprep.mubr.f32.mxu0 0.0
    %2912 = vmatmul.mubr.f32.gmra.mrb[0].mxu0 %v2843
    %v2913 = vpop.f32.mrb[0].mxu0
    %v2914 = vadd.f32 0.0, %v2913
    %v2915 = vpop.f32.mrb[0].mxu0
    %2916 = vdwg.mxu0
    %2917 = vrot.lane.b32.xlu0 %v2174, 112
    %v2918 = vpop.permute.xlu0 %2917
    %2919 = vrot.lane.b32.xlu0 %v2174, 80
    %v2920 = vpop.permute.xlu0 %2919
    %v2921 = vsel %vm344, %v2918, 0
    %v2923 = vsel %vm344, %v2920, 0
    %2925 = vmatprep.subr.mxu0 0.0
    %2926 = vmatpush1.xpose.msra.mxu0 %v2923
    %2927 = vmatprep.subr.mxu0 0.0
    %2928 = vmatpush1.xpose.msra.mxu0 0.0
    %2929 = vmatprep.subr.mxu0 0.0
    %2930 = vmatpush1.xpose.msra.mxu0 0.0
    %2931 = vmatprep.subr.mxu0 0.0
    %2932 = vmatpush1.xpose.msra.mxu0 0.0
    %2933 = vmatprep.subr.mxu0 0.0
    %2934 = vmatpush1.xpose.msra.mxu0 0.0
    %2935 = vmatprep.subr.mxu0 0.0
    %2936 = vmatpush1.xpose.msra.mxu0 0.0
    %2937 = vmatprep.subr.mxu0 0.0
    %2938 = vmatpush1.xpose.msra.mxu0 0.0
    %2939 = vmatprep.subr.mxu0 0.0
    %2940 = vmatpush1.xpose.msra.mxu0 0.0
    %2941 = vmatprep.subr.mxu0 0.0
    %2942 = vmatpush1.xpose.msra.mxu0 0.0
    %2943 = vmatprep.subr.mxu0 0.0
    %2944 = vmatpush1.xpose.msra.mxu0 0.0
    %2945 = vmatprep.subr.mxu0 0.0
    %2946 = vmatpush1.xpose.msra.mxu0 0.0
    %2947 = vmatprep.subr.mxu0 0.0
    %2948 = vmatpush1.xpose.msra.mxu0 0.0
    %2949 = vmatprep.subr.mxu0 0.0
    %2950 = vmatpush1.xpose.msra.mxu0 0.0
    %2951 = vmatprep.subr.mxu0 0.0
    %2952 = vmatpush1.xpose.msra.mxu0 0.0
    %2953 = vmatprep.subr.mxu0 0.0
    %2954 = vmatpush1.xpose.msra.mxu0 0.0
    %2955 = vmatprep.subr.mxu0 0.0
    %2956 = vmatpush1.xpose.msra.mxu0 0.0
    %2957 = vmatprep.subr.mxu0 0.0
    %2958 = vmatpush1.xpose.msra.mxu0 0.0
    %2959 = vmatprep.subr.mxu0 0.0
    %2960 = vmatpush1.xpose.msra.mxu0 0.0
    %2961 = vmatprep.subr.mxu0 0.0
    %2962 = vmatpush1.xpose.msra.mxu0 0.0
    %2963 = vmatprep.subr.mxu0 0.0
    %2964 = vmatpush1.xpose.msra.mxu0 0.0
    %2965 = vmatprep.subr.mxu0 0.0
    %2966 = vmatpush1.xpose.msra.mxu0 0.0
    %2967 = vmatprep.subr.mxu0 0.0
    %2968 = vmatpush1.xpose.msra.mxu0 0.0
    %2969 = vmatprep.subr.mxu0 0.0
    %2970 = vmatpush1.xpose.msra.mxu0 0.0
    %2971 = vmatprep.subr.mxu0 0.0
    %2972 = vmatpush1.xpose.msra.mxu0 0.0
    %2973 = vmatprep.subr.mxu0 0.0
    %2974 = vmatpush1.xpose.msra.mxu0 0.0
    %2975 = vmatprep.subr.mxu0 0.0
    %2976 = vmatpush1.xpose.msra.mxu0 0.0
    %2977 = vmatprep.subr.mxu0 0.0
    %2978 = vmatpush1.xpose.msra.mxu0 0.0
    %2979 = vmatprep.subr.mxu0 0.0
    %2980 = vmatpush1.xpose.msra.mxu0 0.0
    %2981 = vmatprep.subr.mxu0 0.0
    %2982 = vmatpush1.xpose.msra.mxu0 0.0
    %2983 = vmatprep.subr.mxu0 0.0
    %2984 = vmatpush1.xpose.msra.mxu0 0.0
    %2985 = vmatprep.subr.mxu0 0.0
    %2986 = vmatpush1.xpose.msra.mxu0 0.0
    %2987 = vmatprep.subr.mxu0 0.0
    %2988 = vmatpush1.xpose.msra.mxu0 0.0
    %2989 = vmatprep.mubr.f32.mxu0 0.0
    %2990 = vmatmul.mubr.f32.gmra.mrb[0].mxu0 %v2921
    %v2991 = vpop.f32.mrb[0].mxu0
    %v2992 = vadd.f32 0.0, %v2991
    %v2993 = vpop.f32.mrb[0].mxu0
    %2994 = vdwg.mxu0
    %v2995 = vmul.f32 %v2914, 0.35355338
    %v2996 = vmul.f32 %v2992, 0.35355338
    %v2997 = vsel %vm344, %v2995, -inf
    %2998 = vmax.xlane.f32.xlu0 %v2997
    %v2999 = vpop.xlane.xlu0 %2998
    %v3000 = vsel %vm344, %v2996, -inf
    %3001 = vmax.xlane.f32.xlu0 %v3000
    %v3002 = vpop.xlane.xlu0 %3001
    %v3003 = vsub.f32 %v2995, %v2999
    %v3004 = vsub.f32 %v2996, %v3002
    %v3005 = vmul.f32 %v3003, 1.442695
    %v3006 = vpow.pop %v3005
    %v3007 = vmul.f32 %v3004, 1.442695
    %v3008 = vpow.pop %v3007
    %v3009 = vsel %vm344, %v3006, 0.0
    %3010 = vadd.xlane.f32.xlu0 %v3009
    %v3011 = vpop.xlane.xlu0 %3010
    %v3012 = vsel %vm344, %v3008, 0.0
    %3013 = vadd.xlane.f32.xlu0 %v3012
    %v3014 = vpop.xlane.xlu0 %3013
    %v3015 = vrcp.pop %v3011
    %v3016 = vrcp.pop %v3014
    %v3017 = vmul.f32 %v3006, %v3015
    %v3018 = vmul.f32 %v3008, %v3016
    %3019 = vrot.lane.b32.xlu0 %v2169, 48
    %v3020 = vpop.permute.xlu0 %3019
    %v3023 = vsel %vm344, %v3017, 0
    %3025 = vmatprep.subr.mxu0 0.0
    %3026 = vmatpush1.msra.mxu0 %v3020
    %3027 = vmatprep.subr.mxu0 0.0
    %3028 = vmatpush1.msra.mxu0 0.0
    %3029 = vmatprep.subr.mxu0 0.0
    %3030 = vmatpush1.msra.mxu0 0.0
    %3031 = vmatprep.subr.mxu0 0.0
    %3032 = vmatpush1.msra.mxu0 0.0
    %3033 = vmatprep.subr.mxu0 0.0
    %3034 = vmatpush1.msra.mxu0 0.0
    %3035 = vmatprep.subr.mxu0 0.0
    %3036 = vmatpush1.msra.mxu0 0.0
    %3037 = vmatprep.subr.mxu0 0.0
    %3038 = vmatpush1.msra.mxu0 0.0
    %3039 = vmatprep.subr.mxu0 0.0
    %3040 = vmatpush1.msra.mxu0 0.0
    %3041 = vmatprep.subr.mxu0 0.0
    %3042 = vmatpush1.msra.mxu0 0.0
    %3043 = vmatprep.subr.mxu0 0.0
    %3044 = vmatpush1.msra.mxu0 0.0
    %3045 = vmatprep.subr.mxu0 0.0
    %3046 = vmatpush1.msra.mxu0 0.0
    %3047 = vmatprep.subr.mxu0 0.0
    %3048 = vmatpush1.msra.mxu0 0.0
    %3049 = vmatprep.subr.mxu0 0.0
    %3050 = vmatpush1.msra.mxu0 0.0
    %3051 = vmatprep.subr.mxu0 0.0
    %3052 = vmatpush1.msra.mxu0 0.0
    %3053 = vmatprep.subr.mxu0 0.0
    %3054 = vmatpush1.msra.mxu0 0.0
    %3055 = vmatprep.subr.mxu0 0.0
    %3056 = vmatpush1.msra.mxu0 0.0
    %3057 = vmatprep.subr.mxu0 0.0
    %3058 = vmatpush1.msra.mxu0 0.0
    %3059 = vmatprep.subr.mxu0 0.0
    %3060 = vmatpush1.msra.mxu0 0.0
    %3061 = vmatprep.subr.mxu0 0.0
    %3062 = vmatpush1.msra.mxu0 0.0
    %3063 = vmatprep.subr.mxu0 0.0
    %3064 = vmatpush1.msra.mxu0 0.0
    %3065 = vmatprep.subr.mxu0 0.0
    %3066 = vmatpush1.msra.mxu0 0.0
    %3067 = vmatprep.subr.mxu0 0.0
    %3068 = vmatpush1.msra.mxu0 0.0
    %3069 = vmatprep.subr.mxu0 0.0
    %3070 = vmatpush1.msra.mxu0 0.0
    %3071 = vmatprep.subr.mxu0 0.0
    %3072 = vmatpush1.msra.mxu0 0.0
    %3073 = vmatprep.subr.mxu0 0.0
    %3074 = vmatpush1.msra.mxu0 0.0
    %3075 = vmatprep.subr.mxu0 0.0
    %3076 = vmatpush1.msra.mxu0 0.0
    %3077 = vmatprep.subr.mxu0 0.0
    %3078 = vmatpush1.msra.mxu0 0.0
    %3079 = vmatprep.subr.mxu0 0.0
    %3080 = vmatpush1.msra.mxu0 0.0
    %3081 = vmatprep.subr.mxu0 0.0
    %3082 = vmatpush1.msra.mxu0 0.0
    %3083 = vmatprep.subr.mxu0 0.0
    %3084 = vmatpush1.msra.mxu0 0.0
    %3085 = vmatprep.subr.mxu0 0.0
    %3086 = vmatpush1.msra.mxu0 0.0
    %3087 = vmatprep.subr.mxu0 0.0
    %3088 = vmatpush1.msra.mxu0 0.0
    %3089 = vmatprep.mubr.f32.mxu0 0.0
    %3090 = vmatmul.mubr.f32.gmra.mrb[0].mxu0 %v3023
    %v3091 = vpop.f32.mrb[0].mxu0
    %v3092 = vadd.f32 0.0, %v3091
    %v3093 = vpop.f32.mrb[0].mxu0
    %3094 = vdwg.mxu0
    %3095 = vrot.lane.b32.xlu0 %v2174, 48
    %v3096 = vpop.permute.xlu0 %3095
    %v3099 = vsel %vm344, %v3018, 0
    %3101 = vmatprep.subr.mxu0 0.0
    %3102 = vmatpush1.msra.mxu0 %v3096
    %3103 = vmatprep.subr.mxu0 0.0
    %3104 = vmatpush1.msra.mxu0 0.0
    %3105 = vmatprep.subr.mxu0 0.0
    %3106 = vmatpush1.msra.mxu0 0.0
    %3107 = vmatprep.subr.mxu0 0.0
    %3108 = vmatpush1.msra.mxu0 0.0
    %3109 = vmatprep.subr.mxu0 0.0
    %3110 = vmatpush1.msra.mxu0 0.0
    %3111 = vmatprep.subr.mxu0 0.0
    %3112 = vmatpush1.msra.mxu0 0.0
    %3113 = vmatprep.subr.mxu0 0.0
    %3114 = vmatpush1.msra.mxu0 0.0
    %3115 = vmatprep.subr.mxu0 0.0
    %3116 = vmatpush1.msra.mxu0 0.0
    %3117 = vmatprep.subr.mxu0 0.0
    %3118 = vmatpush1.msra.mxu0 0.0
    %3119 = vmatprep.subr.mxu0 0.0
    %3120 = vmatpush1.msra.mxu0 0.0
    %3121 = vmatprep.subr.mxu0 0.0
    %3122 = vmatpush1.msra.mxu0 0.0
    %3123 = vmatprep.subr.mxu0 0.0
    %3124 = vmatpush1.msra.mxu0 0.0
    %3125 = vmatprep.subr.mxu0 0.0
    %3126 = vmatpush1.msra.mxu0 0.0
    %3127 = vmatprep.subr.mxu0 0.0
    %3128 = vmatpush1.msra.mxu0 0.0
    %3129 = vmatprep.subr.mxu0 0.0
    %3130 = vmatpush1.msra.mxu0 0.0
    %3131 = vmatprep.subr.mxu0 0.0
    %3132 = vmatpush1.msra.mxu0 0.0
    %3133 = vmatprep.subr.mxu0 0.0
    %3134 = vmatpush1.msra.mxu0 0.0
    %3135 = vmatprep.subr.mxu0 0.0
    %3136 = vmatpush1.msra.mxu0 0.0
    %3137 = vmatprep.subr.mxu0 0.0
    %3138 = vmatpush1.msra.mxu0 0.0
    %3139 = vmatprep.subr.mxu0 0.0
    %3140 = vmatpush1.msra.mxu0 0.0
    %3141 = vmatprep.subr.mxu0 0.0
    %3142 = vmatpush1.msra.mxu0 0.0
    %3143 = vmatprep.subr.mxu0 0.0
    %3144 = vmatpush1.msra.mxu0 0.0
    %3145 = vmatprep.subr.mxu0 0.0
    %3146 = vmatpush1.msra.mxu0 0.0
    %3147 = vmatprep.subr.mxu0 0.0
    %3148 = vmatpush1.msra.mxu0 0.0
    %3149 = vmatprep.subr.mxu0 0.0
    %3150 = vmatpush1.msra.mxu0 0.0
    %3151 = vmatprep.subr.mxu0 0.0
    %3152 = vmatpush1.msra.mxu0 0.0
    %3153 = vmatprep.subr.mxu0 0.0
    %3154 = vmatpush1.msra.mxu0 0.0
    %3155 = vmatprep.subr.mxu0 0.0
    %3156 = vmatpush1.msra.mxu0 0.0
    %3157 = vmatprep.subr.mxu0 0.0
    %3158 = vmatpush1.msra.mxu0 0.0
    %3159 = vmatprep.subr.mxu0 0.0
    %3160 = vmatpush1.msra.mxu0 0.0
    %3161 = vmatprep.subr.mxu0 0.0
    %3162 = vmatpush1.msra.mxu0 0.0
    %3163 = vmatprep.subr.mxu0 0.0
    %3164 = vmatpush1.msra.mxu0 0.0
    %3165 = vmatprep.mubr.f32.mxu0 0.0
    %3166 = vmatmul.mubr.f32.gmra.mrb[0].mxu0 %v3099
    %v3167 = vpop.f32.mrb[0].mxu0
    %v3168 = vadd.f32 0.0, %v3167
    %v3169 = vpop.f32.mrb[0].mxu0
    %3170 = vdwg.mxu0
    %3171 = vrot.lane.b32.xlu0 %v2169, 104
    %v3172 = vpop.permute.xlu0 %3171
    %3173 = vrot.lane.b32.xlu0 %v2169, 72
    %v3174 = vpop.permute.xlu0 %3173
    %v3175 = vsel %vm344, %v3172, 0
    %v3177 = vsel %vm344, %v3174, 0
    %3179 = vmatprep.subr.mxu0 0.0
    %3180 = vmatpush1.xpose.msra.mxu0 %v3177
    %3181 = vmatprep.subr.mxu0 0.0
    %3182 = vmatpush1.xpose.msra.mxu0 0.0
    %3183 = vmatprep.subr.mxu0 0.0
    %3184 = vmatpush1.xpose.msra.mxu0 0.0
    %3185 = vmatprep.subr.mxu0 0.0
    %3186 = vmatpush1.xpose.msra.mxu0 0.0
    %3187 = vmatprep.subr.mxu0 0.0
    %3188 = vmatpush1.xpose.msra.mxu0 0.0
    %3189 = vmatprep.subr.mxu0 0.0
    %3190 = vmatpush1.xpose.msra.mxu0 0.0
    %3191 = vmatprep.subr.mxu0 0.0
    %3192 = vmatpush1.xpose.msra.mxu0 0.0
    %3193 = vmatprep.subr.mxu0 0.0
    %3194 = vmatpush1.xpose.msra.mxu0 0.0
    %3195 = vmatprep.subr.mxu0 0.0
    %3196 = vmatpush1.xpose.msra.mxu0 0.0
    %3197 = vmatprep.subr.mxu0 0.0
    %3198 = vmatpush1.xpose.msra.mxu0 0.0
    %3199 = vmatprep.subr.mxu0 0.0
    %3200 = vmatpush1.xpose.msra.mxu0 0.0
    %3201 = vmatprep.subr.mxu0 0.0
    %3202 = vmatpush1.xpose.msra.mxu0 0.0
    %3203 = vmatprep.subr.mxu0 0.0
    %3204 = vmatpush1.xpose.msra.mxu0 0.0
    %3205 = vmatprep.subr.mxu0 0.0
    %3206 = vmatpush1.xpose.msra.mxu0 0.0
    %3207 = vmatprep.subr.mxu0 0.0
    %3208 = vmatpush1.xpose.msra.mxu0 0.0
    %3209 = vmatprep.subr.mxu0 0.0
    %3210 = vmatpush1.xpose.msra.mxu0 0.0
    %3211 = vmatprep.subr.mxu0 0.0
    %3212 = vmatpush1.xpose.msra.mxu0 0.0
    %3213 = vmatprep.subr.mxu0 0.0
    %3214 = vmatpush1.xpose.msra.mxu0 0.0
    %3215 = vmatprep.subr.mxu0 0.0
    %3216 = vmatpush1.xpose.msra.mxu0 0.0
    %3217 = vmatprep.subr.mxu0 0.0
    %3218 = vmatpush1.xpose.msra.mxu0 0.0
    %3219 = vmatprep.subr.mxu0 0.0
    %3220 = vmatpush1.xpose.msra.mxu0 0.0
    %3221 = vmatprep.subr.mxu0 0.0
    %3222 = vmatpush1.xpose.msra.mxu0 0.0
    %3223 = vmatprep.subr.mxu0 0.0
    %3224 = vmatpush1.xpose.msra.mxu0 0.0
    %3225 = vmatprep.subr.mxu0 0.0
    %3226 = vmatpush1.xpose.msra.mxu0 0.0
    %3227 = vmatprep.subr.mxu0 0.0
    %3228 = vmatpush1.xpose.msra.mxu0 0.0
    %3229 = vmatprep.subr.mxu0 0.0
    %3230 = vmatpush1.xpose.msra.mxu0 0.0
    %3231 = vmatprep.subr.mxu0 0.0
    %3232 = vmatpush1.xpose.msra.mxu0 0.0
    %3233 = vmatprep.subr.mxu0 0.0
    %3234 = vmatpush1.xpose.msra.mxu0 0.0
    %3235 = vmatprep.subr.mxu0 0.0
    %3236 = vmatpush1.xpose.msra.mxu0 0.0
    %3237 = vmatprep.subr.mxu0 0.0
    %3238 = vmatpush1.xpose.msra.mxu0 0.0
    %3239 = vmatprep.subr.mxu0 0.0
    %3240 = vmatpush1.xpose.msra.mxu0 0.0
    %3241 = vmatprep.subr.mxu0 0.0
    %3242 = vmatpush1.xpose.msra.mxu0 0.0
    %3243 = vmatprep.mubr.f32.mxu0 0.0
    %3244 = vmatmul.mubr.f32.gmra.mrb[0].mxu0 %v3175
    %v3245 = vpop.f32.mrb[0].mxu0
    %v3246 = vadd.f32 0.0, %v3245
    %v3247 = vpop.f32.mrb[0].mxu0
    %3248 = vdwg.mxu0
    %3249 = vrot.lane.b32.xlu0 %v2174, 104
    %v3250 = vpop.permute.xlu0 %3249
    %3251 = vrot.lane.b32.xlu0 %v2174, 72
    %v3252 = vpop.permute.xlu0 %3251
    %v3253 = vsel %vm344, %v3250, 0
    %v3255 = vsel %vm344, %v3252, 0
    %3257 = vmatprep.subr.mxu0 0.0
    %3258 = vmatpush1.xpose.msra.mxu0 %v3255
    %3259 = vmatprep.subr.mxu0 0.0
    %3260 = vmatpush1.xpose.msra.mxu0 0.0
    %3261 = vmatprep.subr.mxu0 0.0
    %3262 = vmatpush1.xpose.msra.mxu0 0.0
    %3263 = vmatprep.subr.mxu0 0.0
    %3264 = vmatpush1.xpose.msra.mxu0 0.0
    %3265 = vmatprep.subr.mxu0 0.0
    %3266 = vmatpush1.xpose.msra.mxu0 0.0
    %3267 = vmatprep.subr.mxu0 0.0
    %3268 = vmatpush1.xpose.msra.mxu0 0.0
    %3269 = vmatprep.subr.mxu0 0.0
    %3270 = vmatpush1.xpose.msra.mxu0 0.0
    %3271 = vmatprep.subr.mxu0 0.0
    %3272 = vmatpush1.xpose.msra.mxu0 0.0
    %3273 = vmatprep.subr.mxu0 0.0
    %3274 = vmatpush1.xpose.msra.mxu0 0.0
    %3275 = vmatprep.subr.mxu0 0.0
    %3276 = vmatpush1.xpose.msra.mxu0 0.0
    %3277 = vmatprep.subr.mxu0 0.0
    %3278 = vmatpush1.xpose.msra.mxu0 0.0
    %3279 = vmatprep.subr.mxu0 0.0
    %3280 = vmatpush1.xpose.msra.mxu0 0.0
    %3281 = vmatprep.subr.mxu0 0.0
    %3282 = vmatpush1.xpose.msra.mxu0 0.0
    %3283 = vmatprep.subr.mxu0 0.0
    %3284 = vmatpush1.xpose.msra.mxu0 0.0
    %3285 = vmatprep.subr.mxu0 0.0
    %3286 = vmatpush1.xpose.msra.mxu0 0.0
    %3287 = vmatprep.subr.mxu0 0.0
    %3288 = vmatpush1.xpose.msra.mxu0 0.0
    %3289 = vmatprep.subr.mxu0 0.0
    %3290 = vmatpush1.xpose.msra.mxu0 0.0
    %3291 = vmatprep.subr.mxu0 0.0
    %3292 = vmatpush1.xpose.msra.mxu0 0.0
    %3293 = vmatprep.subr.mxu0 0.0
    %3294 = vmatpush1.xpose.msra.mxu0 0.0
    %3295 = vmatprep.subr.mxu0 0.0
    %3296 = vmatpush1.xpose.msra.mxu0 0.0
    %3297 = vmatprep.subr.mxu0 0.0
    %3298 = vmatpush1.xpose.msra.mxu0 0.0
    %3299 = vmatprep.subr.mxu0 0.0
    %3300 = vmatpush1.xpose.msra.mxu0 0.0
    %3301 = vmatprep.subr.mxu0 0.0
    %3302 = vmatpush1.xpose.msra.mxu0 0.0
    %3303 = vmatprep.subr.mxu0 0.0
    %3304 = vmatpush1.xpose.msra.mxu0 0.0
    %3305 = vmatprep.subr.mxu0 0.0
    %3306 = vmatpush1.xpose.msra.mxu0 0.0
    %3307 = vmatprep.subr.mxu0 0.0
    %3308 = vmatpush1.xpose.msra.mxu0 0.0
    %3309 = vmatprep.subr.mxu0 0.0
    %3310 = vmatpush1.xpose.msra.mxu0 0.0
    %3311 = vmatprep.subr.mxu0 0.0
    %3312 = vmatpush1.xpose.msra.mxu0 0.0
    %3313 = vmatprep.subr.mxu0 0.0
    %3314 = vmatpush1.xpose.msra.mxu0 0.0
    %3315 = vmatprep.subr.mxu0 0.0
    %3316 = vmatpush1.xpose.msra.mxu0 0.0
    %3317 = vmatprep.subr.mxu0 0.0
    %3318 = vmatpush1.xpose.msra.mxu0 0.0
    %3319 = vmatprep.subr.mxu0 0.0
    %3320 = vmatpush1.xpose.msra.mxu0 0.0
    %3321 = vmatprep.mubr.f32.mxu0 0.0
    %3322 = vmatmul.mubr.f32.gmra.mrb[0].mxu0 %v3253
    %v3323 = vpop.f32.mrb[0].mxu0
    %v3324 = vadd.f32 0.0, %v3323
    %v3325 = vpop.f32.mrb[0].mxu0
    %3326 = vdwg.mxu0
    %v3327 = vmul.f32 %v3246, 0.35355338
    %v3328 = vmul.f32 %v3324, 0.35355338
    %v3329 = vsel %vm344, %v3327, -inf
    %3330 = vmax.xlane.f32.xlu0 %v3329
    %v3331 = vpop.xlane.xlu0 %3330
    %v3332 = vsel %vm344, %v3328, -inf
    %3333 = vmax.xlane.f32.xlu0 %v3332
    %v3334 = vpop.xlane.xlu0 %3333
    %v3335 = vsub.f32 %v3327, %v3331
    %v3336 = vsub.f32 %v3328, %v3334
    %v3337 = vmul.f32 %v3335, 1.442695
    %v3338 = vpow.pop %v3337
    %v3339 = vmul.f32 %v3336, 1.442695
    %v3340 = vpow.pop %v3339
    %v3341 = vsel %vm344, %v3338, 0.0
    %3342 = vadd.xlane.f32.xlu0 %v3341
    %v3343 = vpop.xlane.xlu0 %3342
    %v3344 = vsel %vm344, %v3340, 0.0
    %3345 = vadd.xlane.f32.xlu0 %v3344
    %v3346 = vpop.xlane.xlu0 %3345
    %v3347 = vrcp.pop %v3343
    %v3348 = vrcp.pop %v3346
    %v3349 = vmul.f32 %v3338, %v3347
    %v3350 = vmul.f32 %v3340, %v3348
    %3351 = vrot.lane.b32.xlu0 %v2169, 40
    %v3352 = vpop.permute.xlu0 %3351
    %v3355 = vsel %vm344, %v3349, 0
    %3357 = vmatprep.subr.mxu0 0.0
    %3358 = vmatpush1.msra.mxu0 %v3352
    %3359 = vmatprep.subr.mxu0 0.0
    %3360 = vmatpush1.msra.mxu0 0.0
    %3361 = vmatprep.subr.mxu0 0.0
    %3362 = vmatpush1.msra.mxu0 0.0
    %3363 = vmatprep.subr.mxu0 0.0
    %3364 = vmatpush1.msra.mxu0 0.0
    %3365 = vmatprep.subr.mxu0 0.0
    %3366 = vmatpush1.msra.mxu0 0.0
    %3367 = vmatprep.subr.mxu0 0.0
    %3368 = vmatpush1.msra.mxu0 0.0
    %3369 = vmatprep.subr.mxu0 0.0
    %3370 = vmatpush1.msra.mxu0 0.0
    %3371 = vmatprep.subr.mxu0 0.0
    %3372 = vmatpush1.msra.mxu0 0.0
    %3373 = vmatprep.subr.mxu0 0.0
    %3374 = vmatpush1.msra.mxu0 0.0
    %3375 = vmatprep.subr.mxu0 0.0
    %3376 = vmatpush1.msra.mxu0 0.0
    %3377 = vmatprep.subr.mxu0 0.0
    %3378 = vmatpush1.msra.mxu0 0.0
    %3379 = vmatprep.subr.mxu0 0.0
    %3380 = vmatpush1.msra.mxu0 0.0
    %3381 = vmatprep.subr.mxu0 0.0
    %3382 = vmatpush1.msra.mxu0 0.0
    %3383 = vmatprep.subr.mxu0 0.0
    %3384 = vmatpush1.msra.mxu0 0.0
    %3385 = vmatprep.subr.mxu0 0.0
    %3386 = vmatpush1.msra.mxu0 0.0
    %3387 = vmatprep.subr.mxu0 0.0
    %3388 = vmatpush1.msra.mxu0 0.0
    %3389 = vmatprep.subr.mxu0 0.0
    %3390 = vmatpush1.msra.mxu0 0.0
    %3391 = vmatprep.subr.mxu0 0.0
    %3392 = vmatpush1.msra.mxu0 0.0
    %3393 = vmatprep.subr.mxu0 0.0
    %3394 = vmatpush1.msra.mxu0 0.0
    %3395 = vmatprep.subr.mxu0 0.0
    %3396 = vmatpush1.msra.mxu0 0.0
    %3397 = vmatprep.subr.mxu0 0.0
    %3398 = vmatpush1.msra.mxu0 0.0
    %3399 = vmatprep.subr.mxu0 0.0
    %3400 = vmatpush1.msra.mxu0 0.0
    %3401 = vmatprep.subr.mxu0 0.0
    %3402 = vmatpush1.msra.mxu0 0.0
    %3403 = vmatprep.subr.mxu0 0.0
    %3404 = vmatpush1.msra.mxu0 0.0
    %3405 = vmatprep.subr.mxu0 0.0
    %3406 = vmatpush1.msra.mxu0 0.0
    %3407 = vmatprep.subr.mxu0 0.0
    %3408 = vmatpush1.msra.mxu0 0.0
    %3409 = vmatprep.subr.mxu0 0.0
    %3410 = vmatpush1.msra.mxu0 0.0
    %3411 = vmatprep.subr.mxu0 0.0
    %3412 = vmatpush1.msra.mxu0 0.0
    %3413 = vmatprep.subr.mxu0 0.0
    %3414 = vmatpush1.msra.mxu0 0.0
    %3415 = vmatprep.subr.mxu0 0.0
    %3416 = vmatpush1.msra.mxu0 0.0
    %3417 = vmatprep.subr.mxu0 0.0
    %3418 = vmatpush1.msra.mxu0 0.0
    %3419 = vmatprep.subr.mxu0 0.0
    %3420 = vmatpush1.msra.mxu0 0.0
    %3421 = vmatprep.mubr.f32.mxu0 0.0
    %3422 = vmatmul.mubr.f32.gmra.mrb[0].mxu0 %v3355
    %v3423 = vpop.f32.mrb[0].mxu0
    %v3424 = vadd.f32 0.0, %v3423
    %v3425 = vpop.f32.mrb[0].mxu0
    %3426 = vdwg.mxu0
    %3427 = vrot.lane.b32.xlu0 %v2174, 40
    %v3428 = vpop.permute.xlu0 %3427
    %v3431 = vsel %vm344, %v3350, 0
    %3433 = vmatprep.subr.mxu0 0.0
    %3434 = vmatpush1.msra.mxu0 %v3428
    %3435 = vmatprep.subr.mxu0 0.0
    %3436 = vmatpush1.msra.mxu0 0.0
    %3437 = vmatprep.subr.mxu0 0.0
    %3438 = vmatpush1.msra.mxu0 0.0
    %3439 = vmatprep.subr.mxu0 0.0
    %3440 = vmatpush1.msra.mxu0 0.0
    %3441 = vmatprep.subr.mxu0 0.0
    %3442 = vmatpush1.msra.mxu0 0.0
    %3443 = vmatprep.subr.mxu0 0.0
    %3444 = vmatpush1.msra.mxu0 0.0
    %3445 = vmatprep.subr.mxu0 0.0
    %3446 = vmatpush1.msra.mxu0 0.0
    %3447 = vmatprep.subr.mxu0 0.0
    %3448 = vmatpush1.msra.mxu0 0.0
    %3449 = vmatprep.subr.mxu0 0.0
    %3450 = vmatpush1.msra.mxu0 0.0
    %3451 = vmatprep.subr.mxu0 0.0
    %3452 = vmatpush1.msra.mxu0 0.0
    %3453 = vmatprep.subr.mxu0 0.0
    %3454 = vmatpush1.msra.mxu0 0.0
    %3455 = vmatprep.subr.mxu0 0.0
    %3456 = vmatpush1.msra.mxu0 0.0
    %3457 = vmatprep.subr.mxu0 0.0
    %3458 = vmatpush1.msra.mxu0 0.0
    %3459 = vmatprep.subr.mxu0 0.0
    %3460 = vmatpush1.msra.mxu0 0.0
    %3461 = vmatprep.subr.mxu0 0.0
    %3462 = vmatpush1.msra.mxu0 0.0
    %3463 = vmatprep.subr.mxu0 0.0
    %3464 = vmatpush1.msra.mxu0 0.0
    %3465 = vmatprep.subr.mxu0 0.0
    %3466 = vmatpush1.msra.mxu0 0.0
    %3467 = vmatprep.subr.mxu0 0.0
    %3468 = vmatpush1.msra.mxu0 0.0
    %3469 = vmatprep.subr.mxu0 0.0
    %3470 = vmatpush1.msra.mxu0 0.0
    %3471 = vmatprep.subr.mxu0 0.0
    %3472 = vmatpush1.msra.mxu0 0.0
    %3473 = vmatprep.subr.mxu0 0.0
    %3474 = vmatpush1.msra.mxu0 0.0
    %3475 = vmatprep.subr.mxu0 0.0
    %3476 = vmatpush1.msra.mxu0 0.0
    %3477 = vmatprep.subr.mxu0 0.0
    %3478 = vmatpush1.msra.mxu0 0.0
    %3479 = vmatprep.subr.mxu0 0.0
    %3480 = vmatpush1.msra.mxu0 0.0
    %3481 = vmatprep.subr.mxu0 0.0
    %3482 = vmatpush1.msra.mxu0 0.0
    %3483 = vmatprep.subr.mxu0 0.0
    %3484 = vmatpush1.msra.mxu0 0.0
    %3485 = vmatprep.subr.mxu0 0.0
    %3486 = vmatpush1.msra.mxu0 0.0
    %3487 = vmatprep.subr.mxu0 0.0
    %3488 = vmatpush1.msra.mxu0 0.0
    %3489 = vmatprep.subr.mxu0 0.0
    %3490 = vmatpush1.msra.mxu0 0.0
    %3491 = vmatprep.subr.mxu0 0.0
    %3492 = vmatpush1.msra.mxu0 0.0
    %3493 = vmatprep.subr.mxu0 0.0
    %3494 = vmatpush1.msra.mxu0 0.0
    %3495 = vmatprep.subr.mxu0 0.0
    %3496 = vmatpush1.msra.mxu0 0.0
    %3497 = vmatprep.mubr.f32.mxu0 0.0
    %3498 = vmatmul.mubr.f32.gmra.mrb[0].mxu0 %v3431
    %v3499 = vpop.f32.mrb[0].mxu0
    %v3500 = vadd.f32 0.0, %v3499
    %v3501 = vpop.f32.mrb[0].mxu0
    %3502 = vdwg.mxu0
    %3505 = vrot.lane.b32.xlu0 %v2760, 8
    %v3506 = vpop.permute.xlu0 %3505
    %3507 = vrot.lane.b32.xlu0 %v2836, 8
    %v3508 = vpop.permute.xlu0 %3507
    %3513 = vrot.lane.b32.xlu0 %v3092, 16
    %v3514 = vpop.permute.xlu0 %3513
    %3515 = vrot.lane.b32.xlu0 %v3168, 16
    %v3516 = vpop.permute.xlu0 %3515
    %3521 = vrot.lane.b32.xlu0 %v3424, 24
    %v3522 = vpop.permute.xlu0 %3521
    %3523 = vrot.lane.b32.xlu0 %v3500, 24
    %v3524 = vpop.permute.xlu0 %3523
    %v3527 = vsel %vm344, %v2428, %v3506
    %v3528 = vsel %vm344, %v2504, %v3508
    %v3529 = vsel %vm166, %v3527, %v3514
    %v3530 = vsel %vm166, %v3528, %v3516
    %v3531 = vsel %vm1696, %v3529, %v3522
    %v3532 = vsel %vm1696, %v3530, %v3524
    %s3533 = scalar_lea.vmem %s5, 32
    %v3534 = vld [vmem:[%s3533] sm:$0xff]
    %v3535 = vld [vmem:[%s3533 + $0x8] sm:$0xff]
    %v3536 = vld [vmem:[%s3533 + $0x10] sm:$0xff]
    %v3537 = vld [vmem:[%s3533 + $0x18] sm:$0xff]
    %s3538 = scalar_lea.vmem %s6, 1
    %v3539 = vld [vmem:[%s3538] sm:$0x1]
    %v3541 = vlaneseq
    %v3542 = vshrl.u32 %v3541, 7
    %v3543 = vsub.s32 0, %v3542
    %v3544 = vrot.slane %v3539, %v3543
    %v3547 = vsel %vm259, %v3531, 0
    %v3550 = vsel %vm259, %v3532, 0
    %3552 = vmatprep.subr.mxu0 0.0
    %3553 = vmatpush1.msra.mxu0 %v3534
    %3554 = vmatprep.subr.mxu0 0.0
    %3555 = vmatpush1.msra.mxu0 %v3535
    %3556 = vmatprep.subr.mxu0 0.0
    %3557 = vmatpush1.msra.mxu0 %v3536
    %3558 = vmatprep.subr.mxu0 0.0
    %3559 = vmatpush1.msra.mxu0 %v3537
    %3560 = vmatprep.subr.mxu0 0.0
    %3561 = vmatpush1.msra.mxu0 0.0
    %3562 = vmatprep.subr.mxu0 0.0
    %3563 = vmatpush1.msra.mxu0 0.0
    %3564 = vmatprep.subr.mxu0 0.0
    %3565 = vmatpush1.msra.mxu0 0.0
    %3566 = vmatprep.subr.mxu0 0.0
    %3567 = vmatpush1.msra.mxu0 0.0
    %3568 = vmatprep.subr.mxu0 0.0
    %3569 = vmatpush1.msra.mxu0 0.0
    %3570 = vmatprep.subr.mxu0 0.0
    %3571 = vmatpush1.msra.mxu0 0.0
    %3572 = vmatprep.subr.mxu0 0.0
    %3573 = vmatpush1.msra.mxu0 0.0
    %3574 = vmatprep.subr.mxu0 0.0
    %3575 = vmatpush1.msra.mxu0 0.0
    %3576 = vmatprep.subr.mxu0 0.0
    %3577 = vmatpush1.msra.mxu0 0.0
    %3578 = vmatprep.subr.mxu0 0.0
    %3579 = vmatpush1.msra.mxu0 0.0
    %3580 = vmatprep.subr.mxu0 0.0
    %3581 = vmatpush1.msra.mxu0 0.0
    %3582 = vmatprep.subr.mxu0 0.0
    %3583 = vmatpush1.msra.mxu0 0.0
    %3584 = vmatprep.subr.mxu0 0.0
    %3585 = vmatpush1.msra.mxu0 0.0
    %3586 = vmatprep.subr.mxu0 0.0
    %3587 = vmatpush1.msra.mxu0 0.0
    %3588 = vmatprep.subr.mxu0 0.0
    %3589 = vmatpush1.msra.mxu0 0.0
    %3590 = vmatprep.subr.mxu0 0.0
    %3591 = vmatpush1.msra.mxu0 0.0
    %3592 = vmatprep.subr.mxu0 0.0
    %3593 = vmatpush1.msra.mxu0 0.0
    %3594 = vmatprep.subr.mxu0 0.0
    %3595 = vmatpush1.msra.mxu0 0.0
    %3596 = vmatprep.subr.mxu0 0.0
    %3597 = vmatpush1.msra.mxu0 0.0
    %3598 = vmatprep.subr.mxu0 0.0
    %3599 = vmatpush1.msra.mxu0 0.0
    %3600 = vmatprep.subr.mxu0 0.0
    %3601 = vmatpush1.msra.mxu0 0.0
    %3602 = vmatprep.subr.mxu0 0.0
    %3603 = vmatpush1.msra.mxu0 0.0
    %3604 = vmatprep.subr.mxu0 0.0
    %3605 = vmatpush1.msra.mxu0 0.0
    %3606 = vmatprep.subr.mxu0 0.0
    %3607 = vmatpush1.msra.mxu0 0.0
    %3608 = vmatprep.subr.mxu0 0.0
    %3609 = vmatpush1.msra.mxu0 0.0
    %3610 = vmatprep.subr.mxu0 0.0
    %3611 = vmatpush1.msra.mxu0 0.0
    %3612 = vmatprep.subr.mxu0 0.0
    %3613 = vmatpush1.msra.mxu0 0.0
    %3614 = vmatprep.subr.mxu0 0.0
    %3615 = vmatpush1.msra.mxu0 0.0
    %3616 = vmatprep.mubr.f32.mxu0 0.0
    %3617 = vmatmul.mubr.f32.gmra.mrb[0].mxu0 %v3547
    %v3618 = vpop.f32.mrb[0].mxu0
    %v3619 = vadd.f32 %v3544, %v3618
    %v3620 = vpop.f32.mrb[0].mxu0
    %3621 = vmatprep.mubr.f32.mxu0 0.0
    %3622 = vmatmul.mubr.f32.gmra.mrb[0].mxu0 %v3550
    %v3623 = vpop.f32.mrb[0].mxu0
    %v3624 = vadd.f32 %v3544, %v3623
    %v3625 = vpop.f32.mrb[0].mxu0
    %3626 = vdwg.mxu0
    %v3627 = vadd.f32 %v2081, %v3619
    %v3628 = vadd.f32 %v2082, %v3624
    %s3629 = scalar_lea.vmem %s7, 1
    %v3630 = vld [vmem:[%s3629] sm:$0x1]
    %s3631 = scalar_lea.vmem %s8, 1
    %v3632 = vld [vmem:[%s3631] sm:$0x1]
    %v3633 = vsel %vm259, %v3627, 0.0
    %3634 = vadd.xlane.f32.xlu0 %v3633
    %v3635 = vpop.xlane.xlu0 %3634
    %v3636 = vsel %vm259, %v3628, 0.0
    %3637 = vadd.xlane.f32.xlu0 %v3636
    %v3638 = vpop.xlane.xlu0 %3637
    %v3639 = vmul.f32 %v3635, %v1801
    %v3640 = vmul.f32 %v3638, %v1801
    %v3641 = vmul.f32 %v3627, %v3627
    %v3642 = vmul.f32 %v3628, %v3628
    %v3643 = vsel %vm259, %v3641, 0.0
    %3644 = vadd.xlane.f32.xlu0 %v3643
    %v3645 = vpop.xlane.xlu0 %3644
    %v3646 = vsel %vm259, %v3642, 0.0
    %3647 = vadd.xlane.f32.xlu0 %v3646
    %v3648 = vpop.xlane.xlu0 %3647
    %v3649 = vmul.f32 %v3645, %v1801
    %v3650 = vmul.f32 %v3648, %v1801
    %v3651 = vmul.f32 %v3639, %v3639
    %v3652 = vmul.f32 %v3640, %v3640
    %v3653 = vsub.f32 %v3649, %v3651
    %v3654 = vsub.f32 %v3650, %v3652
    %v3655 = vsub.f32 %v3627, %v3639
    %v3656 = vsub.f32 %v3628, %v3640
    %v3657 = vadd.f32 %v3653, 1e-05
    %v3658 = vadd.f32 %v3654, 1e-05
    %v3659 = vrsqrt.pop %v3657
    %v3660 = vrsqrt.pop %v3658
    %v3661 = vmul.f32 %v3655, %v3659
    %v3662 = vmul.f32 %v3656, %v3660
    %v3664 = vlaneseq
    %v3665 = vshrl.u32 %v3664, 7
    %v3666 = vsub.s32 0, %v3665
    %v3667 = vrot.slane %v3630, %v3666
    %v3669 = vmul.f32 %v3661, %v3667
    %v3670 = vmul.f32 %v3662, %v3667
    %v3672 = vlaneseq
    %v3673 = vshrl.u32 %v3672, 7
    %v3674 = vsub.s32 0, %v3673
    %v3675 = vrot.slane %v3632, %v3674
    %v3677 = vadd.f32 %v3669, %v3675
    %v3678 = vadd.f32 %v3670, %v3675
    %s3679 = scalar_lea.vmem %s9, 32
    %v3680 = vld [vmem:[%s3679] sm:$0xff]
    %v3681 = vld [vmem:[%s3679 + $0x8] sm:$0xff]
    %v3682 = vld [vmem:[%s3679 + $0x10] sm:$0xff]
    %v3683 = vld [vmem:[%s3679 + $0x18] sm:$0xff]
    %s3684 = scalar_lea.vmem [#allocation5], 1
    %v3685 = vld [vmem:[%s3684] sm:$0x1]
    %v3687 = vlaneseq
    %v3688 = vshrl.u32 %v3687, 7
    %v3689 = vsub.s32 0, %v3688
    %v3690 = vrot.slane %v3685, %v3689
    %v3693 = vsel %vm259, %v3677, 0
    %v3696 = vsel %vm259, %v3678, 0
    %3698 = vmatprep.subr.mxu0 0.0
    %3699 = vmatpush1.msra.mxu0 %v3680
    %3700 = vmatprep.subr.mxu0 0.0
    %3701 = vmatpush1.msra.mxu0 %v3681
    %3702 = vmatprep.subr.mxu0 0.0
    %3703 = vmatpush1.msra.mxu0 %v3682
    %3704 = vmatprep.subr.mxu0 0.0
    %3705 = vmatpush1.msra.mxu0 %v3683
    %3706 = vmatprep.subr.mxu0 0.0
    %3707 = vmatpush1.msra.mxu0 0.0
    %3708 = vmatprep.subr.mxu0 0.0
    %3709 = vmatpush1.msra.mxu0 0.0
    %3710 = vmatprep.subr.mxu0 0.0
    %3711 = vmatpush1.msra.mxu0 0.0
    %3712 = vmatprep.subr.mxu0 0.0
    %3713 = vmatpush1.msra.mxu0 0.0
    %3714 = vmatprep.subr.mxu0 0.0
    %3715 = vmatpush1.msra.mxu0 0.0
    %3716 = vmatprep.subr.mxu0 0.0
    %3717 = vmatpush1.msra.mxu0 0.0
    %3718 = vmatprep.subr.mxu0 0.0
    %3719 = vmatpush1.msra.mxu0 0.0
    %3720 = vmatprep.subr.mxu0 0.0
    %3721 = vmatpush1.msra.mxu0 0.0
    %3722 = vmatprep.subr.mxu0 0.0
    %3723 = vmatpush1.msra.mxu0 0.0
    %3724 = vmatprep.subr.mxu0 0.0
    %3725 = vmatpush1.msra.mxu0 0.0
    %3726 = vmatprep.subr.mxu0 0.0
    %3727 = vmatpush1.msra.mxu0 0.0
    %3728 = vmatprep.subr.mxu0 0.0
    %3729 = vmatpush1.msra.mxu0 0.0
    %3730 = vmatprep.subr.mxu0 0.0
    %3731 = vmatpush1.msra.mxu0 0.0
    %3732 = vmatprep.subr.mxu0 0.0
    %3733 = vmatpush1.msra.mxu0 0.0
    %3734 = vmatprep.subr.mxu0 0.0
    %3735 = vmatpush1.msra.mxu0 0.0
    %3736 = vmatprep.subr.mxu0 0.0
    %3737 = vmatpush1.msra.mxu0 0.0
    %3738 = vmatprep.subr.mxu0 0.0
    %3739 = vmatpush1.msra.mxu0 0.0
    %3740 = vmatprep.subr.mxu0 0.0
    %3741 = vmatpush1.msra.mxu0 0.0
    %3742 = vmatprep.subr.mxu0 0.0
    %3743 = vmatpush1.msra.mxu0 0.0
    %3744 = vmatprep.subr.mxu0 0.0
    %3745 = vmatpush1.msra.mxu0 0.0
    %3746 = vmatprep.subr.mxu0 0.0
    %3747 = vmatpush1.msra.mxu0 0.0
    %3748 = vmatprep.subr.mxu0 0.0
    %3749 = vmatpush1.msra.mxu0 0.0
    %3750 = vmatprep.subr.mxu0 0.0
    %3751 = vmatpush1.msra.mxu0 0.0
    %3752 = vmatprep.subr.mxu0 0.0
    %3753 = vmatpush1.msra.mxu0 0.0
    %3754 = vmatprep.subr.mxu0 0.0
    %3755 = vmatpush1.msra.mxu0 0.0
    %3756 = vmatprep.subr.mxu0 0.0
    %3757 = vmatpush1.msra.mxu0 0.0
    %3758 = vmatprep.subr.mxu0 0.0
    %3759 = vmatpush1.msra.mxu0 0.0
    %3760 = vmatprep.subr.mxu0 0.0
    %3761 = vmatpush1.msra.mxu0 0.0
    %3762 = vmatprep.mubr.f32.mxu0 0.0
    %3763 = vmatmul.mubr.f32.gmra.mrb[0].mxu0 %v3693
    %v3764 = vpop.f32.mrb[0].mxu0
    %v3765 = vadd.f32 %v3690, %v3764
    %v3766 = vpop.f32.mrb[0].mxu0
    %3767 = vmatprep.mubr.f32.mxu0 0.0
    %3768 = vmatmul.mubr.f32.gmra.mrb[0].mxu0 %v3696
    %v3769 = vpop.f32.mrb[0].mxu0
    %v3770 = vadd.f32 %v3690, %v3769
    %v3771 = vpop.f32.mrb[0].mxu0
    %3772 = vdwg.mxu0
    %v3773 = vmax.f32 %v3765, 0.0
    %v3774 = vmax.f32 %v3770, 0.0
    %s3775 = scalar_lea.vmem %s11, 64
    %v3776 = vld [vmem:[%s3775] sm:$0xff]
    %v3777 = vld [vmem:[%s3775 + $0x8] sm:$0xff]
    %v3778 = vld [vmem:[%s3775 + $0x10] sm:$0xff]
    %v3779 = vld [vmem:[%s3775 + $0x18] sm:$0xff]
    %v3780 = vld [vmem:[%s3775 + $0x20] sm:$0xff]
    %v3781 = vld [vmem:[%s3775 + $0x28] sm:$0xff]
    %v3782 = vld [vmem:[%s3775 + $0x30] sm:$0xff]
    %v3783 = vld [vmem:[%s3775 + $0x38] sm:$0xff]
    %s3784 = scalar_lea.vmem [#allocation7], 1
    %v3785 = vld [vmem:[%s3784] sm:$0x1]
    %v3787 = vlaneseq
    %v3788 = vshrl.u32 %v3787, 7
    %v3789 = vsub.s32 0, %v3788
    %v3790 = vrot.slane %v3785, %v3789
    %v3793 = vsel %vm1951, %v3773, 0
    %v3796 = vsel %vm1951, %v3774, 0
    %3798 = vmatprep.subr.mxu0 0.0
    %3799 = vmatpush1.msra.mxu0 %v3776
    %3800 = vmatprep.subr.mxu0 0.0
    %3801 = vmatpush1.msra.mxu0 %v3777
    %3802 = vmatprep.subr.mxu0 0.0
    %3803 = vmatpush1.msra.mxu0 %v3778
    %3804 = vmatprep.subr.mxu0 0.0
    %3805 = vmatpush1.msra.mxu0 %v3779
    %3806 = vmatprep.subr.mxu0 0.0
    %3807 = vmatpush1.msra.mxu0 %v3780
    %3808 = vmatprep.subr.mxu0 0.0
    %3809 = vmatpush1.msra.mxu0 %v3781
    %3810 = vmatprep.subr.mxu0 0.0
    %3811 = vmatpush1.msra.mxu0 %v3782
    %3812 = vmatprep.subr.mxu0 0.0
    %3813 = vmatpush1.msra.mxu0 %v3783
    %3814 = vmatprep.subr.mxu0 0.0
    %3815 = vmatpush1.msra.mxu0 0.0
    %3816 = vmatprep.subr.mxu0 0.0
    %3817 = vmatpush1.msra.mxu0 0.0
    %3818 = vmatprep.subr.mxu0 0.0
    %3819 = vmatpush1.msra.mxu0 0.0
    %3820 = vmatprep.subr.mxu0 0.0
    %3821 = vmatpush1.msra.mxu0 0.0
    %3822 = vmatprep.subr.mxu0 0.0
    %3823 = vmatpush1.msra.mxu0 0.0
    %3824 = vmatprep.subr.mxu0 0.0
    %3825 = vmatpush1.msra.mxu0 0.0
    %3826 = vmatprep.subr.mxu0 0.0
    %3827 = vmatpush1.msra.mxu0 0.0
    %3828 = vmatprep.subr.mxu0 0.0
    %3829 = vmatpush1.msra.mxu0 0.0
    %3830 = vmatprep.subr.mxu0 0.0
    %3831 = vmatpush1.msra.mxu0 0.0
    %3832 = vmatprep.subr.mxu0 0.0
    %3833 = vmatpush1.msra.mxu0 0.0
    %3834 = vmatprep.subr.mxu0 0.0
    %3835 = vmatpush1.msra.mxu0 0.0
    %3836 = vmatprep.subr.mxu0 0.0
    %3837 = vmatpush1.msra.mxu0 0.0
    %3838 = vmatprep.subr.mxu0 0.0
    %3839 = vmatpush1.msra.mxu0 0.0
    %3840 = vmatprep.subr.mxu0 0.0
    %3841 = vmatpush1.msra.mxu0 0.0
    %3842 = vmatprep.subr.mxu0 0.0
    %3843 = vmatpush1.msra.mxu0 0.0
    %3844 = vmatprep.subr.mxu0 0.0
    %3845 = vmatpush1.msra.mxu0 0.0
    %3846 = vmatprep.subr.mxu0 0.0
    %3847 = vmatpush1.msra.mxu0 0.0
    %3848 = vmatprep.subr.mxu0 0.0
    %3849 = vmatpush1.msra.mxu0 0.0
    %3850 = vmatprep.subr.mxu0 0.0
    %3851 = vmatpush1.msra.mxu0 0.0
    %3852 = vmatprep.subr.mxu0 0.0
    %3853 = vmatpush1.msra.mxu0 0.0
    %3854 = vmatprep.subr.mxu0 0.0
    %3855 = vmatpush1.msra.mxu0 0.0
    %3856 = vmatprep.subr.mxu0 0.0
    %3857 = vmatpush1.msra.mxu0 0.0
    %3858 = vmatprep.subr.mxu0 0.0
    %3859 = vmatpush1.msra.mxu0 0.0
    %3860 = vmatprep.subr.mxu0 0.0
    %3861 = vmatpush1.msra.mxu0 0.0
    %3862 = vmatprep.mubr.f32.mxu0 0.0
    %3863 = vmatmul.mubr.f32.gmra.mrb[0].mxu0 %v3793
    %v3864 = vpop.f32.mrb[0].mxu0
    %v3865 = vadd.f32 %v3790, %v3864
    %v3866 = vpop.f32.mrb[0].mxu0
    %3867 = vmatprep.mubr.f32.mxu0 0.0
    %3868 = vmatmul.mubr.f32.gmra.mrb[0].mxu0 %v3796
    %v3869 = vpop.f32.mrb[0].mxu0
    %v3870 = vadd.f32 %v3790, %v3869
    %v3871 = vpop.f32.mrb[0].mxu0
    %3872 = vdwg.mxu0
    %v3873 = vadd.f32 %v3677, %v3865
    %v3874 = vadd.f32 %v3678, %v3870
    %s3875 = scalar_lea.vmem [#allocation8], 1
    %v3876 = vld [vmem:[%s3875] sm:$0x1]
    %s3877 = scalar_lea.vmem [#allocation10], 1
    %v3878 = vld [vmem:[%s3877] sm:$0x1]
    %v3879 = vsel %vm259, %v3873, 0.0
    %3880 = vadd.xlane.f32.xlu0 %v3879
    %v3881 = vpop.xlane.xlu0 %3880
    %v3882 = vsel %vm259, %v3874, 0.0
    %3883 = vadd.xlane.f32.xlu0 %v3882
    %v3884 = vpop.xlane.xlu0 %3883
    %v3885 = vmul.f32 %v3881, %v1801
    %v3886 = vmul.f32 %v3884, %v1801
    %v3887 = vmul.f32 %v3873, %v3873
    %v3888 = vmul.f32 %v3874, %v3874
    %v3889 = vsel %vm259, %v3887, 0.0
    %3890 = vadd.xlane.f32.xlu0 %v3889
    %v3891 = vpop.xlane.xlu0 %3890
    %v3892 = vsel %vm259, %v3888, 0.0
    %3893 = vadd.xlane.f32.xlu0 %v3892
    %v3894 = vpop.xlane.xlu0 %3893
    %v3895 = vmul.f32 %v3891, %v1801
    %v3896 = vmul.f32 %v3894, %v1801
    %v3897 = vmul.f32 %v3885, %v3885
    %v3898 = vmul.f32 %v3886, %v3886
    %v3899 = vsub.f32 %v3895, %v3897
    %v3900 = vsub.f32 %v3896, %v3898
    %v3901 = vsub.f32 %v3873, %v3885
    %v3902 = vsub.f32 %v3874, %v3886
    %v3903 = vadd.f32 %v3899, 1e-05
    %v3904 = vadd.f32 %v3900, 1e-05
    %v3905 = vrsqrt.pop %v3903
    %v3906 = vrsqrt.pop %v3904
    %v3907 = vmul.f32 %v3901, %v3905
    %v3908 = vmul.f32 %v3902, %v3906
    %v3910 = vlaneseq
    %v3911 = vshrl.u32 %v3910, 7
    %v3912 = vsub.s32 0, %v3911
    %v3913 = vrot.slane %v3876, %v3912
    %v3915 = vmul.f32 %v3907, %v3913
    %v3916 = vmul.f32 %v3908, %v3913
    %v3918 = vlaneseq
    %v3919 = vshrl.u32 %v3918, 7
    %v3920 = vsub.s32 0, %v3919
    %v3921 = vrot.slane %v3878, %v3920
    %v3923 = vadd.f32 %v3915, %v3921
    %v3924 = vadd.f32 %v3916, %v3921
    %v3925 = vld [vmem:[#allocation11] sm:$0x1]
    %v3926 = vld [vmem:[#allocation13] sm:$0x1]
    %v3929 = vrot.slane %v3924, 7
    %vm3932 = vcmask 261127
    %v3933 = vsel %vm3932, %v3923, 0.0
    %3934 = vadd.xlane.f32.xlu0 %v3933
    %v3935 = vpop.xlane.xlu0 %3934
    %vm3936 = vcmask 253952
    %v3937 = vsel %vm3936, %v3929, 0.0
    %3938 = vadd.xlane.f32.xlu0 %v3937
    %v3939 = vpop.xlane.xlu0 %3938
    %v3940 = vmul.f32 %v3935, %v1801
    %v3941 = vmul.f32 %v3939, %v1801
    %v3942 = vmul.f32 %v3923, %v3923
    %v3943 = vmul.f32 %v3924, %v3924
    %v3946 = vrot.slane %v3943, 7
    %v3949 = vsel %vm3932, %v3942, 0.0
    %3950 = vadd.xlane.f32.xlu0 %v3949
    %v3951 = vpop.xlane.xlu0 %3950
    %v3952 = vsel %vm3936, %v3946, 0.0
    %3953 = vadd.xlane.f32.xlu0 %v3952
    %v3954 = vpop.xlane.xlu0 %3953
    %v3955 = vmul.f32 %v3951, %v1801
    %v3956 = vmul.f32 %v3954, %v1801
    %v3957 = vmul.f32 %v3940, %v3940
    %v3958 = vmul.f32 %v3941, %v3941
    %v3959 = vsub.f32 %v3955, %v3957
    %v3960 = vsub.f32 %v3956, %v3958
    %v3963 = vrot.slane %v3941, 1
    %v3966 = vsub.f32 %v3923, %v3940
    %v3967 = vsub.f32 %v3924, %v3963
    %v3968 = vadd.f32 %v3959, 1e-05
    %v3969 = vadd.f32 %v3960, 1e-05
    %v3970 = vrsqrt.pop %v3968
    %v3971 = vrsqrt.pop %v3969
    %v3974 = vrot.slane %v3971, 1
    %v3977 = vmul.f32 %v3966, %v3970
    %v3978 = vmul.f32 %v3967, %v3974
    %v3980 = vlaneseq
    %v3981 = vshrl.u32 %v3980, 7
    %v3982 = vsub.s32 0, %v3981
    %v3983 = vrot.slane %v3925, %v3982
    %v3985 = vmul.f32 %v3977, %v3983
    %v3986 = vmul.f32 %v3978, %v3983
    %v3988 = vlaneseq
    %v3989 = vshrl.u32 %v3988, 7
    %v3990 = vsub.s32 0, %v3989
    %v3991 = vrot.slane %v3926, %v3990
    %v3993 = vadd.f32 %v3985, %v3991
    %v3994 = vadd.f32 %v3986, %v3991
    %v3995 = vld [vmem:[%s17] sm:$0xff]
    %v3996 = vld [vmem:[%s17 + $0x8] sm:$0xff]
    %v3997 = vld [vmem:[%s17 + $0x10] sm:$0xff]
    %v3998 = vld [vmem:[%s17 + $0x18] sm:$0xff]
    %v3999 = vld [vmem:[#allocation2] sm:$0x1]
    %v4001 = vlaneseq
    %v4002 = vshrl.u32 %v4001, 7
    %v4003 = vsub.s32 0, %v4002
    %v4004 = vrot.slane %v3999, %v4003
    %v4008 = vrot.slane %v3993, 7
    %v4009 = vrot.slane %v3994, 6
    %vm4010 = vcmask 1041409
    %v4011 = vsel %vm4010, %v4009, %v4008
    %v4012 = vsel %vm259, %v4011, 0
    %4014 = vmatprep.subr.mxu0 0.0
    %4015 = vmatpush1.msra.mxu0 %v3995
    %4016 = vmatprep.subr.mxu0 0.0
    %4017 = vmatpush1.msra.mxu0 %v3996
    %4018 = vmatprep.subr.mxu0 0.0
    %4019 = vmatpush1.msra.mxu0 %v3997
    %4020 = vmatprep.subr.mxu0 0.0
    %4021 = vmatpush1.msra.mxu0 %v3998
    %4022 = vmatprep.subr.mxu0 0.0
    %4023 = vmatpush1.msra.mxu0 0.0
    %4024 = vmatprep.subr.mxu0 0.0
    %4025 = vmatpush1.msra.mxu0 0.0
    %4026 = vmatprep.subr.mxu0 0.0
    %4027 = vmatpush1.msra.mxu0 0.0
    %4028 = vmatprep.subr.mxu0 0.0
    %4029 = vmatpush1.msra.mxu0 0.0
    %4030 = vmatprep.subr.mxu0 0.0
    %4031 = vmatpush1.msra.mxu0 0.0
    %4032 = vmatprep.subr.mxu0 0.0
    %4033 = vmatpush1.msra.mxu0 0.0
    %4034 = vmatprep.subr.mxu0 0.0
    %4035 = vmatpush1.msra.mxu0 0.0
    %4036 = vmatprep.subr.mxu0 0.0
    %4037 = vmatpush1.msra.mxu0 0.0
    %4038 = vmatprep.subr.mxu0 0.0
    %4039 = vmatpush1.msra.mxu0 0.0
    %4040 = vmatprep.subr.mxu0 0.0
    %4041 = vmatpush1.msra.mxu0 0.0
    %4042 = vmatprep.subr.mxu0 0.0
    %4043 = vmatpush1.msra.mxu0 0.0
    %4044 = vmatprep.subr.mxu0 0.0
    %4045 = vmatpush1.msra.mxu0 0.0
    %4046 = vmatprep.subr.mxu0 0.0
    %4047 = vmatpush1.msra.mxu0 0.0
    %4048 = vmatprep.subr.mxu0 0.0
    %4049 = vmatpush1.msra.mxu0 0.0
    %4050 = vmatprep.subr.mxu0 0.0
    %4051 = vmatpush1.msra.mxu0 0.0
    %4052 = vmatprep.subr.mxu0 0.0
    %4053 = vmatpush1.msra.mxu0 0.0
    %4054 = vmatprep.subr.mxu0 0.0
    %4055 = vmatpush1.msra.mxu0 0.0
    %4056 = vmatprep.subr.mxu0 0.0
    %4057 = vmatpush1.msra.mxu0 0.0
    %4058 = vmatprep.subr.mxu0 0.0
    %4059 = vmatpush1.msra.mxu0 0.0
    %4060 = vmatprep.subr.mxu0 0.0
    %4061 = vmatpush1.msra.mxu0 0.0
    %4062 = vmatprep.subr.mxu0 0.0
    %4063 = vmatpush1.msra.mxu0 0.0
    %4064 = vmatprep.subr.mxu0 0.0
    %4065 = vmatpush1.msra.mxu0 0.0
    %4066 = vmatprep.subr.mxu0 0.0
    %4067 = vmatpush1.msra.mxu0 0.0
    %4068 = vmatprep.subr.mxu0 0.0
    %4069 = vmatpush1.msra.mxu0 0.0
    %4070 = vmatprep.subr.mxu0 0.0
    %4071 = vmatpush1.msra.mxu0 0.0
    %4072 = vmatprep.subr.mxu0 0.0
    %4073 = vmatpush1.msra.mxu0 0.0
    %4074 = vmatprep.subr.mxu0 0.0
    %4075 = vmatpush1.msra.mxu0 0.0
    %4076 = vmatprep.subr.mxu0 0.0
    %4077 = vmatpush1.msra.mxu0 0.0
    %4078 = vmatprep.mubr.f32.mxu0 0.0
    %4079 = vmatmul.mubr.f32.gmra.mrb[0].mxu0 %v4012
    %v4080 = vpop.f32.mrb[0].mxu0
    %v4081 = vadd.f32 %v4004, %v4080
    %v4082 = vpop.f32.mrb[0].mxu0
    %4083 = vdwg.mxu0
    %vm4084 = vcmask 1024
    %4085 = vst.msk [vmem:[%s19] sm:$0x3] %vm4084, %v4081
    // Predicated region
    $region106: #{transformer_forward.1} parent=1 // pred_check
      _
    $region107: #{transformer_forward.1} parent=1 // pred_check_branch
      %4087 = sbr.rel (0) target = $region109
    $region108: #{transformer_forward.1} parent=1 // pred_region
      _
    $region109: #{transformer_forward.1} parent=1 // pred_fallthru
      _
    // Predicated region
    $region110: #{transformer_forward.1} parent=1 // pred_check
      _
    $region111: #{transformer_forward.1} parent=1 // pred_check_branch
      %4089 = sbr.rel (0) target = $region113
    $region112: #{transformer_forward.1} parent=1 // pred_region
      _
    $region113: #{transformer_forward.1} parent=1 // pred_fallthru
      _
    %4090 = vsyncpa [#allocation4], 1
    %4091 = vsyncpa [#allocation6], 1
    %4092 = vsyncpa [#allocation9], 1
    %4093 = vsyncpa [#allocation12], 1

</llo_original>
